<compile_context>
chip_gen: v7x
topology: tpu7x:2x2x1
jax: 0.10.0
libtpu: 0.0.40
codegen_flags: <defaults>
</compile_context>

<pallas_src>
import jax
import jax.numpy as jnp
from jax.experimental import pallas as pl
from jax.experimental.pallas import tpu as pltpu

LRELU_SLOPE = 0.01   # nn.LeakyReLU default
IN_EPS = 1e-5        # nn.InstanceNorm3d default


def _round_up(x, m):
    return (x + m - 1) // m * m


def _vmem_bytes(shape, dtype):
    """Padded VMEM footprint of a buffer (last two dims tiled)."""
    item = jnp.dtype(dtype).itemsize
    sub = 8 * (4 // item)                      # 8 rows for f32, 16 for bf16
    lead = 1
    for d in shape[:-2]:
        lead *= int(d)
    rows = int(shape[-2]) if len(shape) >= 2 else 1
    cols = int(shape[-1])
    return lead * _round_up(rows, sub) * _round_up(cols, 128) * item


def _make_kernel(D, H, W, C1, C2, PL, LF, P):
    """Build the per-sample kernel as a closure over the static geometry."""
    Hp, Wp = H + 2, W + 2
    L = Hp * Wp + Wp + 1                 # max |flat shift| of a 3x3x3 tap
    PW = PL + 2 * LF                     # width of the "wide" flat buffers
    inv_cnt = 1.0 / float(D * H * W)
    # Wide-buffer start offset of tap (kd, kh, kw); matches the (kd,kh,kw)-major
    # layout of the flattened weights.
    starts = [LF - L + kd * Hp * Wp + kh * Wp + kw
              for kd in range(3) for kh in range(3) for kw in range(3)]
    tail0 = LF + (P // 128) * 128        # 128-aligned start of the tail zeros

    def kernel(x_ref, mask_ref, w1_ref, w2_ref, gb_ref, out_ref,
               col_ref, xwide_ref, ywide_ref):
        mask = mask_ref[...]                                   # (1, PL) f32

        # ---- stage conv1 input into the wide bf16 buffer --------------------
        # Zero flanks/tail first, then convert-copy the (C1, P) f32 block into
        # the interior. Interior conv outputs never read the flanks; the zeros
        # only keep the (masked) halo/tail garbage finite.
        xwide_ref[:, 0:LF] = jnp.zeros((C1, LF), jnp.bfloat16)
        xwide_ref[:, tail0:PW] = jnp.zeros((C1, PW - tail0), jnp.bfloat16)
        for c0 in range(0, C1, 16):
            xwide_ref[c0:c0 + 16, LF:LF + P] = (
                x_ref[0, c0:c0 + 16, :].astype(jnp.bfloat16))

        # ---- conv1: ref-sliced im2col tap copies + one fat bf16 MXU matmul ---
        for t, s in enumerate(starts):
            col_ref[t * C1:(t + 1) * C1, :] = xwide_ref[:, s:s + PL]
        acc1 = jnp.dot(w1_ref[...], col_ref[0:27 * C1, :],
                       preferred_element_type=jnp.float32)      # (C2, PL) f32

        # ---- instance norm 1 (fused single-sweep stats) + leaky relu ---------
        am1 = acc1 * mask
        m1 = jnp.sum(am1, axis=1, keepdims=True) * inv_cnt
        v1 = jnp.sum(am1 * acc1, axis=1, keepdims=True) * inv_cnt - m1 * m1
        scale1 = gb_ref[:, 0:1] * jax.lax.rsqrt(jnp.maximum(v1, 0.0) + IN_EPS)
        shift1 = gb_ref[:, 1:2] - m1 * scale1
        y1 = acc1 * scale1 + shift1
        y1 = jnp.where(y1 > 0, y1, LRELU_SLOPE * y1)
        y1 = y1 * mask      # zero the halo/tail -> this IS conv2's zero padding

        # ---- stage conv2 input (bf16 wide buffer; zero only the flanks) ------
        # y1 already has C2 rows; padded output rows are exactly zero because
        # the padded weight rows and gamma/beta rows are zero.
        ywide_ref[:, 0:LF] = jnp.zeros((C2, LF), jnp.bfloat16)
        ywide_ref[:, LF + PL:PW] = jnp.zeros((C2, LF), jnp.bfloat16)
        ywide_ref[:, LF:LF + PL] = y1.astype(jnp.bfloat16)

        # ---- conv2 (reuses the shared im2col scratch) -------------------------
        for t, s in enumerate(starts):
            col_ref[t * C2:(t + 1) * C2, :] = ywide_ref[:, s:s + PL]
        acc2 = jnp.dot(w2_ref[...], col_ref[0:27 * C2, :],
                       preferred_element_type=jnp.float32)      # (C2, PL) f32

        # ---- instance norm 2 + leaky relu -------------------------------------
        am2 = acc2 * mask
        m2 = jnp.sum(am2, axis=1, keepdims=True) * inv_cnt
        v2 = jnp.sum(am2 * acc2, axis=1, keepdims=True) * inv_cnt - m2 * m2
        scale2 = gb_ref[:, 2:3] * jax.lax.rsqrt(jnp.maximum(v2, 0.0) + IN_EPS)
        shift2 = gb_ref[:, 3:4] - m2 * scale2
        y2 = acc2 * scale2 + shift2
        y2 = jnp.where(y2 > 0, y2, LRELU_SLOPE * y2)
        # Halo / lane-tail / padded-channel rows are sliced off by the wrapper.
        out_ref[0] = y2.astype(out_ref.dtype)

    return kernel


@jax.jit
def conv_block_3d(x_ncdhw, w1, b1, g1, be1, w2, b2, g2, be2):
    """ConvBlock3D forward. NCDHW in / NCDHW out, PyTorch parameter layouts.

    b1 / b2 are accepted for interface parity; a per-channel conv bias is
    removed exactly by the (always-on) InstanceNorm, so it is folded away.
    """
    del b1, b2
    N, Cin, D, H, W = x_ncdhw.shape
    Cout = w1.shape[0]
    Dp, Hp, Wp = D + 2, H + 2, W + 2
    P = Dp * Hp * Wp                    # padded-grid voxel count
    PL = _round_up(P, 128)              # lane-padded spatial extent
    L = Hp * Wp + Wp + 1                # max |flat shift| of a 3x3x3 tap
    LF = _round_up(L, 128)              # 128-aligned flank width of wide buffers
    PW = PL + 2 * LF
    # bf16 staging: channel groups padded to 16 (sublane-tile aligned).
    C1 = _round_up(Cin, 16)             # conv1 contraction channels
    C2 = _round_up(Cout, 16)            # output channels / conv2 contraction
    Cmax = max(C1, C2)

    # The flat-shift trick silently reads out of its window if the flank is
    # narrower than the max tap shift -> guard it statically.
    assert LF >= L, (LF, L)
    assert PW >= LF + PL + L, (PW, LF, PL, L)

    x = x_ncdhw.astype(jnp.float32)
    # channel pad -> spatial "same" pad -> flatten spatial (no wide pad here:
    # the 128-lane flanks are added in-kernel).
    xp = jnp.pad(x, ((0, 0), (0, C1 - Cin), (1, 1), (1, 1), (1, 1)))
    x_flat = xp.reshape(N, C1, P)

    # Interior-voxel mask on the (lane-padded) padded grid.
    mask = jnp.pad(jnp.ones((D, H, W), jnp.float32),
                   ((1, 1), (1, 1), (1, 1))).reshape(-1)
    mask = jnp.pad(mask, (0, PL - P)).reshape(1, PL)

    # [Cout, Cin, 3,3,3] -> (C2, 27*C) bf16; column = tap*C + cin; padded rows /
    # columns are zero so they contribute exactly nothing.
    w1f = jnp.pad(w1.astype(jnp.float32),
                  ((0, C2 - Cout), (0, C1 - Cin), (0, 0), (0, 0), (0, 0)))
    w1f = jnp.transpose(w1f, (0, 2, 3, 4, 1)).reshape(C2, 27 * C1)
    w1f = w1f.astype(jnp.bfloat16)
    w2f = jnp.pad(w2.astype(jnp.float32),
                  ((0, C2 - Cout), (0, C2 - Cout), (0, 0), (0, 0), (0, 0)))
    w2f = jnp.transpose(w2f, (0, 2, 3, 4, 1)).reshape(C2, 27 * C2)
    w2f = w2f.astype(jnp.bfloat16)

    # gamma1 / beta1 / gamma2 / beta2 packed into one (C2, 4) block.
    gb = jnp.stack([g1, be1, g2, be2], axis=1).astype(jnp.float32)
    gb = jnp.pad(gb, ((0, C2 - Cout), (0, 0)))

    kernel = _make_kernel(D, H, W, C1, C2, PL, LF, P)

    # Explicit scoped-VMEM budget: double-buffered blocks + scratch, + headroom.
    block_bytes = 2 * (_vmem_bytes((1, C1, P), jnp.float32) +
                       _vmem_bytes((1, PL), jnp.float32) +
                       _vmem_bytes((C2, 27 * C1), jnp.bfloat16) +
                       _vmem_bytes((C2, 27 * C2), jnp.bfloat16) +
                       _vmem_bytes((C2, 4), jnp.float32) +
                       _vmem_bytes((1, C2, PL), jnp.float32))
    scratch_bytes = (_vmem_bytes((27 * Cmax, PL), jnp.bfloat16) +
                     _vmem_bytes((C1, PW), jnp.bfloat16) +
                     _vmem_bytes((C2, PW), jnp.bfloat16))
    vmem_limit = min(max(int(1.3 * (block_bytes + scratch_bytes)) + (2 << 20),
                         32 << 20), 100 << 20)

    out_flat = pl.pallas_call(
        kernel,
        out_shape=jax.ShapeDtypeStruct((N, C2, PL), jnp.float32),
        grid_spec=pltpu.PrefetchScalarGridSpec(
            num_scalar_prefetch=0,
            grid=(N,),
            in_specs=[
                pl.BlockSpec((1, C1, P), lambda n: (n, 0, 0)),     # flat input
                pl.BlockSpec((1, PL), lambda n: (0, 0)),           # mask
                pl.BlockSpec((C2, 27 * C1), lambda n: (0, 0)),     # w1 (bf16)
                pl.BlockSpec((C2, 27 * C2), lambda n: (0, 0)),     # w2 (bf16)
                pl.BlockSpec((C2, 4), lambda n: (0, 0)),           # gamma/beta
            ],
            out_specs=pl.BlockSpec((1, C2, PL), lambda n: (n, 0, 0)),
            scratch_shapes=[
                pltpu.VMEM((27 * Cmax, PL), jnp.bfloat16),   # shared im2col
                pltpu.VMEM((C1, PW), jnp.bfloat16),          # wide conv1 input
                pltpu.VMEM((C2, PW), jnp.bfloat16),          # wide conv2 input
            ],
        ),
        # One sample per grid step; "parallel" lets a dual-TC chip split the
        # batch while costing nothing on single-core v5e/v6e. Everything in the
        # scratch buffers is (re)written every step, so per-core scratch under
        # 'parallel' is safe.
        compiler_params=pltpu.CompilerParams(
            dimension_semantics=("parallel",),
            vmem_limit_bytes=vmem_limit),
    )(x_flat, mask, w1f, w2f, gb)

    # (N, C2, PL) -> NCDHW: drop channel/lane padding + conv halo (XLA glue).
    out = out_flat[:, :Cout, :P].reshape(N, Cout, Dp, Hp, Wp)
    return out[:, :, 1:-1, 1:-1, 1:-1]


def _reference_forward(x_ncdhw, w1, b1, g1, be1, w2, b2, g2, be2,
                       conv_dtype=jnp.float32):
    """Plain-JAX reference (lax conv) mirroring the PyTorch forward.

    conv_dtype=jnp.bfloat16 reproduces the kernel's staging precision
    (bf16 conv operands, f32 accumulation, f32 norm), for a tight check.
    """
    def block(x_ndhwc, w_pt, b, g, be):
        w = jnp.transpose(w_pt, (2, 3, 4, 1, 0)).astype(conv_dtype)  # DHWIO
        y = jax.lax.conv_general_dilated(
            x_ndhwc.astype(conv_dtype), w, window_strides=(1, 1, 1),
            padding="SAME", dimension_numbers=("NDHWC", "DHWIO", "NDHWC"),
            preferred_element_type=jnp.float32) + b
        mean = y.mean(axis=(1, 2, 3), keepdims=True)
        var = ((y - mean) ** 2).mean(axis=(1, 2, 3), keepdims=True)
        y = (y - mean) * jax.lax.rsqrt(var + IN_EPS) * g + be
        return jnp.where(y > 0, y, LRELU_SLOPE * y)

    x = jnp.transpose(x_ncdhw, (0, 2, 3, 4, 1)).astype(jnp.float32)
    y = block(x, w1, b1, g1, be1)
    y = block(y, w2, b2, g2, be2)
    return jnp.transpose(y, (0, 4, 1, 2, 3))


if __name__ == "__main__":
    # Small shapes consistent with the module: N=2, Cin=4, Cout=8, D=H=W=8.
    N, Cin, Cout, D, H, W = 2, 4, 8, 8, 8, 8

    key = jax.random.PRNGKey(0)
    kx, kw1, kb1, kw2, kb2 = jax.random.split(key, 5)

    x = jax.random.normal(kx, (N, Cin, D, H, W), jnp.float32)

    # PyTorch parameter layouts: conv weight [Cout, Cin, kD, kH, kW].
    w1 = jax.random.normal(kw1, (Cout, Cin, 3, 3, 3), jnp.float32) * 0.1
    b1 = jax.random.normal(kb1, (Cout,), jnp.float32) * 0.1
    g1 = jnp.ones((Cout,), jnp.float32)    # InstanceNorm3d affine weight init
    be1 = jnp.zeros((Cout,), jnp.float32)  # InstanceNorm3d affine bias init
    w2 = jax.random.normal(kw2, (Cout, Cout, 3, 3, 3), jnp.float32) * 0.1
    b2 = jax.random.normal(kb2, (Cout,), jnp.float32) * 0.1
    g2 = jnp.ones((Cout,), jnp.float32)
    be2 = jnp.zeros((Cout,), jnp.float32)

    out = conv_block_3d(x, w1, b1, g1, be1, w2, b2, g2, be2)
    out = jax.block_until_ready(out)
    assert out.shape == (N, Cout, D, H, W), out.shape

    # Tight check against a reference with matched (bf16-staged) precision.
    ref_bf16 = jax.block_until_ready(_reference_forward(
        x, w1, b1, g1, be1, w2, b2, g2, be2, conv_dtype=jnp.bfloat16))
    err_matched = float(jnp.max(jnp.abs(out - ref_bf16)))
    assert jnp.allclose(out, ref_bf16, rtol=5e-3, atol=5e-3), err_matched

    # Looser semantic check against the full-f32 reference (bf16 staging noise).
    ref_f32 = jax.block_until_ready(_reference_forward(
        x, w1, b1, g1, be1, w2, b2, g2, be2, conv_dtype=jnp.float32))
    err_f32 = float(jnp.max(jnp.abs(out - ref_f32)))
    assert jnp.allclose(out, ref_f32, rtol=5e-2, atol=5e-2), err_f32

    print("KERNEL_OK")
</pallas_src>

<mosaic_0001>
module attributes {stable_mosaic.version = 11 : i64} {
  func.func @kernel(%arg0: i32, %arg1: memref<1x16x1000xf32, #tpu.memory_space<vmem>>, %arg2: memref<1x1024xf32, #tpu.memory_space<vmem>>, %arg3: memref<16x432xbf16, #tpu.memory_space<vmem>>, %arg4: memref<16x432xbf16, #tpu.memory_space<vmem>>, %arg5: memref<16x4xf32, #tpu.memory_space<vmem>>, %arg6: memref<1x16x1024xf32, #tpu.memory_space<vmem>>, %arg7: memref<432x1024xbf16, #tpu.memory_space<vmem>>, %arg8: memref<16x1280xbf16, #tpu.memory_space<vmem>>, %arg9: memref<16x1280xbf16, #tpu.memory_space<vmem>>) attributes {dimension_semantics = [#tpu.dimension_semantics<parallel>], iteration_bounds = array<i64: 2>, scalar_prefetch = 0 : i64, scratch_operands = 3 : i64, tpu.core_type = #tpu.core_type<tc>, window_params = [{transform_indices = @transform_0, window_bounds = array<i64: 1, 16, 1000>}, {pipeline_mode = #tpu.pipeline_mode<synchronous>, transform_indices = @transform_1, window_bounds = array<i64: 1, 1024>}, {pipeline_mode = #tpu.pipeline_mode<synchronous>, transform_indices = @transform_2, window_bounds = array<i64: 16, 432>}, {pipeline_mode = #tpu.pipeline_mode<synchronous>, transform_indices = @transform_3, window_bounds = array<i64: 16, 432>}, {pipeline_mode = #tpu.pipeline_mode<synchronous>, transform_indices = @transform_4, window_bounds = array<i64: 16, 4>}, {transform_indices = @transform_5, window_bounds = array<i64: 1, 16, 1024>}]} {
    %c0 = arith.constant 0 : index
    %c0_0 = arith.constant 0 : index
    %0 = vector.load %arg2[%c0, %c0_0] : memref<1x1024xf32, #tpu.memory_space<vmem>>, vector<1x1024xf32>
    %cst = arith.constant 0.000000e+00 : bf16
    %1 = vector.broadcast %cst : bf16 to vector<16x128xbf16>
    %c0_1 = arith.constant 0 : index
    %c0_2 = arith.constant 0 : index
    %2 = vector.load %arg8[%c0_1, %c0_2] : memref<16x1280xbf16, #tpu.memory_space<vmem>>, vector<16x128xbf16>
    tpu.vector_store %arg8[%c0_1, %c0_2], %1 {strides = array<i32>} : memref<16x1280xbf16, #tpu.memory_space<vmem>>, vector<16x128xbf16>,
    %cst_3 = arith.constant 0.000000e+00 : bf16
    %3 = vector.broadcast %cst_3 : bf16 to vector<16x256xbf16>
    %c0_4 = arith.constant 0 : index
    %c1024 = arith.constant 1024 : index
    %4 = vector.load %arg8[%c0_4, %c1024] : memref<16x1280xbf16, #tpu.memory_space<vmem>>, vector<16x256xbf16>
    tpu.vector_store %arg8[%c0_4, %c1024], %3 {strides = array<i32>} : memref<16x1280xbf16, #tpu.memory_space<vmem>>, vector<16x256xbf16>,
    %c0_5 = arith.constant 0 : index
    %c0_6 = arith.constant 0 : index
    %c0_7 = arith.constant 0 : index
    %5 = vector.load %arg1[%c0_5, %c0_6, %c0_7] : memref<1x16x1000xf32, #tpu.memory_space<vmem>>, vector<1x16x1000xf32>
    %6 = vector.shape_cast %5 : vector<1x16x1000xf32> to vector<16x1000xf32>
    %7 = arith.truncf %6 : vector<16x1000xf32> to vector<16x1000xbf16>
    %c0_8 = arith.constant 0 : index
    %c128 = arith.constant 128 : index
    %8 = vector.load %arg8[%c0_8, %c128] : memref<16x1280xbf16, #tpu.memory_space<vmem>>, vector<16x1000xbf16>
    tpu.vector_store %arg8[%c0_8, %c128], %7 {strides = array<i32>} : memref<16x1280xbf16, #tpu.memory_space<vmem>>, vector<16x1000xbf16>,
    %c0_9 = arith.constant 0 : index
    %c17 = arith.constant 17 : index
    %9 = vector.load %arg8[%c0_9, %c17] : memref<16x1280xbf16, #tpu.memory_space<vmem>>, vector<16x1024xbf16>
    %c0_10 = arith.constant 0 : index
    %c0_11 = arith.constant 0 : index
    %10 = vector.load %arg7[%c0_10, %c0_11] : memref<432x1024xbf16, #tpu.memory_space<vmem>>, vector<16x1024xbf16>
    tpu.vector_store %arg7[%c0_10, %c0_11], %9 {strides = array<i32>} : memref<432x1024xbf16, #tpu.memory_space<vmem>>, vector<16x1024xbf16>,
    %c0_12 = arith.constant 0 : index
    %c18 = arith.constant 18 : index
    %11 = vector.load %arg8[%c0_12, %c18] : memref<16x1280xbf16, #tpu.memory_space<vmem>>, vector<16x1024xbf16>
    %c16 = arith.constant 16 : index
    %c0_13 = arith.constant 0 : index
    %12 = vector.load %arg7[%c16, %c0_13] : memref<432x1024xbf16, #tpu.memory_space<vmem>>, vector<16x1024xbf16>
    tpu.vector_store %arg7[%c16, %c0_13], %11 {strides = array<i32>} : memref<432x1024xbf16, #tpu.memory_space<vmem>>, vector<16x1024xbf16>,
    %c0_14 = arith.constant 0 : index
    %c19 = arith.constant 19 : index
    %13 = vector.load %arg8[%c0_14, %c19] : memref<16x1280xbf16, #tpu.memory_space<vmem>>, vector<16x1024xbf16>
    %c32 = arith.constant 32 : index
    %c0_15 = arith.constant 0 : index
    %14 = vector.load %arg7[%c32, %c0_15] : memref<432x1024xbf16, #tpu.memory_space<vmem>>, vector<16x1024xbf16>
    tpu.vector_store %arg7[%c32, %c0_15], %13 {strides = array<i32>} : memref<432x1024xbf16, #tpu.memory_space<vmem>>, vector<16x1024xbf16>,
    %c0_16 = arith.constant 0 : index
    %c27 = arith.constant 27 : index
    %15 = vector.load %arg8[%c0_16, %c27] : memref<16x1280xbf16, #tpu.memory_space<vmem>>, vector<16x1024xbf16>
    %c48 = arith.constant 48 : index
    %c0_17 = arith.constant 0 : index
    %16 = vector.load %arg7[%c48, %c0_17] : memref<432x1024xbf16, #tpu.memory_space<vmem>>, vector<16x1024xbf16>
    tpu.vector_store %arg7[%c48, %c0_17], %15 {strides = array<i32>} : memref<432x1024xbf16, #tpu.memory_space<vmem>>, vector<16x1024xbf16>,
    %c0_18 = arith.constant 0 : index
    %c28 = arith.constant 28 : index
    %17 = vector.load %arg8[%c0_18, %c28] : memref<16x1280xbf16, #tpu.memory_space<vmem>>, vector<16x1024xbf16>
    %c64 = arith.constant 64 : index
    %c0_19 = arith.constant 0 : index
    %18 = vector.load %arg7[%c64, %c0_19] : memref<432x1024xbf16, #tpu.memory_space<vmem>>, vector<16x1024xbf16>
    tpu.vector_store %arg7[%c64, %c0_19], %17 {strides = array<i32>} : memref<432x1024xbf16, #tpu.memory_space<vmem>>, vector<16x1024xbf16>,
    %c0_20 = arith.constant 0 : index
    %c29 = arith.constant 29 : index
    %19 = vector.load %arg8[%c0_20, %c29] : memref<16x1280xbf16, #tpu.memory_space<vmem>>, vector<16x1024xbf16>
    %c80 = arith.constant 80 : index
    %c0_21 = arith.constant 0 : index
    %20 = vector.load %arg7[%c80, %c0_21] : memref<432x1024xbf16, #tpu.memory_space<vmem>>, vector<16x1024xbf16>
    tpu.vector_store %arg7[%c80, %c0_21], %19 {strides = array<i32>} : memref<432x1024xbf16, #tpu.memory_space<vmem>>, vector<16x1024xbf16>,
    %c0_22 = arith.constant 0 : index
    %c37 = arith.constant 37 : index
    %21 = vector.load %arg8[%c0_22, %c37] : memref<16x1280xbf16, #tpu.memory_space<vmem>>, vector<16x1024xbf16>
    %c96 = arith.constant 96 : index
    %c0_23 = arith.constant 0 : index
    %22 = vector.load %arg7[%c96, %c0_23] : memref<432x1024xbf16, #tpu.memory_space<vmem>>, vector<16x1024xbf16>
    tpu.vector_store %arg7[%c96, %c0_23], %21 {strides = array<i32>} : memref<432x1024xbf16, #tpu.memory_space<vmem>>, vector<16x1024xbf16>,
    %c0_24 = arith.constant 0 : index
    %c38 = arith.constant 38 : index
    %23 = vector.load %arg8[%c0_24, %c38] : memref<16x1280xbf16, #tpu.memory_space<vmem>>, vector<16x1024xbf16>
    %c112 = arith.constant 112 : index
    %c0_25 = arith.constant 0 : index
    %24 = vector.load %arg7[%c112, %c0_25] : memref<432x1024xbf16, #tpu.memory_space<vmem>>, vector<16x1024xbf16>
    tpu.vector_store %arg7[%c112, %c0_25], %23 {strides = array<i32>} : memref<432x1024xbf16, #tpu.memory_space<vmem>>, vector<16x1024xbf16>,
    %c0_26 = arith.constant 0 : index
    %c39 = arith.constant 39 : index
    %25 = vector.load %arg8[%c0_26, %c39] : memref<16x1280xbf16, #tpu.memory_space<vmem>>, vector<16x1024xbf16>
    %c128_27 = arith.constant 128 : index
    %c0_28 = arith.constant 0 : index
    %26 = vector.load %arg7[%c128_27, %c0_28] : memref<432x1024xbf16, #tpu.memory_space<vmem>>, vector<16x1024xbf16>
    tpu.vector_store %arg7[%c128_27, %c0_28], %25 {strides = array<i32>} : memref<432x1024xbf16, #tpu.memory_space<vmem>>, vector<16x1024xbf16>,
    %c0_29 = arith.constant 0 : index
    %c117 = arith.constant 117 : index
    %27 = vector.load %arg8[%c0_29, %c117] : memref<16x1280xbf16, #tpu.memory_space<vmem>>, vector<16x1024xbf16>
    %c144 = arith.constant 144 : index
    %c0_30 = arith.constant 0 : index
    %28 = vector.load %arg7[%c144, %c0_30] : memref<432x1024xbf16, #tpu.memory_space<vmem>>, vector<16x1024xbf16>
    tpu.vector_store %arg7[%c144, %c0_30], %27 {strides = array<i32>} : memref<432x1024xbf16, #tpu.memory_space<vmem>>, vector<16x1024xbf16>,
    %c0_31 = arith.constant 0 : index
    %c118 = arith.constant 118 : index
    %29 = vector.load %arg8[%c0_31, %c118] : memref<16x1280xbf16, #tpu.memory_space<vmem>>, vector<16x1024xbf16>
    %c160 = arith.constant 160 : index
    %c0_32 = arith.constant 0 : index
    %30 = vector.load %arg7[%c160, %c0_32] : memref<432x1024xbf16, #tpu.memory_space<vmem>>, vector<16x1024xbf16>
    tpu.vector_store %arg7[%c160, %c0_32], %29 {strides = array<i32>} : memref<432x1024xbf16, #tpu.memory_space<vmem>>, vector<16x1024xbf16>,
    %c0_33 = arith.constant 0 : index
    %c119 = arith.constant 119 : index
    %31 = vector.load %arg8[%c0_33, %c119] : memref<16x1280xbf16, #tpu.memory_space<vmem>>, vector<16x1024xbf16>
    %c176 = arith.constant 176 : index
    %c0_34 = arith.constant 0 : index
    %32 = vector.load %arg7[%c176, %c0_34] : memref<432x1024xbf16, #tpu.memory_space<vmem>>, vector<16x1024xbf16>
    tpu.vector_store %arg7[%c176, %c0_34], %31 {strides = array<i32>} : memref<432x1024xbf16, #tpu.memory_space<vmem>>, vector<16x1024xbf16>,
    %c0_35 = arith.constant 0 : index
    %c127 = arith.constant 127 : index
    %33 = vector.load %arg8[%c0_35, %c127] : memref<16x1280xbf16, #tpu.memory_space<vmem>>, vector<16x1024xbf16>
    %c192 = arith.constant 192 : index
    %c0_36 = arith.constant 0 : index
    %34 = vector.load %arg7[%c192, %c0_36] : memref<432x1024xbf16, #tpu.memory_space<vmem>>, vector<16x1024xbf16>
    tpu.vector_store %arg7[%c192, %c0_36], %33 {strides = array<i32>} : memref<432x1024xbf16, #tpu.memory_space<vmem>>, vector<16x1024xbf16>,
    %c0_37 = arith.constant 0 : index
    %c128_38 = arith.constant 128 : index
    %35 = vector.load %arg8[%c0_37, %c128_38] : memref<16x1280xbf16, #tpu.memory_space<vmem>>, vector<16x1024xbf16>
    %c208 = arith.constant 208 : index
    %c0_39 = arith.constant 0 : index
    %36 = vector.load %arg7[%c208, %c0_39] : memref<432x1024xbf16, #tpu.memory_space<vmem>>, vector<16x1024xbf16>
    tpu.vector_store %arg7[%c208, %c0_39], %35 {strides = array<i32>} : memref<432x1024xbf16, #tpu.memory_space<vmem>>, vector<16x1024xbf16>,
    %c0_40 = arith.constant 0 : index
    %c129 = arith.constant 129 : index
    %37 = vector.load %arg8[%c0_40, %c129] : memref<16x1280xbf16, #tpu.memory_space<vmem>>, vector<16x1024xbf16>
    %c224 = arith.constant 224 : index
    %c0_41 = arith.constant 0 : index
    %38 = vector.load %arg7[%c224, %c0_41] : memref<432x1024xbf16, #tpu.memory_space<vmem>>, vector<16x1024xbf16>
    tpu.vector_store %arg7[%c224, %c0_41], %37 {strides = array<i32>} : memref<432x1024xbf16, #tpu.memory_space<vmem>>, vector<16x1024xbf16>,
    %c0_42 = arith.constant 0 : index
    %c137 = arith.constant 137 : index
    %39 = vector.load %arg8[%c0_42, %c137] : memref<16x1280xbf16, #tpu.memory_space<vmem>>, vector<16x1024xbf16>
    %c240 = arith.constant 240 : index
    %c0_43 = arith.constant 0 : index
    %40 = vector.load %arg7[%c240, %c0_43] : memref<432x1024xbf16, #tpu.memory_space<vmem>>, vector<16x1024xbf16>
    tpu.vector_store %arg7[%c240, %c0_43], %39 {strides = array<i32>} : memref<432x1024xbf16, #tpu.memory_space<vmem>>, vector<16x1024xbf16>,
    %c0_44 = arith.constant 0 : index
    %c138 = arith.constant 138 : index
    %41 = vector.load %arg8[%c0_44, %c138] : memref<16x1280xbf16, #tpu.memory_space<vmem>>, vector<16x1024xbf16>
    %c256 = arith.constant 256 : index
    %c0_45 = arith.constant 0 : index
    %42 = vector.load %arg7[%c256, %c0_45] : memref<432x1024xbf16, #tpu.memory_space<vmem>>, vector<16x1024xbf16>
    tpu.vector_store %arg7[%c256, %c0_45], %41 {strides = array<i32>} : memref<432x1024xbf16, #tpu.memory_space<vmem>>, vector<16x1024xbf16>,
    %c0_46 = arith.constant 0 : index
    %c139 = arith.constant 139 : index
    %43 = vector.load %arg8[%c0_46, %c139] : memref<16x1280xbf16, #tpu.memory_space<vmem>>, vector<16x1024xbf16>
    %c272 = arith.constant 272 : index
    %c0_47 = arith.constant 0 : index
    %44 = vector.load %arg7[%c272, %c0_47] : memref<432x1024xbf16, #tpu.memory_space<vmem>>, vector<16x1024xbf16>
    tpu.vector_store %arg7[%c272, %c0_47], %43 {strides = array<i32>} : memref<432x1024xbf16, #tpu.memory_space<vmem>>, vector<16x1024xbf16>,
    %c0_48 = arith.constant 0 : index
    %c217 = arith.constant 217 : index
    %45 = vector.load %arg8[%c0_48, %c217] : memref<16x1280xbf16, #tpu.memory_space<vmem>>, vector<16x1024xbf16>
    %c288 = arith.constant 288 : index
    %c0_49 = arith.constant 0 : index
    %46 = vector.load %arg7[%c288, %c0_49] : memref<432x1024xbf16, #tpu.memory_space<vmem>>, vector<16x1024xbf16>
    tpu.vector_store %arg7[%c288, %c0_49], %45 {strides = array<i32>} : memref<432x1024xbf16, #tpu.memory_space<vmem>>, vector<16x1024xbf16>,
    %c0_50 = arith.constant 0 : index
    %c218 = arith.constant 218 : index
    %47 = vector.load %arg8[%c0_50, %c218] : memref<16x1280xbf16, #tpu.memory_space<vmem>>, vector<16x1024xbf16>
    %c304 = arith.constant 304 : index
    %c0_51 = arith.constant 0 : index
    %48 = vector.load %arg7[%c304, %c0_51] : memref<432x1024xbf16, #tpu.memory_space<vmem>>, vector<16x1024xbf16>
    tpu.vector_store %arg7[%c304, %c0_51], %47 {strides = array<i32>} : memref<432x1024xbf16, #tpu.memory_space<vmem>>, vector<16x1024xbf16>,
    %c0_52 = arith.constant 0 : index
    %c219 = arith.constant 219 : index
    %49 = vector.load %arg8[%c0_52, %c219] : memref<16x1280xbf16, #tpu.memory_space<vmem>>, vector<16x1024xbf16>
    %c320 = arith.constant 320 : index
    %c0_53 = arith.constant 0 : index
    %50 = vector.load %arg7[%c320, %c0_53] : memref<432x1024xbf16, #tpu.memory_space<vmem>>, vector<16x1024xbf16>
    tpu.vector_store %arg7[%c320, %c0_53], %49 {strides = array<i32>} : memref<432x1024xbf16, #tpu.memory_space<vmem>>, vector<16x1024xbf16>,
    %c0_54 = arith.constant 0 : index
    %c227 = arith.constant 227 : index
    %51 = vector.load %arg8[%c0_54, %c227] : memref<16x1280xbf16, #tpu.memory_space<vmem>>, vector<16x1024xbf16>
    %c336 = arith.constant 336 : index
    %c0_55 = arith.constant 0 : index
    %52 = vector.load %arg7[%c336, %c0_55] : memref<432x1024xbf16, #tpu.memory_space<vmem>>, vector<16x1024xbf16>
    tpu.vector_store %arg7[%c336, %c0_55], %51 {strides = array<i32>} : memref<432x1024xbf16, #tpu.memory_space<vmem>>, vector<16x1024xbf16>,
    %c0_56 = arith.constant 0 : index
    %c228 = arith.constant 228 : index
    %53 = vector.load %arg8[%c0_56, %c228] : memref<16x1280xbf16, #tpu.memory_space<vmem>>, vector<16x1024xbf16>
    %c352 = arith.constant 352 : index
    %c0_57 = arith.constant 0 : index
    %54 = vector.load %arg7[%c352, %c0_57] : memref<432x1024xbf16, #tpu.memory_space<vmem>>, vector<16x1024xbf16>
    tpu.vector_store %arg7[%c352, %c0_57], %53 {strides = array<i32>} : memref<432x1024xbf16, #tpu.memory_space<vmem>>, vector<16x1024xbf16>,
    %c0_58 = arith.constant 0 : index
    %c229 = arith.constant 229 : index
    %55 = vector.load %arg8[%c0_58, %c229] : memref<16x1280xbf16, #tpu.memory_space<vmem>>, vector<16x1024xbf16>
    %c368 = arith.constant 368 : index
    %c0_59 = arith.constant 0 : index
    %56 = vector.load %arg7[%c368, %c0_59] : memref<432x1024xbf16, #tpu.memory_space<vmem>>, vector<16x1024xbf16>
    tpu.vector_store %arg7[%c368, %c0_59], %55 {strides = array<i32>} : memref<432x1024xbf16, #tpu.memory_space<vmem>>, vector<16x1024xbf16>,
    %c0_60 = arith.constant 0 : index
    %c237 = arith.constant 237 : index
    %57 = vector.load %arg8[%c0_60, %c237] : memref<16x1280xbf16, #tpu.memory_space<vmem>>, vector<16x1024xbf16>
    %c384 = arith.constant 384 : index
    %c0_61 = arith.constant 0 : index
    %58 = vector.load %arg7[%c384, %c0_61] : memref<432x1024xbf16, #tpu.memory_space<vmem>>, vector<16x1024xbf16>
    tpu.vector_store %arg7[%c384, %c0_61], %57 {strides = array<i32>} : memref<432x1024xbf16, #tpu.memory_space<vmem>>, vector<16x1024xbf16>,
    %c0_62 = arith.constant 0 : index
    %c238 = arith.constant 238 : index
    %59 = vector.load %arg8[%c0_62, %c238] : memref<16x1280xbf16, #tpu.memory_space<vmem>>, vector<16x1024xbf16>
    %c400 = arith.constant 400 : index
    %c0_63 = arith.constant 0 : index
    %60 = vector.load %arg7[%c400, %c0_63] : memref<432x1024xbf16, #tpu.memory_space<vmem>>, vector<16x1024xbf16>
    tpu.vector_store %arg7[%c400, %c0_63], %59 {strides = array<i32>} : memref<432x1024xbf16, #tpu.memory_space<vmem>>, vector<16x1024xbf16>,
    %c0_64 = arith.constant 0 : index
    %c239 = arith.constant 239 : index
    %61 = vector.load %arg8[%c0_64, %c239] : memref<16x1280xbf16, #tpu.memory_space<vmem>>, vector<16x1024xbf16>
    %c416 = arith.constant 416 : index
    %c0_65 = arith.constant 0 : index
    %62 = vector.load %arg7[%c416, %c0_65] : memref<432x1024xbf16, #tpu.memory_space<vmem>>, vector<16x1024xbf16>
    tpu.vector_store %arg7[%c416, %c0_65], %61 {strides = array<i32>} : memref<432x1024xbf16, #tpu.memory_space<vmem>>, vector<16x1024xbf16>,
    %c0_66 = arith.constant 0 : index
    %c0_67 = arith.constant 0 : index
    %63 = vector.load %arg3[%c0_66, %c0_67] : memref<16x432xbf16, #tpu.memory_space<vmem>>, vector<16x432xbf16>
    %c0_68 = arith.constant 0 : index
    %c0_69 = arith.constant 0 : index
    %64 = vector.load %arg7[%c0_68, %c0_69] : memref<432x1024xbf16, #tpu.memory_space<vmem>>, vector<432x1024xbf16>
    %cst_70 = arith.constant dense<0.000000e+00> : vector<16x1024xf32>
    %65 = tpu.matmul %63, %64, %cst_70 {dimension_numbers = #tpu.dot_dimension_numbers<[1], [0], [0], [1], [0, 0, 1, 1], [], []>} : vector<16x432xbf16>, vector<432x1024xbf16>, vector<16x1024xf32> -> vector<16x1024xf32>
    %66 = vector.broadcast %0 : vector<1x1024xf32> to vector<16x1024xf32>
    %67 = arith.mulf %65, %66 : vector<16x1024xf32>
    %cst_71 = arith.constant dense<0.000000e+00> : vector<16xf32>
    %68 = vector.multi_reduction <add>, %67, %cst_71 [1] : vector<16x1024xf32> to vector<16xf32>
    %69 = vector.shape_cast %68 : vector<16xf32> to vector<16x1xf32>
    %cst_72 = arith.constant 0.001953125 : f32
    %70 = vector.broadcast %cst_72 : f32 to vector<16x1xf32>
    %71 = arith.mulf %69, %70 : vector<16x1xf32>
    %72 = arith.mulf %67, %65 : vector<16x1024xf32>
    %cst_73 = arith.constant dense<0.000000e+00> : vector<16xf32>
    %73 = vector.multi_reduction <add>, %72, %cst_73 [1] : vector<16x1024xf32> to vector<16xf32>
    %74 = vector.shape_cast %73 : vector<16xf32> to vector<16x1xf32>
    %cst_74 = arith.constant 0.001953125 : f32
    %75 = vector.broadcast %cst_74 : f32 to vector<16x1xf32>
    %76 = arith.mulf %74, %75 : vector<16x1xf32>
    %77 = arith.mulf %71, %71 : vector<16x1xf32>
    %78 = arith.subf %76, %77 : vector<16x1xf32>
    %c0_75 = arith.constant 0 : index
    %c0_76 = arith.constant 0 : index
    %79 = vector.load %arg5[%c0_75, %c0_76] : memref<16x4xf32, #tpu.memory_space<vmem>>, vector<16x1xf32>
    %cst_77 = arith.constant 0.000000e+00 : f32
    %80 = vector.broadcast %cst_77 : f32 to vector<16x1xf32>
    %81 = arith.maximumf %78, %80 : vector<16x1xf32>
    %cst_78 = arith.constant 9.99999974E-6 : f32
    %82 = vector.broadcast %cst_78 : f32 to vector<16x1xf32>
    %83 = arith.addf %81, %82 : vector<16x1xf32>
    %84 = math.rsqrt %83 : vector<16x1xf32>
    %85 = arith.mulf %79, %84 : vector<16x1xf32>
    %c0_79 = arith.constant 0 : index
    %c1 = arith.constant 1 : index
    %86 = vector.load %arg5[%c0_79, %c1] : memref<16x4xf32, #tpu.memory_space<vmem>>, vector<16x1xf32>
    %87 = arith.mulf %71, %85 : vector<16x1xf32>
    %88 = arith.subf %86, %87 : vector<16x1xf32>
    %89 = vector.broadcast %85 : vector<16x1xf32> to vector<16x1024xf32>
    %90 = arith.mulf %65, %89 : vector<16x1024xf32>
    %91 = vector.broadcast %88 : vector<16x1xf32> to vector<16x1024xf32>
    %92 = arith.addf %90, %91 : vector<16x1024xf32>
    %cst_80 = arith.constant 0.000000e+00 : f32
    %93 = vector.broadcast %cst_80 : f32 to vector<16x1024xf32>
    %94 = arith.cmpf ogt, %92, %93 : vector<16x1024xf32>
    %cst_81 = arith.constant 0.00999999977 : f32
    %95 = vector.broadcast %cst_81 : f32 to vector<16x1024xf32>
    %96 = arith.mulf %95, %92 : vector<16x1024xf32>
    %97 = arith.select %94, %92, %96 : vector<16x1024xi1>, vector<16x1024xf32>
    %98 = vector.broadcast %0 : vector<1x1024xf32> to vector<16x1024xf32>
    %99 = arith.mulf %97, %98 : vector<16x1024xf32>
    %cst_82 = arith.constant 0.000000e+00 : bf16
    %100 = vector.broadcast %cst_82 : bf16 to vector<16x128xbf16>
    %c0_83 = arith.constant 0 : index
    %c0_84 = arith.constant 0 : index
    %101 = vector.load %arg9[%c0_83, %c0_84] : memref<16x1280xbf16, #tpu.memory_space<vmem>>, vector<16x128xbf16>
    tpu.vector_store %arg9[%c0_83, %c0_84], %100 {strides = array<i32>} : memref<16x1280xbf16, #tpu.memory_space<vmem>>, vector<16x128xbf16>,
    %cst_85 = arith.constant 0.000000e+00 : bf16
    %102 = vector.broadcast %cst_85 : bf16 to vector<16x128xbf16>
    %c0_86 = arith.constant 0 : index
    %c1152 = arith.constant 1152 : index
    %103 = vector.load %arg9[%c0_86, %c1152] : memref<16x1280xbf16, #tpu.memory_space<vmem>>, vector<16x128xbf16>
    tpu.vector_store %arg9[%c0_86, %c1152], %102 {strides = array<i32>} : memref<16x1280xbf16, #tpu.memory_space<vmem>>, vector<16x128xbf16>,
    %104 = arith.truncf %99 : vector<16x1024xf32> to vector<16x1024xbf16>
    %c0_87 = arith.constant 0 : index
    %c128_88 = arith.constant 128 : index
    %105 = vector.load %arg9[%c0_87, %c128_88] : memref<16x1280xbf16, #tpu.memory_space<vmem>>, vector<16x1024xbf16>
    tpu.vector_store %arg9[%c0_87, %c128_88], %104 {strides = array<i32>} : memref<16x1280xbf16, #tpu.memory_space<vmem>>, vector<16x1024xbf16>,
    %c0_89 = arith.constant 0 : index
    %c17_90 = arith.constant 17 : index
    %106 = vector.load %arg9[%c0_89, %c17_90] : memref<16x1280xbf16, #tpu.memory_space<vmem>>, vector<16x1024xbf16>
    %c0_91 = arith.constant 0 : index
    %c0_92 = arith.constant 0 : index
    %107 = vector.load %arg7[%c0_91, %c0_92] : memref<432x1024xbf16, #tpu.memory_space<vmem>>, vector<16x1024xbf16>
    tpu.vector_store %arg7[%c0_91, %c0_92], %106 {strides = array<i32>} : memref<432x1024xbf16, #tpu.memory_space<vmem>>, vector<16x1024xbf16>,
    %c0_93 = arith.constant 0 : index
    %c18_94 = arith.constant 18 : index
    %108 = vector.load %arg9[%c0_93, %c18_94] : memref<16x1280xbf16, #tpu.memory_space<vmem>>, vector<16x1024xbf16>
    %c16_95 = arith.constant 16 : index
    %c0_96 = arith.constant 0 : index
    %109 = vector.load %arg7[%c16_95, %c0_96] : memref<432x1024xbf16, #tpu.memory_space<vmem>>, vector<16x1024xbf16>
    tpu.vector_store %arg7[%c16_95, %c0_96], %108 {strides = array<i32>} : memref<432x1024xbf16, #tpu.memory_space<vmem>>, vector<16x1024xbf16>,
    %c0_97 = arith.constant 0 : index
    %c19_98 = arith.constant 19 : index
    %110 = vector.load %arg9[%c0_97, %c19_98] : memref<16x1280xbf16, #tpu.memory_space<vmem>>, vector<16x1024xbf16>
    %c32_99 = arith.constant 32 : index
    %c0_100 = arith.constant 0 : index
    %111 = vector.load %arg7[%c32_99, %c0_100] : memref<432x1024xbf16, #tpu.memory_space<vmem>>, vector<16x1024xbf16>
    tpu.vector_store %arg7[%c32_99, %c0_100], %110 {strides = array<i32>} : memref<432x1024xbf16, #tpu.memory_space<vmem>>, vector<16x1024xbf16>,
    %c0_101 = arith.constant 0 : index
    %c27_102 = arith.constant 27 : index
    %112 = vector.load %arg9[%c0_101, %c27_102] : memref<16x1280xbf16, #tpu.memory_space<vmem>>, vector<16x1024xbf16>
    %c48_103 = arith.constant 48 : index
    %c0_104 = arith.constant 0 : index
    %113 = vector.load %arg7[%c48_103, %c0_104] : memref<432x1024xbf16, #tpu.memory_space<vmem>>, vector<16x1024xbf16>
    tpu.vector_store %arg7[%c48_103, %c0_104], %112 {strides = array<i32>} : memref<432x1024xbf16, #tpu.memory_space<vmem>>, vector<16x1024xbf16>,
    %c0_105 = arith.constant 0 : index
    %c28_106 = arith.constant 28 : index
    %114 = vector.load %arg9[%c0_105, %c28_106] : memref<16x1280xbf16, #tpu.memory_space<vmem>>, vector<16x1024xbf16>
    %c64_107 = arith.constant 64 : index
    %c0_108 = arith.constant 0 : index
    %115 = vector.load %arg7[%c64_107, %c0_108] : memref<432x1024xbf16, #tpu.memory_space<vmem>>, vector<16x1024xbf16>
    tpu.vector_store %arg7[%c64_107, %c0_108], %114 {strides = array<i32>} : memref<432x1024xbf16, #tpu.memory_space<vmem>>, vector<16x1024xbf16>,
    %c0_109 = arith.constant 0 : index
    %c29_110 = arith.constant 29 : index
    %116 = vector.load %arg9[%c0_109, %c29_110] : memref<16x1280xbf16, #tpu.memory_space<vmem>>, vector<16x1024xbf16>
    %c80_111 = arith.constant 80 : index
    %c0_112 = arith.constant 0 : index
    %117 = vector.load %arg7[%c80_111, %c0_112] : memref<432x1024xbf16, #tpu.memory_space<vmem>>, vector<16x1024xbf16>
    tpu.vector_store %arg7[%c80_111, %c0_112], %116 {strides = array<i32>} : memref<432x1024xbf16, #tpu.memory_space<vmem>>, vector<16x1024xbf16>,
    %c0_113 = arith.constant 0 : index
    %c37_114 = arith.constant 37 : index
    %118 = vector.load %arg9[%c0_113, %c37_114] : memref<16x1280xbf16, #tpu.memory_space<vmem>>, vector<16x1024xbf16>
    %c96_115 = arith.constant 96 : index
    %c0_116 = arith.constant 0 : index
    %119 = vector.load %arg7[%c96_115, %c0_116] : memref<432x1024xbf16, #tpu.memory_space<vmem>>, vector<16x1024xbf16>
    tpu.vector_store %arg7[%c96_115, %c0_116], %118 {strides = array<i32>} : memref<432x1024xbf16, #tpu.memory_space<vmem>>, vector<16x1024xbf16>,
    %c0_117 = arith.constant 0 : index
    %c38_118 = arith.constant 38 : index
    %120 = vector.load %arg9[%c0_117, %c38_118] : memref<16x1280xbf16, #tpu.memory_space<vmem>>, vector<16x1024xbf16>
    %c112_119 = arith.constant 112 : index
    %c0_120 = arith.constant 0 : index
    %121 = vector.load %arg7[%c112_119, %c0_120] : memref<432x1024xbf16, #tpu.memory_space<vmem>>, vector<16x1024xbf16>
    tpu.vector_store %arg7[%c112_119, %c0_120], %120 {strides = array<i32>} : memref<432x1024xbf16, #tpu.memory_space<vmem>>, vector<16x1024xbf16>,
    %c0_121 = arith.constant 0 : index
    %c39_122 = arith.constant 39 : index
    %122 = vector.load %arg9[%c0_121, %c39_122] : memref<16x1280xbf16, #tpu.memory_space<vmem>>, vector<16x1024xbf16>
    %c128_123 = arith.constant 128 : index
    %c0_124 = arith.constant 0 : index
    %123 = vector.load %arg7[%c128_123, %c0_124] : memref<432x1024xbf16, #tpu.memory_space<vmem>>, vector<16x1024xbf16>
    tpu.vector_store %arg7[%c128_123, %c0_124], %122 {strides = array<i32>} : memref<432x1024xbf16, #tpu.memory_space<vmem>>, vector<16x1024xbf16>,
    %c0_125 = arith.constant 0 : index
    %c117_126 = arith.constant 117 : index
    %124 = vector.load %arg9[%c0_125, %c117_126] : memref<16x1280xbf16, #tpu.memory_space<vmem>>, vector<16x1024xbf16>
    %c144_127 = arith.constant 144 : index
    %c0_128 = arith.constant 0 : index
    %125 = vector.load %arg7[%c144_127, %c0_128] : memref<432x1024xbf16, #tpu.memory_space<vmem>>, vector<16x1024xbf16>
    tpu.vector_store %arg7[%c144_127, %c0_128], %124 {strides = array<i32>} : memref<432x1024xbf16, #tpu.memory_space<vmem>>, vector<16x1024xbf16>,
    %c0_129 = arith.constant 0 : index
    %c118_130 = arith.constant 118 : index
    %126 = vector.load %arg9[%c0_129, %c118_130] : memref<16x1280xbf16, #tpu.memory_space<vmem>>, vector<16x1024xbf16>
    %c160_131 = arith.constant 160 : index
    %c0_132 = arith.constant 0 : index
    %127 = vector.load %arg7[%c160_131, %c0_132] : memref<432x1024xbf16, #tpu.memory_space<vmem>>, vector<16x1024xbf16>
    tpu.vector_store %arg7[%c160_131, %c0_132], %126 {strides = array<i32>} : memref<432x1024xbf16, #tpu.memory_space<vmem>>, vector<16x1024xbf16>,
    %c0_133 = arith.constant 0 : index
    %c119_134 = arith.constant 119 : index
    %128 = vector.load %arg9[%c0_133, %c119_134] : memref<16x1280xbf16, #tpu.memory_space<vmem>>, vector<16x1024xbf16>
    %c176_135 = arith.constant 176 : index
    %c0_136 = arith.constant 0 : index
    %129 = vector.load %arg7[%c176_135, %c0_136] : memref<432x1024xbf16, #tpu.memory_space<vmem>>, vector<16x1024xbf16>
    tpu.vector_store %arg7[%c176_135, %c0_136], %128 {strides = array<i32>} : memref<432x1024xbf16, #tpu.memory_space<vmem>>, vector<16x1024xbf16>,
    %c0_137 = arith.constant 0 : index
    %c127_138 = arith.constant 127 : index
    %130 = vector.load %arg9[%c0_137, %c127_138] : memref<16x1280xbf16, #tpu.memory_space<vmem>>, vector<16x1024xbf16>
    %c192_139 = arith.constant 192 : index
    %c0_140 = arith.constant 0 : index
    %131 = vector.load %arg7[%c192_139, %c0_140] : memref<432x1024xbf16, #tpu.memory_space<vmem>>, vector<16x1024xbf16>
    tpu.vector_store %arg7[%c192_139, %c0_140], %130 {strides = array<i32>} : memref<432x1024xbf16, #tpu.memory_space<vmem>>, vector<16x1024xbf16>,
    %c0_141 = arith.constant 0 : index
    %c128_142 = arith.constant 128 : index
    %132 = vector.load %arg9[%c0_141, %c128_142] : memref<16x1280xbf16, #tpu.memory_space<vmem>>, vector<16x1024xbf16>
    %c208_143 = arith.constant 208 : index
    %c0_144 = arith.constant 0 : index
    %133 = vector.load %arg7[%c208_143, %c0_144] : memref<432x1024xbf16, #tpu.memory_space<vmem>>, vector<16x1024xbf16>
    tpu.vector_store %arg7[%c208_143, %c0_144], %132 {strides = array<i32>} : memref<432x1024xbf16, #tpu.memory_space<vmem>>, vector<16x1024xbf16>,
    %c0_145 = arith.constant 0 : index
    %c129_146 = arith.constant 129 : index
    %134 = vector.load %arg9[%c0_145, %c129_146] : memref<16x1280xbf16, #tpu.memory_space<vmem>>, vector<16x1024xbf16>
    %c224_147 = arith.constant 224 : index
    %c0_148 = arith.constant 0 : index
    %135 = vector.load %arg7[%c224_147, %c0_148] : memref<432x1024xbf16, #tpu.memory_space<vmem>>, vector<16x1024xbf16>
    tpu.vector_store %arg7[%c224_147, %c0_148], %134 {strides = array<i32>} : memref<432x1024xbf16, #tpu.memory_space<vmem>>, vector<16x1024xbf16>,
    %c0_149 = arith.constant 0 : index
    %c137_150 = arith.constant 137 : index
    %136 = vector.load %arg9[%c0_149, %c137_150] : memref<16x1280xbf16, #tpu.memory_space<vmem>>, vector<16x1024xbf16>
    %c240_151 = arith.constant 240 : index
    %c0_152 = arith.constant 0 : index
    %137 = vector.load %arg7[%c240_151, %c0_152] : memref<432x1024xbf16, #tpu.memory_space<vmem>>, vector<16x1024xbf16>
    tpu.vector_store %arg7[%c240_151, %c0_152], %136 {strides = array<i32>} : memref<432x1024xbf16, #tpu.memory_space<vmem>>, vector<16x1024xbf16>,
    %c0_153 = arith.constant 0 : index
    %c138_154 = arith.constant 138 : index
    %138 = vector.load %arg9[%c0_153, %c138_154] : memref<16x1280xbf16, #tpu.memory_space<vmem>>, vector<16x1024xbf16>
    %c256_155 = arith.constant 256 : index
    %c0_156 = arith.constant 0 : index
    %139 = vector.load %arg7[%c256_155, %c0_156] : memref<432x1024xbf16, #tpu.memory_space<vmem>>, vector<16x1024xbf16>
    tpu.vector_store %arg7[%c256_155, %c0_156], %138 {strides = array<i32>} : memref<432x1024xbf16, #tpu.memory_space<vmem>>, vector<16x1024xbf16>,
    %c0_157 = arith.constant 0 : index
    %c139_158 = arith.constant 139 : index
    %140 = vector.load %arg9[%c0_157, %c139_158] : memref<16x1280xbf16, #tpu.memory_space<vmem>>, vector<16x1024xbf16>
    %c272_159 = arith.constant 272 : index
    %c0_160 = arith.constant 0 : index
    %141 = vector.load %arg7[%c272_159, %c0_160] : memref<432x1024xbf16, #tpu.memory_space<vmem>>, vector<16x1024xbf16>
    tpu.vector_store %arg7[%c272_159, %c0_160], %140 {strides = array<i32>} : memref<432x1024xbf16, #tpu.memory_space<vmem>>, vector<16x1024xbf16>,
    %c0_161 = arith.constant 0 : index
    %c217_162 = arith.constant 217 : index
    %142 = vector.load %arg9[%c0_161, %c217_162] : memref<16x1280xbf16, #tpu.memory_space<vmem>>, vector<16x1024xbf16>
    %c288_163 = arith.constant 288 : index
    %c0_164 = arith.constant 0 : index
    %143 = vector.load %arg7[%c288_163, %c0_164] : memref<432x1024xbf16, #tpu.memory_space<vmem>>, vector<16x1024xbf16>
    tpu.vector_store %arg7[%c288_163, %c0_164], %142 {strides = array<i32>} : memref<432x1024xbf16, #tpu.memory_space<vmem>>, vector<16x1024xbf16>,
    %c0_165 = arith.constant 0 : index
    %c218_166 = arith.constant 218 : index
    %144 = vector.load %arg9[%c0_165, %c218_166] : memref<16x1280xbf16, #tpu.memory_space<vmem>>, vector<16x1024xbf16>
    %c304_167 = arith.constant 304 : index
    %c0_168 = arith.constant 0 : index
    %145 = vector.load %arg7[%c304_167, %c0_168] : memref<432x1024xbf16, #tpu.memory_space<vmem>>, vector<16x1024xbf16>
    tpu.vector_store %arg7[%c304_167, %c0_168], %144 {strides = array<i32>} : memref<432x1024xbf16, #tpu.memory_space<vmem>>, vector<16x1024xbf16>,
    %c0_169 = arith.constant 0 : index
    %c219_170 = arith.constant 219 : index
    %146 = vector.load %arg9[%c0_169, %c219_170] : memref<16x1280xbf16, #tpu.memory_space<vmem>>, vector<16x1024xbf16>
    %c320_171 = arith.constant 320 : index
    %c0_172 = arith.constant 0 : index
    %147 = vector.load %arg7[%c320_171, %c0_172] : memref<432x1024xbf16, #tpu.memory_space<vmem>>, vector<16x1024xbf16>
    tpu.vector_store %arg7[%c320_171, %c0_172], %146 {strides = array<i32>} : memref<432x1024xbf16, #tpu.memory_space<vmem>>, vector<16x1024xbf16>,
    %c0_173 = arith.constant 0 : index
    %c227_174 = arith.constant 227 : index
    %148 = vector.load %arg9[%c0_173, %c227_174] : memref<16x1280xbf16, #tpu.memory_space<vmem>>, vector<16x1024xbf16>
    %c336_175 = arith.constant 336 : index
    %c0_176 = arith.constant 0 : index
    %149 = vector.load %arg7[%c336_175, %c0_176] : memref<432x1024xbf16, #tpu.memory_space<vmem>>, vector<16x1024xbf16>
    tpu.vector_store %arg7[%c336_175, %c0_176], %148 {strides = array<i32>} : memref<432x1024xbf16, #tpu.memory_space<vmem>>, vector<16x1024xbf16>,
    %c0_177 = arith.constant 0 : index
    %c228_178 = arith.constant 228 : index
    %150 = vector.load %arg9[%c0_177, %c228_178] : memref<16x1280xbf16, #tpu.memory_space<vmem>>, vector<16x1024xbf16>
    %c352_179 = arith.constant 352 : index
    %c0_180 = arith.constant 0 : index
    %151 = vector.load %arg7[%c352_179, %c0_180] : memref<432x1024xbf16, #tpu.memory_space<vmem>>, vector<16x1024xbf16>
    tpu.vector_store %arg7[%c352_179, %c0_180], %150 {strides = array<i32>} : memref<432x1024xbf16, #tpu.memory_space<vmem>>, vector<16x1024xbf16>,
    %c0_181 = arith.constant 0 : index
    %c229_182 = arith.constant 229 : index
    %152 = vector.load %arg9[%c0_181, %c229_182] : memref<16x1280xbf16, #tpu.memory_space<vmem>>, vector<16x1024xbf16>
    %c368_183 = arith.constant 368 : index
    %c0_184 = arith.constant 0 : index
    %153 = vector.load %arg7[%c368_183, %c0_184] : memref<432x1024xbf16, #tpu.memory_space<vmem>>, vector<16x1024xbf16>
    tpu.vector_store %arg7[%c368_183, %c0_184], %152 {strides = array<i32>} : memref<432x1024xbf16, #tpu.memory_space<vmem>>, vector<16x1024xbf16>,
    %c0_185 = arith.constant 0 : index
    %c237_186 = arith.constant 237 : index
    %154 = vector.load %arg9[%c0_185, %c237_186] : memref<16x1280xbf16, #tpu.memory_space<vmem>>, vector<16x1024xbf16>
    %c384_187 = arith.constant 384 : index
    %c0_188 = arith.constant 0 : index
    %155 = vector.load %arg7[%c384_187, %c0_188] : memref<432x1024xbf16, #tpu.memory_space<vmem>>, vector<16x1024xbf16>
    tpu.vector_store %arg7[%c384_187, %c0_188], %154 {strides = array<i32>} : memref<432x1024xbf16, #tpu.memory_space<vmem>>, vector<16x1024xbf16>,
    %c0_189 = arith.constant 0 : index
    %c238_190 = arith.constant 238 : index
    %156 = vector.load %arg9[%c0_189, %c238_190] : memref<16x1280xbf16, #tpu.memory_space<vmem>>, vector<16x1024xbf16>
    %c400_191 = arith.constant 400 : index
    %c0_192 = arith.constant 0 : index
    %157 = vector.load %arg7[%c400_191, %c0_192] : memref<432x1024xbf16, #tpu.memory_space<vmem>>, vector<16x1024xbf16>
    tpu.vector_store %arg7[%c400_191, %c0_192], %156 {strides = array<i32>} : memref<432x1024xbf16, #tpu.memory_space<vmem>>, vector<16x1024xbf16>,
    %c0_193 = arith.constant 0 : index
    %c239_194 = arith.constant 239 : index
    %158 = vector.load %arg9[%c0_193, %c239_194] : memref<16x1280xbf16, #tpu.memory_space<vmem>>, vector<16x1024xbf16>
    %c416_195 = arith.constant 416 : index
    %c0_196 = arith.constant 0 : index
    %159 = vector.load %arg7[%c416_195, %c0_196] : memref<432x1024xbf16, #tpu.memory_space<vmem>>, vector<16x1024xbf16>
    tpu.vector_store %arg7[%c416_195, %c0_196], %158 {strides = array<i32>} : memref<432x1024xbf16, #tpu.memory_space<vmem>>, vector<16x1024xbf16>,
    %c0_197 = arith.constant 0 : index
    %c0_198 = arith.constant 0 : index
    %160 = vector.load %arg4[%c0_197, %c0_198] : memref<16x432xbf16, #tpu.memory_space<vmem>>, vector<16x432xbf16>
    %c0_199 = arith.constant 0 : index
    %c0_200 = arith.constant 0 : index
    %161 = vector.load %arg7[%c0_199, %c0_200] : memref<432x1024xbf16, #tpu.memory_space<vmem>>, vector<432x1024xbf16>
    %cst_201 = arith.constant dense<0.000000e+00> : vector<16x1024xf32>
    %162 = tpu.matmul %160, %161, %cst_201 {dimension_numbers = #tpu.dot_dimension_numbers<[1], [0], [0], [1], [0, 0, 1, 1], [], []>} : vector<16x432xbf16>, vector<432x1024xbf16>, vector<16x1024xf32> -> vector<16x1024xf32>
    %163 = vector.broadcast %0 : vector<1x1024xf32> to vector<16x1024xf32>
    %164 = arith.mulf %162, %163 : vector<16x1024xf32>
    %cst_202 = arith.constant dense<0.000000e+00> : vector<16xf32>
    %165 = vector.multi_reduction <add>, %164, %cst_202 [1] : vector<16x1024xf32> to vector<16xf32>
    %166 = vector.shape_cast %165 : vector<16xf32> to vector<16x1xf32>
    %cst_203 = arith.constant 0.001953125 : f32
    %167 = vector.broadcast %cst_203 : f32 to vector<16x1xf32>
    %168 = arith.mulf %166, %167 : vector<16x1xf32>
    %169 = arith.mulf %164, %162 : vector<16x1024xf32>
    %cst_204 = arith.constant dense<0.000000e+00> : vector<16xf32>
    %170 = vector.multi_reduction <add>, %169, %cst_204 [1] : vector<16x1024xf32> to vector<16xf32>
    %171 = vector.shape_cast %170 : vector<16xf32> to vector<16x1xf32>
    %cst_205 = arith.constant 0.001953125 : f32
    %172 = vector.broadcast %cst_205 : f32 to vector<16x1xf32>
    %173 = arith.mulf %171, %172 : vector<16x1xf32>
    %174 = arith.mulf %168, %168 : vector<16x1xf32>
    %175 = arith.subf %173, %174 : vector<16x1xf32>
    %c0_206 = arith.constant 0 : index
    %c2 = arith.constant 2 : index
    %176 = vector.load %arg5[%c0_206, %c2] : memref<16x4xf32, #tpu.memory_space<vmem>>, vector<16x1xf32>
    %cst_207 = arith.constant 0.000000e+00 : f32
    %177 = vector.broadcast %cst_207 : f32 to vector<16x1xf32>
    %178 = arith.maximumf %175, %177 : vector<16x1xf32>
    %cst_208 = arith.constant 9.99999974E-6 : f32
    %179 = vector.broadcast %cst_208 : f32 to vector<16x1xf32>
    %180 = arith.addf %178, %179 : vector<16x1xf32>
    %181 = math.rsqrt %180 : vector<16x1xf32>
    %182 = arith.mulf %176, %181 : vector<16x1xf32>
    %c0_209 = arith.constant 0 : index
    %c3 = arith.constant 3 : index
    %183 = vector.load %arg5[%c0_209, %c3] : memref<16x4xf32, #tpu.memory_space<vmem>>, vector<16x1xf32>
    %184 = arith.mulf %168, %182 : vector<16x1xf32>
    %185 = arith.subf %183, %184 : vector<16x1xf32>
    %186 = vector.broadcast %182 : vector<16x1xf32> to vector<16x1024xf32>
    %187 = arith.mulf %162, %186 : vector<16x1024xf32>
    %188 = vector.broadcast %185 : vector<16x1xf32> to vector<16x1024xf32>
    %189 = arith.addf %187, %188 : vector<16x1024xf32>
    %cst_210 = arith.constant 0.000000e+00 : f32
    %190 = vector.broadcast %cst_210 : f32 to vector<16x1024xf32>
    %191 = arith.cmpf ogt, %189, %190 : vector<16x1024xf32>
    %cst_211 = arith.constant 0.00999999977 : f32
    %192 = vector.broadcast %cst_211 : f32 to vector<16x1024xf32>
    %193 = arith.mulf %192, %189 : vector<16x1024xf32>
    %194 = arith.select %191, %189, %193 : vector<16x1024xi1>, vector<16x1024xf32>
    %c0_212 = arith.constant 0 : index
    %c0_213 = arith.constant 0 : index
    %c0_214 = arith.constant 0 : index
    %195 = vector.load %arg6[%c0_212, %c0_213, %c0_214] : memref<1x16x1024xf32, #tpu.memory_space<vmem>>, vector<1x16x1024xf32>
    %196 = vector.shape_cast %195 : vector<1x16x1024xf32> to vector<16x1024xf32>
    %197 = vector.shape_cast %194 : vector<16x1024xf32> to vector<1x16x1024xf32>
    tpu.vector_store %arg6[%c0_212, %c0_213, %c0_214], %197 {strides = array<i32>} : memref<1x16x1024xf32, #tpu.memory_space<vmem>>, vector<1x16x1024xf32>,
    return
  }
  func.func @transform_0(%arg0: i32) -> (i32, i32, i32) {
    %c0_i32 = arith.constant 0 : i32
    %c0_i32_0 = arith.constant 0 : i32
    %c0_i32_1 = arith.constant 0 : i32
    return %arg0, %c0_i32, %c0_i32_0 : i32, i32, i32
  }
  func.func @transform_1(%arg0: i32) -> (i32, i32) {
    %c0_i32 = arith.constant 0 : i32
    %c0_i32_0 = arith.constant 0 : i32
    %c0_i32_1 = arith.constant 0 : i32
    return %c0_i32, %c0_i32_0 : i32, i32
  }
  func.func @transform_2(%arg0: i32) -> (i32, i32) {
    %c0_i32 = arith.constant 0 : i32
    %c0_i32_0 = arith.constant 0 : i32
    %c0_i32_1 = arith.constant 0 : i32
    return %c0_i32, %c0_i32_0 : i32, i32
  }
  func.func @transform_3(%arg0: i32) -> (i32, i32) {
    %c0_i32 = arith.constant 0 : i32
    %c0_i32_0 = arith.constant 0 : i32
    %c0_i32_1 = arith.constant 0 : i32
    return %c0_i32, %c0_i32_0 : i32, i32
  }
  func.func @transform_4(%arg0: i32) -> (i32, i32) {
    %c0_i32 = arith.constant 0 : i32
    %c0_i32_0 = arith.constant 0 : i32
    %c0_i32_1 = arith.constant 0 : i32
    return %c0_i32, %c0_i32_0 : i32, i32
  }
  func.func @transform_5(%arg0: i32) -> (i32, i32, i32) {
    %c0_i32 = arith.constant 0 : i32
    %c0_i32_0 = arith.constant 0 : i32
    %c0_i32_1 = arith.constant 0 : i32
    return %arg0, %c0_i32, %c0_i32_0 : i32, i32, i32
  }
}

</mosaic_0001>

<llo_original>
// kernel: conv_block_3d.1
$region0: #{conv_block_3d.1}
  #allocation0 [shape = 'u32[]', space=smem, size = 0x4, offset = 0x4, fixed_abs, tag = 'smem constant byte address 0x4 - core index']
  #allocation1 [shape = 'u32[144,128]{1,0:T(1,128)}', space=vmem, size = 0x12000, scoped, tag = 'internal scratch']
  #allocation2 [shape = 'bf16[432,1024]{1,0:T(16,128)(2,1)}', space=vmem, size = 0xd8000, scoped, tag = 'scratch operand']
  #allocation3 [shape = 'bf16[16,1280]{1,0:T(16,128)(2,1)}', space=vmem, size = 0xa000, scoped, tag = 'scratch operand']
  #allocation4 [shape = 'bf16[16,1280]{1,0:T(16,128)(2,1)}', space=vmem, size = 0xa000, scoped, tag = 'scratch operand']
  %s0 = inlined_call_operand.vmem [shape: f32[2,16,1000], index: 0, kind: input, shape index: {}]
  %s1 = inlined_call_operand.vmem [shape: f32[1,1024], index: 1, kind: input, shape index: {}]
  %s2 = inlined_call_operand.vmem [shape: bf16[16,432], index: 2, kind: input, shape index: {}]
  %s3 = inlined_call_operand.vmem [shape: bf16[16,432], index: 3, kind: input, shape index: {}]
  %s4 = inlined_call_operand.vmem [shape: f32[16,4], index: 4, kind: input, shape index: {}]
  %s5 = inlined_call_operand.vmem [shape: f32[2,16,1024], index: 5, kind: output, shape index: {}]
  %s6 = sld [smem:[#allocation0]]
  $region53: #{conv_block_3d.1} parent=0
    _
  %s8 = ssub.s32 1, %s6
  %s9 = scalar_select 0, %s8, %s6
  loop: start=0, step=1, limit=4
  $region2: #{conv_block_3d.1} parent=0 // loop_pre_header
    _
  $region3: #{conv_block_3d.1} parent=0 // loop_header
    %s11 = sphi 0, %s15
    %p12 = scmp.ge.s32.totalorder %s11, 4
    %s21 = sphi 0, %s23
    %s24 = sphi 0, %s21
    %s25 = sphi 0, %s24
    %s41 = sphi 0, %s25
    %s45 = sphi 0, %s45
    %s47 = sphi 0, %s45
    %s48 = sphi 0, %s47
    %s62 = sphi 0, %s48
    %s66 = sphi 0, %s66
    %s68 = sphi 0, %s66
    %s69 = sphi 0, %s68
    %s83 = sphi 0, %s69
    %s87 = sphi 0, %s87
    %s89 = sphi 0, %s87
    %s90 = sphi 0, %s89
    %s104 = sphi 0, %s90
    %s108 = sphi 0, %s108
    %s110 = sphi 0, %s108
    %s111 = sphi 0, %s110
    %s125 = sphi 0, %s111
    %s131 = sphi 0, %s133
    %s134 = sphi 0, %s131
    %s135 = sphi 0, %s134
    %s151 = sphi 0, %s135
  $region4: #{conv_block_3d.1} parent=0 // loop_header_branch
    %14 = sbr.rel (%p12) target = $region8
  $region5: #{conv_block_3d.1} parent=0 // loop_body
    %s16 = ssub.s32 %s11, 1
    %s17 = ssub.s32 %s11, 2
    %s18 = sadd.s32 %s11, 1
    %s19 = ssub.s32 %s11, %s18
    %p20 = scmp.eq.s32.totalorder %s19, 0
    %s22 = sadd.s32 %s21, 1
    %s23 = scalar_select %p20, %s21, %s22
    %p26 = pneg %p20
    %p27 = scmp.eq.s32.totalorder %s11, 1
    %p28 = por %p26, %p27
    %p29 = scmp.ne.s32.totalorder %s21, %s24
    %p30 = scmp.eq.s32.totalorder %s11, 0
    %p31 = por %p29, %p30
    %p32 = scmp.ne.s32.totalorder %s21, %s24
    %p33 = scmp.eq.s32.totalorder %s16, 1
    %p34 = por %p32, %p33
    %p35 = scmp.ne.s32.totalorder %s24, %s25
    %p36 = scmp.eq.s32.totalorder %s16, 0
    %p37 = por %p35, %p36
    %p38 = scmp.ne.s32.totalorder %s24, %s25
    %p39 = scmp.eq.s32.totalorder %s17, 1
    %p40 = por %p38, %p39
    %p42 = scmp.ne.s32.totalorder %s25, %s41
    %p43 = scmp.eq.s32.totalorder %s17, 0
    %p44 = por %p42, %p43
    %s46 = sadd.s32 %s45, 1
    %p49 = scmp.eq.s32.totalorder %s11, 1
    %p50 = scmp.ne.s32.totalorder %s45, %s47
    %p51 = scmp.eq.s32.totalorder %s11, 0
    %p52 = por %p50, %p51
    %p53 = scmp.ne.s32.totalorder %s45, %s47
    %p54 = scmp.eq.s32.totalorder %s16, 1
    %p55 = por %p53, %p54
    %p56 = scmp.ne.s32.totalorder %s47, %s48
    %p57 = scmp.eq.s32.totalorder %s16, 0
    %p58 = por %p56, %p57
    %p59 = scmp.ne.s32.totalorder %s47, %s48
    %p60 = scmp.eq.s32.totalorder %s17, 1
    %p61 = por %p59, %p60
    %p63 = scmp.ne.s32.totalorder %s48, %s62
    %p64 = scmp.eq.s32.totalorder %s17, 0
    %p65 = por %p63, %p64
    %s67 = sadd.s32 %s66, 1
    %p70 = scmp.eq.s32.totalorder %s11, 1
    %p71 = scmp.ne.s32.totalorder %s66, %s68
    %p72 = scmp.eq.s32.totalorder %s11, 0
    %p73 = por %p71, %p72
    %p74 = scmp.ne.s32.totalorder %s66, %s68
    %p75 = scmp.eq.s32.totalorder %s16, 1
    %p76 = por %p74, %p75
    %p77 = scmp.ne.s32.totalorder %s68, %s69
    %p78 = scmp.eq.s32.totalorder %s16, 0
    %p79 = por %p77, %p78
    %p80 = scmp.ne.s32.totalorder %s68, %s69
    %p81 = scmp.eq.s32.totalorder %s17, 1
    %p82 = por %p80, %p81
    %p84 = scmp.ne.s32.totalorder %s69, %s83
    %p85 = scmp.eq.s32.totalorder %s17, 0
    %p86 = por %p84, %p85
    %s88 = sadd.s32 %s87, 1
    %p91 = scmp.eq.s32.totalorder %s11, 1
    %p92 = scmp.ne.s32.totalorder %s87, %s89
    %p93 = scmp.eq.s32.totalorder %s11, 0
    %p94 = por %p92, %p93
    %p95 = scmp.ne.s32.totalorder %s87, %s89
    %p96 = scmp.eq.s32.totalorder %s16, 1
    %p97 = por %p95, %p96
    %p98 = scmp.ne.s32.totalorder %s89, %s90
    %p99 = scmp.eq.s32.totalorder %s16, 0
    %p100 = por %p98, %p99
    %p101 = scmp.ne.s32.totalorder %s89, %s90
    %p102 = scmp.eq.s32.totalorder %s17, 1
    %p103 = por %p101, %p102
    %p105 = scmp.ne.s32.totalorder %s90, %s104
    %p106 = scmp.eq.s32.totalorder %s17, 0
    %p107 = por %p105, %p106
    %s109 = sadd.s32 %s108, 1
    %p112 = scmp.eq.s32.totalorder %s11, 1
    %p113 = scmp.ne.s32.totalorder %s108, %s110
    %p114 = scmp.eq.s32.totalorder %s11, 0
    %p115 = por %p113, %p114
    %p116 = scmp.ne.s32.totalorder %s108, %s110
    %p117 = scmp.eq.s32.totalorder %s16, 1
    %p118 = por %p116, %p117
    %p119 = scmp.ne.s32.totalorder %s110, %s111
    %p120 = scmp.eq.s32.totalorder %s16, 0
    %p121 = por %p119, %p120
    %p122 = scmp.ne.s32.totalorder %s110, %s111
    %p123 = scmp.eq.s32.totalorder %s17, 1
    %p124 = por %p122, %p123
    %p126 = scmp.ne.s32.totalorder %s111, %s125
    %p127 = scmp.eq.s32.totalorder %s17, 0
    %p128 = por %p126, %p127
    %s129 = ssub.s32 %s11, %s18
    %p130 = scmp.eq.s32.totalorder %s129, 0
    %s132 = sadd.s32 %s131, 1
    %s133 = scalar_select %p130, %s131, %s132
    %p136 = pneg %p130
    %p137 = scmp.eq.s32.totalorder %s11, 1
    %p138 = por %p136, %p137
    %p139 = scmp.ne.s32.totalorder %s131, %s134
    %p140 = scmp.eq.s32.totalorder %s11, 0
    %p141 = por %p139, %p140
    %p142 = scmp.ne.s32.totalorder %s131, %s134
    %p143 = scmp.eq.s32.totalorder %s16, 1
    %p144 = por %p142, %p143
    %p145 = scmp.ne.s32.totalorder %s134, %s135
    %p146 = scmp.eq.s32.totalorder %s16, 0
    %p147 = por %p145, %p146
    %p148 = scmp.ne.s32.totalorder %s134, %s135
    %p149 = scmp.eq.s32.totalorder %s17, 1
    %p150 = por %p148, %p149
    %p152 = scmp.ne.s32.totalorder %s135, %s151
    %p153 = scmp.eq.s32.totalorder %s17, 0
    %p154 = por %p152, %p153
    %p155 = scmp.le.s32.totalorder 1, %s11
    %p156 = scmp.lt.s32.totalorder %s11, 3
    %p157 = pnand %p155, %p156
    %p158 = pneg %p157
    // Predicated region
    $region9: #{conv_block_3d.1} parent=5 // pred_check
      _
    $region10: #{conv_block_3d.1} parent=5 // pred_check_branch
      %160 = sbr.rel (%p157) target = $region12
    $region11: #{conv_block_3d.1} parent=5 // pred_region
      %s161 = ssub.s32 %s11, 1
      // Predicated region
      $region13: #{conv_block_3d.1} parent=11 // pred_check
        %p162 = pneg %p58
      $region14: #{conv_block_3d.1} parent=11 // pred_check_branch
        %164 = sbr.rel (%p162) target = $region16
      $region15: #{conv_block_3d.1} parent=11 // pred_region
        _
      $region16: #{conv_block_3d.1} parent=11 // pred_fallthru
        _
      // Predicated region
      $region17: #{conv_block_3d.1} parent=11 // pred_check
        %p165 = pneg %p79
      $region18: #{conv_block_3d.1} parent=11 // pred_check_branch
        %167 = sbr.rel (%p165) target = $region20
      $region19: #{conv_block_3d.1} parent=11 // pred_region
        _
      $region20: #{conv_block_3d.1} parent=11 // pred_fallthru
        _
      // Predicated region
      $region21: #{conv_block_3d.1} parent=11 // pred_check
        %p168 = pneg %p100
      $region22: #{conv_block_3d.1} parent=11 // pred_check_branch
        %170 = sbr.rel (%p168) target = $region24
      $region23: #{conv_block_3d.1} parent=11 // pred_region
        _
      $region24: #{conv_block_3d.1} parent=11 // pred_fallthru
        _
      // Predicated region
      $region25: #{conv_block_3d.1} parent=11 // pred_check
        %p171 = pneg %p121
      $region26: #{conv_block_3d.1} parent=11 // pred_check_branch
        %173 = sbr.rel (%p171) target = $region28
      $region27: #{conv_block_3d.1} parent=11 // pred_region
        _
      $region28: #{conv_block_3d.1} parent=11 // pred_fallthru
        _
    $region12: #{conv_block_3d.1} parent=5 // pred_fallthru
      _
    %p174 = scmp.lt.s32.totalorder %s11, 2
    // Predicated region
    $region29: #{conv_block_3d.1} parent=5 // pred_check
      %p175 = pneg %p174
    $region30: #{conv_block_3d.1} parent=5 // pred_check_branch
      %177 = sbr.rel (%p175) target = $region32
    $region31: #{conv_block_3d.1} parent=5 // pred_region
      // Predicated region
      $region33: #{conv_block_3d.1} parent=31 // pred_check
        %p178 = pneg %p31
      $region34: #{conv_block_3d.1} parent=31 // pred_check_branch
        %180 = sbr.rel (%p178) target = $region36
      $region35: #{conv_block_3d.1} parent=31 // pred_region
        %p181 = scmp.lt.s32.totalorder %s11, 1
        %s182 = scalar_select %p181, %s11, 1
        %s183 = smul.addr %s182, 16
        %s184 = smul.addr %s183, 8
        %s185 = scalar_lea.vmem %s0, %s184
      $region36: #{conv_block_3d.1} parent=31 // pred_fallthru
        _
    $region32: #{conv_block_3d.1} parent=5 // pred_fallthru
      _
    %p186 = scmp.le.s32.totalorder 1, %s11
    %p187 = scmp.lt.s32.totalorder %s11, 3
    %p188 = pnand %p186, %p187
    %p189 = pneg %p188
    // Predicated region
    $region37: #{conv_block_3d.1} parent=5 // pred_check
      _
    $region38: #{conv_block_3d.1} parent=5 // pred_check_branch
      %191 = sbr.rel (%p188) target = $region40
    $region39: #{conv_block_3d.1} parent=5 // pred_region
      %s192 = ssub.s32 %s11, 1
      %p193 = scmp.lt.s32.totalorder %s16, 1
      %s194 = scalar_select %p193, %s16, 1
      %s195 = smul.addr %s194, 16
      %s196 = smul.addr %s195, 8
      %s197 = scalar_lea.vmem %s0, %s196
      %p198 = pneg %p37
      %p199 = pneg %p34
      %p200 = pneg %p58
      %p201 = pneg %p55
      %p202 = pneg %p79
      %p203 = pneg %p76
      %p204 = pneg %p100
      %p205 = pneg %p97
      %p206 = pneg %p121
      %p207 = pneg %p118
      %p208 = pneg %p147
      %p209 = pneg %p144
      %p210 = scmp.lt.s32.totalorder %s16, 1
      %s211 = scalar_select %p210, %s16, 1
      %s212 = smul.addr %s211, 16
      %s213 = smul.addr %s212, 8
      %s214 = scalar_lea.vmem %s5, %s213
      %p215 = scmp.lt.s32.totalorder %s16, 1
      %s216 = scalar_select %p215, %s16, 1
      %s217 = smul.addr %s216, 16
      %s218 = smul.addr %s217, 8
      %s219 = scalar_lea.vmem %s0, %s218
      %p220 = scmp.lt.s32.totalorder %s16, 1
      %s221 = scalar_select %p220, %s16, 1
      %s222 = smul.addr %s221, 16
      %s223 = smul.addr %s222, 8
      %s224 = scalar_lea.vmem %s5, %s223
      %v226 = vld [vmem:[%s1] sm:$0xff]
      %227 = vst [vmem:[#allocation3] sm:$0xff] 0
      %228 = vst [vmem:[#allocation3 + $0x40] sm:$0xff] 0
      %229 = vst [vmem:[#allocation3 + $0x48] sm:$0xff] 0
      %v230 = vld [vmem:[%s219] sm:$0xff]
      %v231 = vld [vmem:[%s219 + $0x8] sm:$0xff]
      %v232 = vld [vmem:[%s219 + $0x10] sm:$0xff]
      %v233 = vld [vmem:[%s219 + $0x18] sm:$0xff]
      %v234 = vld [vmem:[%s219 + $0x20] sm:$0xff]
      %v235 = vld [vmem:[%s219 + $0x28] sm:$0xff]
      %v236 = vld [vmem:[%s219 + $0x30] sm:$0xff]
      %v237 = vld [vmem:[%s219 + $0x38] sm:$0xff]
      %v238 = vld [vmem:[%s219 + $0x40] sm:$0xff]
      %v239 = vld [vmem:[%s219 + $0x48] sm:$0xff]
      %v240 = vld [vmem:[%s219 + $0x50] sm:$0xff]
      %v241 = vld [vmem:[%s219 + $0x58] sm:$0xff]
      %v242 = vld [vmem:[%s219 + $0x60] sm:$0xff]
      %v243 = vld [vmem:[%s219 + $0x68] sm:$0xff]
      %v244 = vld [vmem:[%s219 + $0x70] sm:$0xff]
      %v245 = vld [vmem:[%s219 + $0x78] sm:$0xff]
      %v246 = vpack.c.bf16 %v238, %v230
      %v247 = vpack.c.bf16 %v239, %v231
      %v248 = vpack.c.bf16 %v240, %v232
      %v249 = vpack.c.bf16 %v241, %v233
      %v250 = vpack.c.bf16 %v242, %v234
      %v251 = vpack.c.bf16 %v243, %v235
      %v252 = vpack.c.bf16 %v244, %v236
      %v253 = vpack.c.bf16 %v245, %v237
      %254 = vst [vmem:[#allocation3 + $0x8] sm:$0xff] %v246
      %255 = vst [vmem:[#allocation3 + $0x10] sm:$0xff] %v247
      %256 = vst [vmem:[#allocation3 + $0x18] sm:$0xff] %v248
      %257 = vst [vmem:[#allocation3 + $0x20] sm:$0xff] %v249
      %258 = vst [vmem:[#allocation3 + $0x28] sm:$0xff] %v250
      %259 = vst [vmem:[#allocation3 + $0x30] sm:$0xff] %v251
      %260 = vst [vmem:[#allocation3 + $0x38] sm:$0xff] %v252
      %vm261 = vcmask 850944
      %262 = vst.msk [vmem:[#allocation3 + $0x40] sm:$0xff] %vm261, %v253
      %v263 = vld [vmem:[#allocation3] sm:$0xff]
      %v264 = vld [vmem:[#allocation3 + $0x8] sm:$0xff]
      %v265 = vld [vmem:[#allocation3 + $0x10] sm:$0xff]
      %v266 = vld [vmem:[#allocation3 + $0x18] sm:$0xff]
      %v267 = vld [vmem:[#allocation3 + $0x20] sm:$0xff]
      %v268 = vld [vmem:[#allocation3 + $0x28] sm:$0xff]
      %v269 = vld [vmem:[#allocation3 + $0x30] sm:$0xff]
      %v270 = vld [vmem:[#allocation3 + $0x38] sm:$0xff]
      %v271 = vld [vmem:[#allocation3 + $0x40] sm:$0xff]
      %281 = vrot.lane.b32.xlu0 %v263, 111
      %v282 = vpop.permute.xlu0 %281
      %283 = vrot.lane.b32.xlu0 %v264, 111
      %v284 = vpop.permute.xlu0 %283
      %285 = vrot.lane.b32.xlu0 %v265, 111
      %v286 = vpop.permute.xlu0 %285
      %287 = vrot.lane.b32.xlu0 %v266, 111
      %v288 = vpop.permute.xlu0 %287
      %289 = vrot.lane.b32.xlu0 %v267, 111
      %v290 = vpop.permute.xlu0 %289
      %291 = vrot.lane.b32.xlu0 %v268, 111
      %v292 = vpop.permute.xlu0 %291
      %293 = vrot.lane.b32.xlu0 %v269, 111
      %v294 = vpop.permute.xlu0 %293
      %295 = vrot.lane.b32.xlu0 %v270, 111
      %v296 = vpop.permute.xlu0 %295
      %297 = vrot.lane.b32.xlu0 %v271, 111
      %v298 = vpop.permute.xlu0 %297
      %vm299 = vcmask 908288
      %v300 = vsel %vm299, %v282, %v284
      %v301 = vsel %vm299, %v284, %v286
      %v302 = vsel %vm299, %v286, %v288
      %v303 = vsel %vm299, %v288, %v290
      %v304 = vsel %vm299, %v290, %v292
      %v305 = vsel %vm299, %v292, %v294
      %v306 = vsel %vm299, %v294, %v296
      %v307 = vsel %vm299, %v296, %v298
      %316 = vst [vmem:[#allocation2] sm:$0xff] %v300
      %317 = vst [vmem:[#allocation2 + $0x8] sm:$0xff] %v301
      %318 = vst [vmem:[#allocation2 + $0x10] sm:$0xff] %v302
      %319 = vst [vmem:[#allocation2 + $0x18] sm:$0xff] %v303
      %320 = vst [vmem:[#allocation2 + $0x20] sm:$0xff] %v304
      %321 = vst [vmem:[#allocation2 + $0x28] sm:$0xff] %v305
      %322 = vst [vmem:[#allocation2 + $0x30] sm:$0xff] %v306
      %323 = vst [vmem:[#allocation2 + $0x38] sm:$0xff] %v307
      %v324 = vld [vmem:[#allocation3] sm:$0xff]
      %v325 = vld [vmem:[#allocation3 + $0x8] sm:$0xff]
      %v326 = vld [vmem:[#allocation3 + $0x10] sm:$0xff]
      %v327 = vld [vmem:[#allocation3 + $0x18] sm:$0xff]
      %v328 = vld [vmem:[#allocation3 + $0x20] sm:$0xff]
      %v329 = vld [vmem:[#allocation3 + $0x28] sm:$0xff]
      %v330 = vld [vmem:[#allocation3 + $0x30] sm:$0xff]
      %v331 = vld [vmem:[#allocation3 + $0x38] sm:$0xff]
      %v332 = vld [vmem:[#allocation3 + $0x40] sm:$0xff]
      %342 = vrot.lane.b32.xlu0 %v324, 110
      %v343 = vpop.permute.xlu0 %342
      %344 = vrot.lane.b32.xlu0 %v325, 110
      %v345 = vpop.permute.xlu0 %344
      %346 = vrot.lane.b32.xlu0 %v326, 110
      %v347 = vpop.permute.xlu0 %346
      %348 = vrot.lane.b32.xlu0 %v327, 110
      %v349 = vpop.permute.xlu0 %348
      %350 = vrot.lane.b32.xlu0 %v328, 110
      %v351 = vpop.permute.xlu0 %350
      %352 = vrot.lane.b32.xlu0 %v329, 110
      %v353 = vpop.permute.xlu0 %352
      %354 = vrot.lane.b32.xlu0 %v330, 110
      %v355 = vpop.permute.xlu0 %354
      %356 = vrot.lane.b32.xlu0 %v331, 110
      %v357 = vpop.permute.xlu0 %356
      %358 = vrot.lane.b32.xlu0 %v332, 110
      %v359 = vpop.permute.xlu0 %358
      %vm360 = vcmask 900096
      %v361 = vsel %vm360, %v343, %v345
      %v362 = vsel %vm360, %v345, %v347
      %v363 = vsel %vm360, %v347, %v349
      %v364 = vsel %vm360, %v349, %v351
      %v365 = vsel %vm360, %v351, %v353
      %v366 = vsel %vm360, %v353, %v355
      %v367 = vsel %vm360, %v355, %v357
      %v368 = vsel %vm360, %v357, %v359
      %377 = vst [vmem:[#allocation2 + $0x40] sm:$0xff] %v361
      %378 = vst [vmem:[#allocation2 + $0x48] sm:$0xff] %v362
      %379 = vst [vmem:[#allocation2 + $0x50] sm:$0xff] %v363
      %380 = vst [vmem:[#allocation2 + $0x58] sm:$0xff] %v364
      %381 = vst [vmem:[#allocation2 + $0x60] sm:$0xff] %v365
      %382 = vst [vmem:[#allocation2 + $0x68] sm:$0xff] %v366
      %383 = vst [vmem:[#allocation2 + $0x70] sm:$0xff] %v367
      %384 = vst [vmem:[#allocation2 + $0x78] sm:$0xff] %v368
      %v385 = vld [vmem:[#allocation3] sm:$0xff]
      %v386 = vld [vmem:[#allocation3 + $0x8] sm:$0xff]
      %v387 = vld [vmem:[#allocation3 + $0x10] sm:$0xff]
      %v388 = vld [vmem:[#allocation3 + $0x18] sm:$0xff]
      %v389 = vld [vmem:[#allocation3 + $0x20] sm:$0xff]
      %v390 = vld [vmem:[#allocation3 + $0x28] sm:$0xff]
      %v391 = vld [vmem:[#allocation3 + $0x30] sm:$0xff]
      %v392 = vld [vmem:[#allocation3 + $0x38] sm:$0xff]
      %v393 = vld [vmem:[#allocation3 + $0x40] sm:$0xff]
      %403 = vrot.lane.b32.xlu0 %v385, 109
      %v404 = vpop.permute.xlu0 %403
      %405 = vrot.lane.b32.xlu0 %v386, 109
      %v406 = vpop.permute.xlu0 %405
      %407 = vrot.lane.b32.xlu0 %v387, 109
      %v408 = vpop.permute.xlu0 %407
      %409 = vrot.lane.b32.xlu0 %v388, 109
      %v410 = vpop.permute.xlu0 %409
      %411 = vrot.lane.b32.xlu0 %v389, 109
      %v412 = vpop.permute.xlu0 %411
      %413 = vrot.lane.b32.xlu0 %v390, 109
      %v414 = vpop.permute.xlu0 %413
      %415 = vrot.lane.b32.xlu0 %v391, 109
      %v416 = vpop.permute.xlu0 %415
      %417 = vrot.lane.b32.xlu0 %v392, 109
      %v418 = vpop.permute.xlu0 %417
      %419 = vrot.lane.b32.xlu0 %v393, 109
      %v420 = vpop.permute.xlu0 %419
      %vm421 = vcmask 891904
      %v422 = vsel %vm421, %v404, %v406
      %v423 = vsel %vm421, %v406, %v408
      %v424 = vsel %vm421, %v408, %v410
      %v425 = vsel %vm421, %v410, %v412
      %v426 = vsel %vm421, %v412, %v414
      %v427 = vsel %vm421, %v414, %v416
      %v428 = vsel %vm421, %v416, %v418
      %v429 = vsel %vm421, %v418, %v420
      %438 = vst [vmem:[#allocation2 + $0x80] sm:$0xff] %v422
      %439 = vst [vmem:[#allocation2 + $0x88] sm:$0xff] %v423
      %440 = vst [vmem:[#allocation2 + $0x90] sm:$0xff] %v424
      %441 = vst [vmem:[#allocation2 + $0x98] sm:$0xff] %v425
      %442 = vst [vmem:[#allocation2 + $0xa0] sm:$0xff] %v426
      %443 = vst [vmem:[#allocation2 + $0xa8] sm:$0xff] %v427
      %444 = vst [vmem:[#allocation2 + $0xb0] sm:$0xff] %v428
      %445 = vst [vmem:[#allocation2 + $0xb8] sm:$0xff] %v429
      %v446 = vld [vmem:[#allocation3] sm:$0xff]
      %v447 = vld [vmem:[#allocation3 + $0x8] sm:$0xff]
      %v448 = vld [vmem:[#allocation3 + $0x10] sm:$0xff]
      %v449 = vld [vmem:[#allocation3 + $0x18] sm:$0xff]
      %v450 = vld [vmem:[#allocation3 + $0x20] sm:$0xff]
      %v451 = vld [vmem:[#allocation3 + $0x28] sm:$0xff]
      %v452 = vld [vmem:[#allocation3 + $0x30] sm:$0xff]
      %v453 = vld [vmem:[#allocation3 + $0x38] sm:$0xff]
      %v454 = vld [vmem:[#allocation3 + $0x40] sm:$0xff]
      %464 = vrot.lane.b32.xlu0 %v446, 101
      %v465 = vpop.permute.xlu0 %464
      %466 = vrot.lane.b32.xlu0 %v447, 101
      %v467 = vpop.permute.xlu0 %466
      %468 = vrot.lane.b32.xlu0 %v448, 101
      %v469 = vpop.permute.xlu0 %468
      %470 = vrot.lane.b32.xlu0 %v449, 101
      %v471 = vpop.permute.xlu0 %470
      %472 = vrot.lane.b32.xlu0 %v450, 101
      %v473 = vpop.permute.xlu0 %472
      %474 = vrot.lane.b32.xlu0 %v451, 101
      %v475 = vpop.permute.xlu0 %474
      %476 = vrot.lane.b32.xlu0 %v452, 101
      %v477 = vpop.permute.xlu0 %476
      %478 = vrot.lane.b32.xlu0 %v453, 101
      %v479 = vpop.permute.xlu0 %478
      %480 = vrot.lane.b32.xlu0 %v454, 101
      %v481 = vpop.permute.xlu0 %480
      %vm482 = vcmask 826368
      %v483 = vsel %vm482, %v465, %v467
      %v484 = vsel %vm482, %v467, %v469
      %v485 = vsel %vm482, %v469, %v471
      %v486 = vsel %vm482, %v471, %v473
      %v487 = vsel %vm482, %v473, %v475
      %v488 = vsel %vm482, %v475, %v477
      %v489 = vsel %vm482, %v477, %v479
      %v490 = vsel %vm482, %v479, %v481
      %499 = vst [vmem:[#allocation2 + $0xc0] sm:$0xff] %v483
      %500 = vst [vmem:[#allocation2 + $0xc8] sm:$0xff] %v484
      %501 = vst [vmem:[#allocation2 + $0xd0] sm:$0xff] %v485
      %502 = vst [vmem:[#allocation2 + $0xd8] sm:$0xff] %v486
      %503 = vst [vmem:[#allocation2 + $0xe0] sm:$0xff] %v487
      %504 = vst [vmem:[#allocation2 + $0xe8] sm:$0xff] %v488
      %505 = vst [vmem:[#allocation2 + $0xf0] sm:$0xff] %v489
      %506 = vst [vmem:[#allocation2 + $0xf8] sm:$0xff] %v490
      %v507 = vld [vmem:[#allocation3] sm:$0xff]
      %v508 = vld [vmem:[#allocation3 + $0x8] sm:$0xff]
      %v509 = vld [vmem:[#allocation3 + $0x10] sm:$0xff]
      %v510 = vld [vmem:[#allocation3 + $0x18] sm:$0xff]
      %v511 = vld [vmem:[#allocation3 + $0x20] sm:$0xff]
      %v512 = vld [vmem:[#allocation3 + $0x28] sm:$0xff]
      %v513 = vld [vmem:[#allocation3 + $0x30] sm:$0xff]
      %v514 = vld [vmem:[#allocation3 + $0x38] sm:$0xff]
      %v515 = vld [vmem:[#allocation3 + $0x40] sm:$0xff]
      %525 = vrot.lane.b32.xlu0 %v507, 100
      %v526 = vpop.permute.xlu0 %525
      %527 = vrot.lane.b32.xlu0 %v508, 100
      %v528 = vpop.permute.xlu0 %527
      %529 = vrot.lane.b32.xlu0 %v509, 100
      %v530 = vpop.permute.xlu0 %529
      %531 = vrot.lane.b32.xlu0 %v510, 100
      %v532 = vpop.permute.xlu0 %531
      %533 = vrot.lane.b32.xlu0 %v511, 100
      %v534 = vpop.permute.xlu0 %533
      %535 = vrot.lane.b32.xlu0 %v512, 100
      %v536 = vpop.permute.xlu0 %535
      %537 = vrot.lane.b32.xlu0 %v513, 100
      %v538 = vpop.permute.xlu0 %537
      %539 = vrot.lane.b32.xlu0 %v514, 100
      %v540 = vpop.permute.xlu0 %539
      %541 = vrot.lane.b32.xlu0 %v515, 100
      %v542 = vpop.permute.xlu0 %541
      %vm543 = vcmask 818176
      %v544 = vsel %vm543, %v526, %v528
      %v545 = vsel %vm543, %v528, %v530
      %v546 = vsel %vm543, %v530, %v532
      %v547 = vsel %vm543, %v532, %v534
      %v548 = vsel %vm543, %v534, %v536
      %v549 = vsel %vm543, %v536, %v538
      %v550 = vsel %vm543, %v538, %v540
      %v551 = vsel %vm543, %v540, %v542
      %560 = vst [vmem:[#allocation2 + $0x100] sm:$0xff] %v544
      %561 = vst [vmem:[#allocation2 + $0x108] sm:$0xff] %v545
      %562 = vst [vmem:[#allocation2 + $0x110] sm:$0xff] %v546
      %563 = vst [vmem:[#allocation2 + $0x118] sm:$0xff] %v547
      %564 = vst [vmem:[#allocation2 + $0x120] sm:$0xff] %v548
      %565 = vst [vmem:[#allocation2 + $0x128] sm:$0xff] %v549
      %566 = vst [vmem:[#allocation2 + $0x130] sm:$0xff] %v550
      %567 = vst [vmem:[#allocation2 + $0x138] sm:$0xff] %v551
      %v568 = vld [vmem:[#allocation3] sm:$0xff]
      %v569 = vld [vmem:[#allocation3 + $0x8] sm:$0xff]
      %v570 = vld [vmem:[#allocation3 + $0x10] sm:$0xff]
      %v571 = vld [vmem:[#allocation3 + $0x18] sm:$0xff]
      %v572 = vld [vmem:[#allocation3 + $0x20] sm:$0xff]
      %v573 = vld [vmem:[#allocation3 + $0x28] sm:$0xff]
      %v574 = vld [vmem:[#allocation3 + $0x30] sm:$0xff]
      %v575 = vld [vmem:[#allocation3 + $0x38] sm:$0xff]
      %v576 = vld [vmem:[#allocation3 + $0x40] sm:$0xff]
      %586 = vrot.lane.b32.xlu0 %v568, 99
      %v587 = vpop.permute.xlu0 %586
      %588 = vrot.lane.b32.xlu0 %v569, 99
      %v589 = vpop.permute.xlu0 %588
      %590 = vrot.lane.b32.xlu0 %v570, 99
      %v591 = vpop.permute.xlu0 %590
      %592 = vrot.lane.b32.xlu0 %v571, 99
      %v593 = vpop.permute.xlu0 %592
      %594 = vrot.lane.b32.xlu0 %v572, 99
      %v595 = vpop.permute.xlu0 %594
      %596 = vrot.lane.b32.xlu0 %v573, 99
      %v597 = vpop.permute.xlu0 %596
      %598 = vrot.lane.b32.xlu0 %v574, 99
      %v599 = vpop.permute.xlu0 %598
      %600 = vrot.lane.b32.xlu0 %v575, 99
      %v601 = vpop.permute.xlu0 %600
      %602 = vrot.lane.b32.xlu0 %v576, 99
      %v603 = vpop.permute.xlu0 %602
      %vm604 = vcmask 809984
      %v605 = vsel %vm604, %v587, %v589
      %v606 = vsel %vm604, %v589, %v591
      %v607 = vsel %vm604, %v591, %v593
      %v608 = vsel %vm604, %v593, %v595
      %v609 = vsel %vm604, %v595, %v597
      %v610 = vsel %vm604, %v597, %v599
      %v611 = vsel %vm604, %v599, %v601
      %v612 = vsel %vm604, %v601, %v603
      %621 = vst [vmem:[#allocation2 + $0x140] sm:$0xff] %v605
      %622 = vst [vmem:[#allocation2 + $0x148] sm:$0xff] %v606
      %623 = vst [vmem:[#allocation2 + $0x150] sm:$0xff] %v607
      %624 = vst [vmem:[#allocation2 + $0x158] sm:$0xff] %v608
      %625 = vst [vmem:[#allocation2 + $0x160] sm:$0xff] %v609
      %626 = vst [vmem:[#allocation2 + $0x168] sm:$0xff] %v610
      %627 = vst [vmem:[#allocation2 + $0x170] sm:$0xff] %v611
      %628 = vst [vmem:[#allocation2 + $0x178] sm:$0xff] %v612
      %v629 = vld [vmem:[#allocation3] sm:$0xff]
      %v630 = vld [vmem:[#allocation3 + $0x8] sm:$0xff]
      %v631 = vld [vmem:[#allocation3 + $0x10] sm:$0xff]
      %v632 = vld [vmem:[#allocation3 + $0x18] sm:$0xff]
      %v633 = vld [vmem:[#allocation3 + $0x20] sm:$0xff]
      %v634 = vld [vmem:[#allocation3 + $0x28] sm:$0xff]
      %v635 = vld [vmem:[#allocation3 + $0x30] sm:$0xff]
      %v636 = vld [vmem:[#allocation3 + $0x38] sm:$0xff]
      %v637 = vld [vmem:[#allocation3 + $0x40] sm:$0xff]
      %647 = vrot.lane.b32.xlu0 %v629, 91
      %v648 = vpop.permute.xlu0 %647
      %649 = vrot.lane.b32.xlu0 %v630, 91
      %v650 = vpop.permute.xlu0 %649
      %651 = vrot.lane.b32.xlu0 %v631, 91
      %v652 = vpop.permute.xlu0 %651
      %653 = vrot.lane.b32.xlu0 %v632, 91
      %v654 = vpop.permute.xlu0 %653
      %655 = vrot.lane.b32.xlu0 %v633, 91
      %v656 = vpop.permute.xlu0 %655
      %657 = vrot.lane.b32.xlu0 %v634, 91
      %v658 = vpop.permute.xlu0 %657
      %659 = vrot.lane.b32.xlu0 %v635, 91
      %v660 = vpop.permute.xlu0 %659
      %661 = vrot.lane.b32.xlu0 %v636, 91
      %v662 = vpop.permute.xlu0 %661
      %663 = vrot.lane.b32.xlu0 %v637, 91
      %v664 = vpop.permute.xlu0 %663
      %vm665 = vcmask 744448
      %v666 = vsel %vm665, %v648, %v650
      %v667 = vsel %vm665, %v650, %v652
      %v668 = vsel %vm665, %v652, %v654
      %v669 = vsel %vm665, %v654, %v656
      %v670 = vsel %vm665, %v656, %v658
      %v671 = vsel %vm665, %v658, %v660
      %v672 = vsel %vm665, %v660, %v662
      %v673 = vsel %vm665, %v662, %v664
      %682 = vst [vmem:[#allocation2 + $0x180] sm:$0xff] %v666
      %683 = vst [vmem:[#allocation2 + $0x188] sm:$0xff] %v667
      %684 = vst [vmem:[#allocation2 + $0x190] sm:$0xff] %v668
      %685 = vst [vmem:[#allocation2 + $0x198] sm:$0xff] %v669
      %686 = vst [vmem:[#allocation2 + $0x1a0] sm:$0xff] %v670
      %687 = vst [vmem:[#allocation2 + $0x1a8] sm:$0xff] %v671
      %688 = vst [vmem:[#allocation2 + $0x1b0] sm:$0xff] %v672
      %689 = vst [vmem:[#allocation2 + $0x1b8] sm:$0xff] %v673
      %v690 = vld [vmem:[#allocation3] sm:$0xff]
      %v691 = vld [vmem:[#allocation3 + $0x8] sm:$0xff]
      %v692 = vld [vmem:[#allocation3 + $0x10] sm:$0xff]
      %v693 = vld [vmem:[#allocation3 + $0x18] sm:$0xff]
      %v694 = vld [vmem:[#allocation3 + $0x20] sm:$0xff]
      %v695 = vld [vmem:[#allocation3 + $0x28] sm:$0xff]
      %v696 = vld [vmem:[#allocation3 + $0x30] sm:$0xff]
      %v697 = vld [vmem:[#allocation3 + $0x38] sm:$0xff]
      %v698 = vld [vmem:[#allocation3 + $0x40] sm:$0xff]
      %708 = vrot.lane.b32.xlu0 %v690, 90
      %v709 = vpop.permute.xlu0 %708
      %710 = vrot.lane.b32.xlu0 %v691, 90
      %v711 = vpop.permute.xlu0 %710
      %712 = vrot.lane.b32.xlu0 %v692, 90
      %v713 = vpop.permute.xlu0 %712
      %714 = vrot.lane.b32.xlu0 %v693, 90
      %v715 = vpop.permute.xlu0 %714
      %716 = vrot.lane.b32.xlu0 %v694, 90
      %v717 = vpop.permute.xlu0 %716
      %718 = vrot.lane.b32.xlu0 %v695, 90
      %v719 = vpop.permute.xlu0 %718
      %720 = vrot.lane.b32.xlu0 %v696, 90
      %v721 = vpop.permute.xlu0 %720
      %722 = vrot.lane.b32.xlu0 %v697, 90
      %v723 = vpop.permute.xlu0 %722
      %724 = vrot.lane.b32.xlu0 %v698, 90
      %v725 = vpop.permute.xlu0 %724
      %vm726 = vcmask 736256
      %v727 = vsel %vm726, %v709, %v711
      %v728 = vsel %vm726, %v711, %v713
      %v729 = vsel %vm726, %v713, %v715
      %v730 = vsel %vm726, %v715, %v717
      %v731 = vsel %vm726, %v717, %v719
      %v732 = vsel %vm726, %v719, %v721
      %v733 = vsel %vm726, %v721, %v723
      %v734 = vsel %vm726, %v723, %v725
      %743 = vst [vmem:[#allocation2 + $0x1c0] sm:$0xff] %v727
      %744 = vst [vmem:[#allocation2 + $0x1c8] sm:$0xff] %v728
      %745 = vst [vmem:[#allocation2 + $0x1d0] sm:$0xff] %v729
      %746 = vst [vmem:[#allocation2 + $0x1d8] sm:$0xff] %v730
      %747 = vst [vmem:[#allocation2 + $0x1e0] sm:$0xff] %v731
      %748 = vst [vmem:[#allocation2 + $0x1e8] sm:$0xff] %v732
      %749 = vst [vmem:[#allocation2 + $0x1f0] sm:$0xff] %v733
      %750 = vst [vmem:[#allocation2 + $0x1f8] sm:$0xff] %v734
      %v751 = vld [vmem:[#allocation3] sm:$0xff]
      %v752 = vld [vmem:[#allocation3 + $0x8] sm:$0xff]
      %v753 = vld [vmem:[#allocation3 + $0x10] sm:$0xff]
      %v754 = vld [vmem:[#allocation3 + $0x18] sm:$0xff]
      %v755 = vld [vmem:[#allocation3 + $0x20] sm:$0xff]
      %v756 = vld [vmem:[#allocation3 + $0x28] sm:$0xff]
      %v757 = vld [vmem:[#allocation3 + $0x30] sm:$0xff]
      %v758 = vld [vmem:[#allocation3 + $0x38] sm:$0xff]
      %v759 = vld [vmem:[#allocation3 + $0x40] sm:$0xff]
      %769 = vrot.lane.b32.xlu0 %v751, 89
      %v770 = vpop.permute.xlu0 %769
      %771 = vrot.lane.b32.xlu0 %v752, 89
      %v772 = vpop.permute.xlu0 %771
      %773 = vrot.lane.b32.xlu0 %v753, 89
      %v774 = vpop.permute.xlu0 %773
      %775 = vrot.lane.b32.xlu0 %v754, 89
      %v776 = vpop.permute.xlu0 %775
      %777 = vrot.lane.b32.xlu0 %v755, 89
      %v778 = vpop.permute.xlu0 %777
      %779 = vrot.lane.b32.xlu0 %v756, 89
      %v780 = vpop.permute.xlu0 %779
      %781 = vrot.lane.b32.xlu0 %v757, 89
      %v782 = vpop.permute.xlu0 %781
      %783 = vrot.lane.b32.xlu0 %v758, 89
      %v784 = vpop.permute.xlu0 %783
      %785 = vrot.lane.b32.xlu0 %v759, 89
      %v786 = vpop.permute.xlu0 %785
      %vm787 = vcmask 728064
      %v788 = vsel %vm787, %v770, %v772
      %v789 = vsel %vm787, %v772, %v774
      %v790 = vsel %vm787, %v774, %v776
      %v791 = vsel %vm787, %v776, %v778
      %v792 = vsel %vm787, %v778, %v780
      %v793 = vsel %vm787, %v780, %v782
      %v794 = vsel %vm787, %v782, %v784
      %v795 = vsel %vm787, %v784, %v786
      %804 = vst [vmem:[#allocation2 + $0x200] sm:$0xff] %v788
      %805 = vst [vmem:[#allocation2 + $0x208] sm:$0xff] %v789
      %806 = vst [vmem:[#allocation2 + $0x210] sm:$0xff] %v790
      %807 = vst [vmem:[#allocation2 + $0x218] sm:$0xff] %v791
      %808 = vst [vmem:[#allocation2 + $0x220] sm:$0xff] %v792
      %809 = vst [vmem:[#allocation2 + $0x228] sm:$0xff] %v793
      %810 = vst [vmem:[#allocation2 + $0x230] sm:$0xff] %v794
      %811 = vst [vmem:[#allocation2 + $0x238] sm:$0xff] %v795
      %v812 = vld [vmem:[#allocation3] sm:$0xff]
      %v813 = vld [vmem:[#allocation3 + $0x8] sm:$0xff]
      %v814 = vld [vmem:[#allocation3 + $0x10] sm:$0xff]
      %v815 = vld [vmem:[#allocation3 + $0x18] sm:$0xff]
      %v816 = vld [vmem:[#allocation3 + $0x20] sm:$0xff]
      %v817 = vld [vmem:[#allocation3 + $0x28] sm:$0xff]
      %v818 = vld [vmem:[#allocation3 + $0x30] sm:$0xff]
      %v819 = vld [vmem:[#allocation3 + $0x38] sm:$0xff]
      %v820 = vld [vmem:[#allocation3 + $0x40] sm:$0xff]
      %830 = vrot.lane.b32.xlu0 %v812, 11
      %v831 = vpop.permute.xlu0 %830
      %832 = vrot.lane.b32.xlu0 %v813, 11
      %v833 = vpop.permute.xlu0 %832
      %834 = vrot.lane.b32.xlu0 %v814, 11
      %v835 = vpop.permute.xlu0 %834
      %836 = vrot.lane.b32.xlu0 %v815, 11
      %v837 = vpop.permute.xlu0 %836
      %838 = vrot.lane.b32.xlu0 %v816, 11
      %v839 = vpop.permute.xlu0 %838
      %840 = vrot.lane.b32.xlu0 %v817, 11
      %v841 = vpop.permute.xlu0 %840
      %842 = vrot.lane.b32.xlu0 %v818, 11
      %v843 = vpop.permute.xlu0 %842
      %844 = vrot.lane.b32.xlu0 %v819, 11
      %v845 = vpop.permute.xlu0 %844
      %846 = vrot.lane.b32.xlu0 %v820, 11
      %v847 = vpop.permute.xlu0 %846
      %vm848 = vcmask 89088
      %v849 = vsel %vm848, %v831, %v833
      %v850 = vsel %vm848, %v833, %v835
      %v851 = vsel %vm848, %v835, %v837
      %v852 = vsel %vm848, %v837, %v839
      %v853 = vsel %vm848, %v839, %v841
      %v854 = vsel %vm848, %v841, %v843
      %v855 = vsel %vm848, %v843, %v845
      %v856 = vsel %vm848, %v845, %v847
      %865 = vst [vmem:[#allocation2 + $0x240] sm:$0xff] %v849
      %866 = vst [vmem:[#allocation2 + $0x248] sm:$0xff] %v850
      %867 = vst [vmem:[#allocation2 + $0x250] sm:$0xff] %v851
      %868 = vst [vmem:[#allocation2 + $0x258] sm:$0xff] %v852
      %869 = vst [vmem:[#allocation2 + $0x260] sm:$0xff] %v853
      %870 = vst [vmem:[#allocation2 + $0x268] sm:$0xff] %v854
      %871 = vst [vmem:[#allocation2 + $0x270] sm:$0xff] %v855
      %872 = vst [vmem:[#allocation2 + $0x278] sm:$0xff] %v856
      %v873 = vld [vmem:[#allocation3] sm:$0xff]
      %v874 = vld [vmem:[#allocation3 + $0x8] sm:$0xff]
      %v875 = vld [vmem:[#allocation3 + $0x10] sm:$0xff]
      %v876 = vld [vmem:[#allocation3 + $0x18] sm:$0xff]
      %v877 = vld [vmem:[#allocation3 + $0x20] sm:$0xff]
      %v878 = vld [vmem:[#allocation3 + $0x28] sm:$0xff]
      %v879 = vld [vmem:[#allocation3 + $0x30] sm:$0xff]
      %v880 = vld [vmem:[#allocation3 + $0x38] sm:$0xff]
      %v881 = vld [vmem:[#allocation3 + $0x40] sm:$0xff]
      %891 = vrot.lane.b32.xlu0 %v873, 10
      %v892 = vpop.permute.xlu0 %891
      %893 = vrot.lane.b32.xlu0 %v874, 10
      %v894 = vpop.permute.xlu0 %893
      %895 = vrot.lane.b32.xlu0 %v875, 10
      %v896 = vpop.permute.xlu0 %895
      %897 = vrot.lane.b32.xlu0 %v876, 10
      %v898 = vpop.permute.xlu0 %897
      %899 = vrot.lane.b32.xlu0 %v877, 10
      %v900 = vpop.permute.xlu0 %899
      %901 = vrot.lane.b32.xlu0 %v878, 10
      %v902 = vpop.permute.xlu0 %901
      %903 = vrot.lane.b32.xlu0 %v879, 10
      %v904 = vpop.permute.xlu0 %903
      %905 = vrot.lane.b32.xlu0 %v880, 10
      %v906 = vpop.permute.xlu0 %905
      %907 = vrot.lane.b32.xlu0 %v881, 10
      %v908 = vpop.permute.xlu0 %907
      %vm909 = vcmask 80896
      %v910 = vsel %vm909, %v892, %v894
      %v911 = vsel %vm909, %v894, %v896
      %v912 = vsel %vm909, %v896, %v898
      %v913 = vsel %vm909, %v898, %v900
      %v914 = vsel %vm909, %v900, %v902
      %v915 = vsel %vm909, %v902, %v904
      %v916 = vsel %vm909, %v904, %v906
      %v917 = vsel %vm909, %v906, %v908
      %926 = vst [vmem:[#allocation2 + $0x280] sm:$0xff] %v910
      %927 = vst [vmem:[#allocation2 + $0x288] sm:$0xff] %v911
      %928 = vst [vmem:[#allocation2 + $0x290] sm:$0xff] %v912
      %929 = vst [vmem:[#allocation2 + $0x298] sm:$0xff] %v913
      %930 = vst [vmem:[#allocation2 + $0x2a0] sm:$0xff] %v914
      %931 = vst [vmem:[#allocation2 + $0x2a8] sm:$0xff] %v915
      %932 = vst [vmem:[#allocation2 + $0x2b0] sm:$0xff] %v916
      %933 = vst [vmem:[#allocation2 + $0x2b8] sm:$0xff] %v917
      %v934 = vld [vmem:[#allocation3] sm:$0xff]
      %v935 = vld [vmem:[#allocation3 + $0x8] sm:$0xff]
      %v936 = vld [vmem:[#allocation3 + $0x10] sm:$0xff]
      %v937 = vld [vmem:[#allocation3 + $0x18] sm:$0xff]
      %v938 = vld [vmem:[#allocation3 + $0x20] sm:$0xff]
      %v939 = vld [vmem:[#allocation3 + $0x28] sm:$0xff]
      %v940 = vld [vmem:[#allocation3 + $0x30] sm:$0xff]
      %v941 = vld [vmem:[#allocation3 + $0x38] sm:$0xff]
      %v942 = vld [vmem:[#allocation3 + $0x40] sm:$0xff]
      %952 = vrot.lane.b32.xlu0 %v934, 9
      %v953 = vpop.permute.xlu0 %952
      %954 = vrot.lane.b32.xlu0 %v935, 9
      %v955 = vpop.permute.xlu0 %954
      %956 = vrot.lane.b32.xlu0 %v936, 9
      %v957 = vpop.permute.xlu0 %956
      %958 = vrot.lane.b32.xlu0 %v937, 9
      %v959 = vpop.permute.xlu0 %958
      %960 = vrot.lane.b32.xlu0 %v938, 9
      %v961 = vpop.permute.xlu0 %960
      %962 = vrot.lane.b32.xlu0 %v939, 9
      %v963 = vpop.permute.xlu0 %962
      %964 = vrot.lane.b32.xlu0 %v940, 9
      %v965 = vpop.permute.xlu0 %964
      %966 = vrot.lane.b32.xlu0 %v941, 9
      %v967 = vpop.permute.xlu0 %966
      %968 = vrot.lane.b32.xlu0 %v942, 9
      %v969 = vpop.permute.xlu0 %968
      %vm970 = vcmask 72704
      %v971 = vsel %vm970, %v953, %v955
      %v972 = vsel %vm970, %v955, %v957
      %v973 = vsel %vm970, %v957, %v959
      %v974 = vsel %vm970, %v959, %v961
      %v975 = vsel %vm970, %v961, %v963
      %v976 = vsel %vm970, %v963, %v965
      %v977 = vsel %vm970, %v965, %v967
      %v978 = vsel %vm970, %v967, %v969
      %987 = vst [vmem:[#allocation2 + $0x2c0] sm:$0xff] %v971
      %988 = vst [vmem:[#allocation2 + $0x2c8] sm:$0xff] %v972
      %989 = vst [vmem:[#allocation2 + $0x2d0] sm:$0xff] %v973
      %990 = vst [vmem:[#allocation2 + $0x2d8] sm:$0xff] %v974
      %991 = vst [vmem:[#allocation2 + $0x2e0] sm:$0xff] %v975
      %992 = vst [vmem:[#allocation2 + $0x2e8] sm:$0xff] %v976
      %993 = vst [vmem:[#allocation2 + $0x2f0] sm:$0xff] %v977
      %994 = vst [vmem:[#allocation2 + $0x2f8] sm:$0xff] %v978
      %v995 = vld [vmem:[#allocation3] sm:$0xff]
      %v996 = vld [vmem:[#allocation3 + $0x8] sm:$0xff]
      %v997 = vld [vmem:[#allocation3 + $0x10] sm:$0xff]
      %v998 = vld [vmem:[#allocation3 + $0x18] sm:$0xff]
      %v999 = vld [vmem:[#allocation3 + $0x20] sm:$0xff]
      %v1000 = vld [vmem:[#allocation3 + $0x28] sm:$0xff]
      %v1001 = vld [vmem:[#allocation3 + $0x30] sm:$0xff]
      %v1002 = vld [vmem:[#allocation3 + $0x38] sm:$0xff]
      %v1003 = vld [vmem:[#allocation3 + $0x40] sm:$0xff]
      %1013 = vrot.lane.b32.xlu0 %v995, 1
      %v1014 = vpop.permute.xlu0 %1013
      %1015 = vrot.lane.b32.xlu0 %v996, 1
      %v1016 = vpop.permute.xlu0 %1015
      %1017 = vrot.lane.b32.xlu0 %v997, 1
      %v1018 = vpop.permute.xlu0 %1017
      %1019 = vrot.lane.b32.xlu0 %v998, 1
      %v1020 = vpop.permute.xlu0 %1019
      %1021 = vrot.lane.b32.xlu0 %v999, 1
      %v1022 = vpop.permute.xlu0 %1021
      %1023 = vrot.lane.b32.xlu0 %v1000, 1
      %v1024 = vpop.permute.xlu0 %1023
      %1025 = vrot.lane.b32.xlu0 %v1001, 1
      %v1026 = vpop.permute.xlu0 %1025
      %1027 = vrot.lane.b32.xlu0 %v1002, 1
      %v1028 = vpop.permute.xlu0 %1027
      %1029 = vrot.lane.b32.xlu0 %v1003, 1
      %v1030 = vpop.permute.xlu0 %1029
      %vm1031 = vcmask 7168
      %v1032 = vsel %vm1031, %v1014, %v1016
      %v1033 = vsel %vm1031, %v1016, %v1018
      %v1034 = vsel %vm1031, %v1018, %v1020
      %v1035 = vsel %vm1031, %v1020, %v1022
      %v1036 = vsel %vm1031, %v1022, %v1024
      %v1037 = vsel %vm1031, %v1024, %v1026
      %v1038 = vsel %vm1031, %v1026, %v1028
      %v1039 = vsel %vm1031, %v1028, %v1030
      %1048 = vst [vmem:[#allocation2 + $0x300] sm:$0xff] %v1032
      %1049 = vst [vmem:[#allocation2 + $0x308] sm:$0xff] %v1033
      %1050 = vst [vmem:[#allocation2 + $0x310] sm:$0xff] %v1034
      %1051 = vst [vmem:[#allocation2 + $0x318] sm:$0xff] %v1035
      %1052 = vst [vmem:[#allocation2 + $0x320] sm:$0xff] %v1036
      %1053 = vst [vmem:[#allocation2 + $0x328] sm:$0xff] %v1037
      %1054 = vst [vmem:[#allocation2 + $0x330] sm:$0xff] %v1038
      %1055 = vst [vmem:[#allocation2 + $0x338] sm:$0xff] %v1039
      %v1056 = vld [vmem:[#allocation3 + $0x8] sm:$0xff]
      %v1057 = vld [vmem:[#allocation3 + $0x10] sm:$0xff]
      %v1058 = vld [vmem:[#allocation3 + $0x18] sm:$0xff]
      %v1059 = vld [vmem:[#allocation3 + $0x20] sm:$0xff]
      %v1060 = vld [vmem:[#allocation3 + $0x28] sm:$0xff]
      %v1061 = vld [vmem:[#allocation3 + $0x30] sm:$0xff]
      %v1062 = vld [vmem:[#allocation3 + $0x38] sm:$0xff]
      %v1063 = vld [vmem:[#allocation3 + $0x40] sm:$0xff]
      %1064 = vst [vmem:[#allocation2 + $0x340] sm:$0xff] %v1056
      %1065 = vst [vmem:[#allocation2 + $0x348] sm:$0xff] %v1057
      %1066 = vst [vmem:[#allocation2 + $0x350] sm:$0xff] %v1058
      %1067 = vst [vmem:[#allocation2 + $0x358] sm:$0xff] %v1059
      %1068 = vst [vmem:[#allocation2 + $0x360] sm:$0xff] %v1060
      %1069 = vst [vmem:[#allocation2 + $0x368] sm:$0xff] %v1061
      %1070 = vst [vmem:[#allocation2 + $0x370] sm:$0xff] %v1062
      %1071 = vst [vmem:[#allocation2 + $0x378] sm:$0xff] %v1063
      %v1072 = vld [vmem:[#allocation3 + $0x8] sm:$0xff]
      %v1073 = vld [vmem:[#allocation3 + $0x10] sm:$0xff]
      %v1074 = vld [vmem:[#allocation3 + $0x18] sm:$0xff]
      %v1075 = vld [vmem:[#allocation3 + $0x20] sm:$0xff]
      %v1076 = vld [vmem:[#allocation3 + $0x28] sm:$0xff]
      %v1077 = vld [vmem:[#allocation3 + $0x30] sm:$0xff]
      %v1078 = vld [vmem:[#allocation3 + $0x38] sm:$0xff]
      %v1079 = vld [vmem:[#allocation3 + $0x40] sm:$0xff]
      %v1080 = vld [vmem:[#allocation3 + $0x48] sm:$0xff]
      %1090 = vrot.lane.b32.xlu0 %v1072, 127
      %v1091 = vpop.permute.xlu0 %1090
      %1092 = vrot.lane.b32.xlu0 %v1073, 127
      %v1093 = vpop.permute.xlu0 %1092
      %1094 = vrot.lane.b32.xlu0 %v1074, 127
      %v1095 = vpop.permute.xlu0 %1094
      %1096 = vrot.lane.b32.xlu0 %v1075, 127
      %v1097 = vpop.permute.xlu0 %1096
      %1098 = vrot.lane.b32.xlu0 %v1076, 127
      %v1099 = vpop.permute.xlu0 %1098
      %1100 = vrot.lane.b32.xlu0 %v1077, 127
      %v1101 = vpop.permute.xlu0 %1100
      %1102 = vrot.lane.b32.xlu0 %v1078, 127
      %v1103 = vpop.permute.xlu0 %1102
      %1104 = vrot.lane.b32.xlu0 %v1079, 127
      %v1105 = vpop.permute.xlu0 %1104
      %1106 = vrot.lane.b32.xlu0 %v1080, 127
      %v1107 = vpop.permute.xlu0 %1106
      %vm1108 = vcmask 1039360
      %v1109 = vsel %vm1108, %v1091, %v1093
      %v1110 = vsel %vm1108, %v1093, %v1095
      %v1111 = vsel %vm1108, %v1095, %v1097
      %v1112 = vsel %vm1108, %v1097, %v1099
      %v1113 = vsel %vm1108, %v1099, %v1101
      %v1114 = vsel %vm1108, %v1101, %v1103
      %v1115 = vsel %vm1108, %v1103, %v1105
      %v1116 = vsel %vm1108, %v1105, %v1107
      %1125 = vst [vmem:[#allocation2 + $0x380] sm:$0xff] %v1109
      %1126 = vst [vmem:[#allocation2 + $0x388] sm:$0xff] %v1110
      %1127 = vst [vmem:[#allocation2 + $0x390] sm:$0xff] %v1111
      %1128 = vst [vmem:[#allocation2 + $0x398] sm:$0xff] %v1112
      %1129 = vst [vmem:[#allocation2 + $0x3a0] sm:$0xff] %v1113
      %1130 = vst [vmem:[#allocation2 + $0x3a8] sm:$0xff] %v1114
      %1131 = vst [vmem:[#allocation2 + $0x3b0] sm:$0xff] %v1115
      %1132 = vst [vmem:[#allocation2 + $0x3b8] sm:$0xff] %v1116
      %v1133 = vld [vmem:[#allocation3 + $0x8] sm:$0xff]
      %v1134 = vld [vmem:[#allocation3 + $0x10] sm:$0xff]
      %v1135 = vld [vmem:[#allocation3 + $0x18] sm:$0xff]
      %v1136 = vld [vmem:[#allocation3 + $0x20] sm:$0xff]
      %v1137 = vld [vmem:[#allocation3 + $0x28] sm:$0xff]
      %v1138 = vld [vmem:[#allocation3 + $0x30] sm:$0xff]
      %v1139 = vld [vmem:[#allocation3 + $0x38] sm:$0xff]
      %v1140 = vld [vmem:[#allocation3 + $0x40] sm:$0xff]
      %v1141 = vld [vmem:[#allocation3 + $0x48] sm:$0xff]
      %1151 = vrot.lane.b32.xlu0 %v1133, 119
      %v1152 = vpop.permute.xlu0 %1151
      %1153 = vrot.lane.b32.xlu0 %v1134, 119
      %v1154 = vpop.permute.xlu0 %1153
      %1155 = vrot.lane.b32.xlu0 %v1135, 119
      %v1156 = vpop.permute.xlu0 %1155
      %1157 = vrot.lane.b32.xlu0 %v1136, 119
      %v1158 = vpop.permute.xlu0 %1157
      %1159 = vrot.lane.b32.xlu0 %v1137, 119
      %v1160 = vpop.permute.xlu0 %1159
      %1161 = vrot.lane.b32.xlu0 %v1138, 119
      %v1162 = vpop.permute.xlu0 %1161
      %1163 = vrot.lane.b32.xlu0 %v1139, 119
      %v1164 = vpop.permute.xlu0 %1163
      %1165 = vrot.lane.b32.xlu0 %v1140, 119
      %v1166 = vpop.permute.xlu0 %1165
      %1167 = vrot.lane.b32.xlu0 %v1141, 119
      %v1168 = vpop.permute.xlu0 %1167
      %vm1169 = vcmask 973824
      %v1170 = vsel %vm1169, %v1152, %v1154
      %v1171 = vsel %vm1169, %v1154, %v1156
      %v1172 = vsel %vm1169, %v1156, %v1158
      %v1173 = vsel %vm1169, %v1158, %v1160
      %v1174 = vsel %vm1169, %v1160, %v1162
      %v1175 = vsel %vm1169, %v1162, %v1164
      %v1176 = vsel %vm1169, %v1164, %v1166
      %v1177 = vsel %vm1169, %v1166, %v1168
      %1186 = vst [vmem:[#allocation2 + $0x3c0] sm:$0xff] %v1170
      %1187 = vst [vmem:[#allocation2 + $0x3c8] sm:$0xff] %v1171
      %1188 = vst [vmem:[#allocation2 + $0x3d0] sm:$0xff] %v1172
      %1189 = vst [vmem:[#allocation2 + $0x3d8] sm:$0xff] %v1173
      %1190 = vst [vmem:[#allocation2 + $0x3e0] sm:$0xff] %v1174
      %1191 = vst [vmem:[#allocation2 + $0x3e8] sm:$0xff] %v1175
      %1192 = vst [vmem:[#allocation2 + $0x3f0] sm:$0xff] %v1176
      %1193 = vst [vmem:[#allocation2 + $0x3f8] sm:$0xff] %v1177
      %v1194 = vld [vmem:[#allocation3 + $0x8] sm:$0xff]
      %v1195 = vld [vmem:[#allocation3 + $0x10] sm:$0xff]
      %v1196 = vld [vmem:[#allocation3 + $0x18] sm:$0xff]
      %v1197 = vld [vmem:[#allocation3 + $0x20] sm:$0xff]
      %v1198 = vld [vmem:[#allocation3 + $0x28] sm:$0xff]
      %v1199 = vld [vmem:[#allocation3 + $0x30] sm:$0xff]
      %v1200 = vld [vmem:[#allocation3 + $0x38] sm:$0xff]
      %v1201 = vld [vmem:[#allocation3 + $0x40] sm:$0xff]
      %v1202 = vld [vmem:[#allocation3 + $0x48] sm:$0xff]
      %1212 = vrot.lane.b32.xlu0 %v1194, 118
      %v1213 = vpop.permute.xlu0 %1212
      %1214 = vrot.lane.b32.xlu0 %v1195, 118
      %v1215 = vpop.permute.xlu0 %1214
      %1216 = vrot.lane.b32.xlu0 %v1196, 118
      %v1217 = vpop.permute.xlu0 %1216
      %1218 = vrot.lane.b32.xlu0 %v1197, 118
      %v1219 = vpop.permute.xlu0 %1218
      %1220 = vrot.lane.b32.xlu0 %v1198, 118
      %v1221 = vpop.permute.xlu0 %1220
      %1222 = vrot.lane.b32.xlu0 %v1199, 118
      %v1223 = vpop.permute.xlu0 %1222
      %1224 = vrot.lane.b32.xlu0 %v1200, 118
      %v1225 = vpop.permute.xlu0 %1224
      %1226 = vrot.lane.b32.xlu0 %v1201, 118
      %v1227 = vpop.permute.xlu0 %1226
      %1228 = vrot.lane.b32.xlu0 %v1202, 118
      %v1229 = vpop.permute.xlu0 %1228
      %vm1230 = vcmask 965632
      %v1231 = vsel %vm1230, %v1213, %v1215
      %v1232 = vsel %vm1230, %v1215, %v1217
      %v1233 = vsel %vm1230, %v1217, %v1219
      %v1234 = vsel %vm1230, %v1219, %v1221
      %v1235 = vsel %vm1230, %v1221, %v1223
      %v1236 = vsel %vm1230, %v1223, %v1225
      %v1237 = vsel %vm1230, %v1225, %v1227
      %v1238 = vsel %vm1230, %v1227, %v1229
      %1247 = vst [vmem:[#allocation2 + $0x400] sm:$0xff] %v1231
      %1248 = vst [vmem:[#allocation2 + $0x408] sm:$0xff] %v1232
      %1249 = vst [vmem:[#allocation2 + $0x410] sm:$0xff] %v1233
      %1250 = vst [vmem:[#allocation2 + $0x418] sm:$0xff] %v1234
      %1251 = vst [vmem:[#allocation2 + $0x420] sm:$0xff] %v1235
      %1252 = vst [vmem:[#allocation2 + $0x428] sm:$0xff] %v1236
      %1253 = vst [vmem:[#allocation2 + $0x430] sm:$0xff] %v1237
      %1254 = vst [vmem:[#allocation2 + $0x438] sm:$0xff] %v1238
      %v1255 = vld [vmem:[#allocation3 + $0x8] sm:$0xff]
      %v1256 = vld [vmem:[#allocation3 + $0x10] sm:$0xff]
      %v1257 = vld [vmem:[#allocation3 + $0x18] sm:$0xff]
      %v1258 = vld [vmem:[#allocation3 + $0x20] sm:$0xff]
      %v1259 = vld [vmem:[#allocation3 + $0x28] sm:$0xff]
      %v1260 = vld [vmem:[#allocation3 + $0x30] sm:$0xff]
      %v1261 = vld [vmem:[#allocation3 + $0x38] sm:$0xff]
      %v1262 = vld [vmem:[#allocation3 + $0x40] sm:$0xff]
      %v1263 = vld [vmem:[#allocation3 + $0x48] sm:$0xff]
      %1273 = vrot.lane.b32.xlu0 %v1255, 117
      %v1274 = vpop.permute.xlu0 %1273
      %1275 = vrot.lane.b32.xlu0 %v1256, 117
      %v1276 = vpop.permute.xlu0 %1275
      %1277 = vrot.lane.b32.xlu0 %v1257, 117
      %v1278 = vpop.permute.xlu0 %1277
      %1279 = vrot.lane.b32.xlu0 %v1258, 117
      %v1280 = vpop.permute.xlu0 %1279
      %1281 = vrot.lane.b32.xlu0 %v1259, 117
      %v1282 = vpop.permute.xlu0 %1281
      %1283 = vrot.lane.b32.xlu0 %v1260, 117
      %v1284 = vpop.permute.xlu0 %1283
      %1285 = vrot.lane.b32.xlu0 %v1261, 117
      %v1286 = vpop.permute.xlu0 %1285
      %1287 = vrot.lane.b32.xlu0 %v1262, 117
      %v1288 = vpop.permute.xlu0 %1287
      %1289 = vrot.lane.b32.xlu0 %v1263, 117
      %v1290 = vpop.permute.xlu0 %1289
      %vm1291 = vcmask 957440
      %v1292 = vsel %vm1291, %v1274, %v1276
      %v1293 = vsel %vm1291, %v1276, %v1278
      %v1294 = vsel %vm1291, %v1278, %v1280
      %v1295 = vsel %vm1291, %v1280, %v1282
      %v1296 = vsel %vm1291, %v1282, %v1284
      %v1297 = vsel %vm1291, %v1284, %v1286
      %v1298 = vsel %vm1291, %v1286, %v1288
      %v1299 = vsel %vm1291, %v1288, %v1290
      %1308 = vst [vmem:[#allocation2 + $0x440] sm:$0xff] %v1292
      %1309 = vst [vmem:[#allocation2 + $0x448] sm:$0xff] %v1293
      %1310 = vst [vmem:[#allocation2 + $0x450] sm:$0xff] %v1294
      %1311 = vst [vmem:[#allocation2 + $0x458] sm:$0xff] %v1295
      %1312 = vst [vmem:[#allocation2 + $0x460] sm:$0xff] %v1296
      %1313 = vst [vmem:[#allocation2 + $0x468] sm:$0xff] %v1297
      %1314 = vst [vmem:[#allocation2 + $0x470] sm:$0xff] %v1298
      %1315 = vst [vmem:[#allocation2 + $0x478] sm:$0xff] %v1299
      %v1316 = vld [vmem:[#allocation3 + $0x8] sm:$0xff]
      %v1317 = vld [vmem:[#allocation3 + $0x10] sm:$0xff]
      %v1318 = vld [vmem:[#allocation3 + $0x18] sm:$0xff]
      %v1319 = vld [vmem:[#allocation3 + $0x20] sm:$0xff]
      %v1320 = vld [vmem:[#allocation3 + $0x28] sm:$0xff]
      %v1321 = vld [vmem:[#allocation3 + $0x30] sm:$0xff]
      %v1322 = vld [vmem:[#allocation3 + $0x38] sm:$0xff]
      %v1323 = vld [vmem:[#allocation3 + $0x40] sm:$0xff]
      %v1324 = vld [vmem:[#allocation3 + $0x48] sm:$0xff]
      %1334 = vrot.lane.b32.xlu0 %v1316, 39
      %v1335 = vpop.permute.xlu0 %1334
      %1336 = vrot.lane.b32.xlu0 %v1317, 39
      %v1337 = vpop.permute.xlu0 %1336
      %1338 = vrot.lane.b32.xlu0 %v1318, 39
      %v1339 = vpop.permute.xlu0 %1338
      %1340 = vrot.lane.b32.xlu0 %v1319, 39
      %v1341 = vpop.permute.xlu0 %1340
      %1342 = vrot.lane.b32.xlu0 %v1320, 39
      %v1343 = vpop.permute.xlu0 %1342
      %1344 = vrot.lane.b32.xlu0 %v1321, 39
      %v1345 = vpop.permute.xlu0 %1344
      %1346 = vrot.lane.b32.xlu0 %v1322, 39
      %v1347 = vpop.permute.xlu0 %1346
      %1348 = vrot.lane.b32.xlu0 %v1323, 39
      %v1349 = vpop.permute.xlu0 %1348
      %1350 = vrot.lane.b32.xlu0 %v1324, 39
      %v1351 = vpop.permute.xlu0 %1350
      %vm1352 = vcmask 318464
      %v1353 = vsel %vm1352, %v1335, %v1337
      %v1354 = vsel %vm1352, %v1337, %v1339
      %v1355 = vsel %vm1352, %v1339, %v1341
      %v1356 = vsel %vm1352, %v1341, %v1343
      %v1357 = vsel %vm1352, %v1343, %v1345
      %v1358 = vsel %vm1352, %v1345, %v1347
      %v1359 = vsel %vm1352, %v1347, %v1349
      %v1360 = vsel %vm1352, %v1349, %v1351
      %1369 = vst [vmem:[#allocation2 + $0x480] sm:$0xff] %v1353
      %1370 = vst [vmem:[#allocation2 + $0x488] sm:$0xff] %v1354
      %1371 = vst [vmem:[#allocation2 + $0x490] sm:$0xff] %v1355
      %1372 = vst [vmem:[#allocation2 + $0x498] sm:$0xff] %v1356
      %1373 = vst [vmem:[#allocation2 + $0x4a0] sm:$0xff] %v1357
      %1374 = vst [vmem:[#allocation2 + $0x4a8] sm:$0xff] %v1358
      %1375 = vst [vmem:[#allocation2 + $0x4b0] sm:$0xff] %v1359
      %1376 = vst [vmem:[#allocation2 + $0x4b8] sm:$0xff] %v1360
      %v1377 = vld [vmem:[#allocation3 + $0x8] sm:$0xff]
      %v1378 = vld [vmem:[#allocation3 + $0x10] sm:$0xff]
      %v1379 = vld [vmem:[#allocation3 + $0x18] sm:$0xff]
      %v1380 = vld [vmem:[#allocation3 + $0x20] sm:$0xff]
      %v1381 = vld [vmem:[#allocation3 + $0x28] sm:$0xff]
      %v1382 = vld [vmem:[#allocation3 + $0x30] sm:$0xff]
      %v1383 = vld [vmem:[#allocation3 + $0x38] sm:$0xff]
      %v1384 = vld [vmem:[#allocation3 + $0x40] sm:$0xff]
      %v1385 = vld [vmem:[#allocation3 + $0x48] sm:$0xff]
      %1395 = vrot.lane.b32.xlu0 %v1377, 38
      %v1396 = vpop.permute.xlu0 %1395
      %1397 = vrot.lane.b32.xlu0 %v1378, 38
      %v1398 = vpop.permute.xlu0 %1397
      %1399 = vrot.lane.b32.xlu0 %v1379, 38
      %v1400 = vpop.permute.xlu0 %1399
      %1401 = vrot.lane.b32.xlu0 %v1380, 38
      %v1402 = vpop.permute.xlu0 %1401
      %1403 = vrot.lane.b32.xlu0 %v1381, 38
      %v1404 = vpop.permute.xlu0 %1403
      %1405 = vrot.lane.b32.xlu0 %v1382, 38
      %v1406 = vpop.permute.xlu0 %1405
      %1407 = vrot.lane.b32.xlu0 %v1383, 38
      %v1408 = vpop.permute.xlu0 %1407
      %1409 = vrot.lane.b32.xlu0 %v1384, 38
      %v1410 = vpop.permute.xlu0 %1409
      %1411 = vrot.lane.b32.xlu0 %v1385, 38
      %v1412 = vpop.permute.xlu0 %1411
      %vm1413 = vcmask 310272
      %v1414 = vsel %vm1413, %v1396, %v1398
      %v1415 = vsel %vm1413, %v1398, %v1400
      %v1416 = vsel %vm1413, %v1400, %v1402
      %v1417 = vsel %vm1413, %v1402, %v1404
      %v1418 = vsel %vm1413, %v1404, %v1406
      %v1419 = vsel %vm1413, %v1406, %v1408
      %v1420 = vsel %vm1413, %v1408, %v1410
      %v1421 = vsel %vm1413, %v1410, %v1412
      %1430 = vst [vmem:[#allocation2 + $0x4c0] sm:$0xff] %v1414
      %1431 = vst [vmem:[#allocation2 + $0x4c8] sm:$0xff] %v1415
      %1432 = vst [vmem:[#allocation2 + $0x4d0] sm:$0xff] %v1416
      %1433 = vst [vmem:[#allocation2 + $0x4d8] sm:$0xff] %v1417
      %1434 = vst [vmem:[#allocation2 + $0x4e0] sm:$0xff] %v1418
      %1435 = vst [vmem:[#allocation2 + $0x4e8] sm:$0xff] %v1419
      %1436 = vst [vmem:[#allocation2 + $0x4f0] sm:$0xff] %v1420
      %1437 = vst [vmem:[#allocation2 + $0x4f8] sm:$0xff] %v1421
      %v1438 = vld [vmem:[#allocation3 + $0x8] sm:$0xff]
      %v1439 = vld [vmem:[#allocation3 + $0x10] sm:$0xff]
      %v1440 = vld [vmem:[#allocation3 + $0x18] sm:$0xff]
      %v1441 = vld [vmem:[#allocation3 + $0x20] sm:$0xff]
      %v1442 = vld [vmem:[#allocation3 + $0x28] sm:$0xff]
      %v1443 = vld [vmem:[#allocation3 + $0x30] sm:$0xff]
      %v1444 = vld [vmem:[#allocation3 + $0x38] sm:$0xff]
      %v1445 = vld [vmem:[#allocation3 + $0x40] sm:$0xff]
      %v1446 = vld [vmem:[#allocation3 + $0x48] sm:$0xff]
      %1456 = vrot.lane.b32.xlu0 %v1438, 37
      %v1457 = vpop.permute.xlu0 %1456
      %1458 = vrot.lane.b32.xlu0 %v1439, 37
      %v1459 = vpop.permute.xlu0 %1458
      %1460 = vrot.lane.b32.xlu0 %v1440, 37
      %v1461 = vpop.permute.xlu0 %1460
      %1462 = vrot.lane.b32.xlu0 %v1441, 37
      %v1463 = vpop.permute.xlu0 %1462
      %1464 = vrot.lane.b32.xlu0 %v1442, 37
      %v1465 = vpop.permute.xlu0 %1464
      %1466 = vrot.lane.b32.xlu0 %v1443, 37
      %v1467 = vpop.permute.xlu0 %1466
      %1468 = vrot.lane.b32.xlu0 %v1444, 37
      %v1469 = vpop.permute.xlu0 %1468
      %1470 = vrot.lane.b32.xlu0 %v1445, 37
      %v1471 = vpop.permute.xlu0 %1470
      %1472 = vrot.lane.b32.xlu0 %v1446, 37
      %v1473 = vpop.permute.xlu0 %1472
      %vm1474 = vcmask 302080
      %v1475 = vsel %vm1474, %v1457, %v1459
      %v1476 = vsel %vm1474, %v1459, %v1461
      %v1477 = vsel %vm1474, %v1461, %v1463
      %v1478 = vsel %vm1474, %v1463, %v1465
      %v1479 = vsel %vm1474, %v1465, %v1467
      %v1480 = vsel %vm1474, %v1467, %v1469
      %v1481 = vsel %vm1474, %v1469, %v1471
      %v1482 = vsel %vm1474, %v1471, %v1473
      %1491 = vst [vmem:[#allocation2 + $0x500] sm:$0xff] %v1475
      %1492 = vst [vmem:[#allocation2 + $0x508] sm:$0xff] %v1476
      %1493 = vst [vmem:[#allocation2 + $0x510] sm:$0xff] %v1477
      %1494 = vst [vmem:[#allocation2 + $0x518] sm:$0xff] %v1478
      %1495 = vst [vmem:[#allocation2 + $0x520] sm:$0xff] %v1479
      %1496 = vst [vmem:[#allocation2 + $0x528] sm:$0xff] %v1480
      %1497 = vst [vmem:[#allocation2 + $0x530] sm:$0xff] %v1481
      %1498 = vst [vmem:[#allocation2 + $0x538] sm:$0xff] %v1482
      %v1499 = vld [vmem:[#allocation3 + $0x8] sm:$0xff]
      %v1500 = vld [vmem:[#allocation3 + $0x10] sm:$0xff]
      %v1501 = vld [vmem:[#allocation3 + $0x18] sm:$0xff]
      %v1502 = vld [vmem:[#allocation3 + $0x20] sm:$0xff]
      %v1503 = vld [vmem:[#allocation3 + $0x28] sm:$0xff]
      %v1504 = vld [vmem:[#allocation3 + $0x30] sm:$0xff]
      %v1505 = vld [vmem:[#allocation3 + $0x38] sm:$0xff]
      %v1506 = vld [vmem:[#allocation3 + $0x40] sm:$0xff]
      %v1507 = vld [vmem:[#allocation3 + $0x48] sm:$0xff]
      %1517 = vrot.lane.b32.xlu0 %v1499, 29
      %v1518 = vpop.permute.xlu0 %1517
      %1519 = vrot.lane.b32.xlu0 %v1500, 29
      %v1520 = vpop.permute.xlu0 %1519
      %1521 = vrot.lane.b32.xlu0 %v1501, 29
      %v1522 = vpop.permute.xlu0 %1521
      %1523 = vrot.lane.b32.xlu0 %v1502, 29
      %v1524 = vpop.permute.xlu0 %1523
      %1525 = vrot.lane.b32.xlu0 %v1503, 29
      %v1526 = vpop.permute.xlu0 %1525
      %1527 = vrot.lane.b32.xlu0 %v1504, 29
      %v1528 = vpop.permute.xlu0 %1527
      %1529 = vrot.lane.b32.xlu0 %v1505, 29
      %v1530 = vpop.permute.xlu0 %1529
      %1531 = vrot.lane.b32.xlu0 %v1506, 29
      %v1532 = vpop.permute.xlu0 %1531
      %1533 = vrot.lane.b32.xlu0 %v1507, 29
      %v1534 = vpop.permute.xlu0 %1533
      %vm1535 = vcmask 236544
      %v1536 = vsel %vm1535, %v1518, %v1520
      %v1537 = vsel %vm1535, %v1520, %v1522
      %v1538 = vsel %vm1535, %v1522, %v1524
      %v1539 = vsel %vm1535, %v1524, %v1526
      %v1540 = vsel %vm1535, %v1526, %v1528
      %v1541 = vsel %vm1535, %v1528, %v1530
      %v1542 = vsel %vm1535, %v1530, %v1532
      %v1543 = vsel %vm1535, %v1532, %v1534
      %1552 = vst [vmem:[#allocation2 + $0x540] sm:$0xff] %v1536
      %1553 = vst [vmem:[#allocation2 + $0x548] sm:$0xff] %v1537
      %1554 = vst [vmem:[#allocation2 + $0x550] sm:$0xff] %v1538
      %1555 = vst [vmem:[#allocation2 + $0x558] sm:$0xff] %v1539
      %1556 = vst [vmem:[#allocation2 + $0x560] sm:$0xff] %v1540
      %1557 = vst [vmem:[#allocation2 + $0x568] sm:$0xff] %v1541
      %1558 = vst [vmem:[#allocation2 + $0x570] sm:$0xff] %v1542
      %1559 = vst [vmem:[#allocation2 + $0x578] sm:$0xff] %v1543
      %v1560 = vld [vmem:[#allocation3 + $0x8] sm:$0xff]
      %v1561 = vld [vmem:[#allocation3 + $0x10] sm:$0xff]
      %v1562 = vld [vmem:[#allocation3 + $0x18] sm:$0xff]
      %v1563 = vld [vmem:[#allocation3 + $0x20] sm:$0xff]
      %v1564 = vld [vmem:[#allocation3 + $0x28] sm:$0xff]
      %v1565 = vld [vmem:[#allocation3 + $0x30] sm:$0xff]
      %v1566 = vld [vmem:[#allocation3 + $0x38] sm:$0xff]
      %v1567 = vld [vmem:[#allocation3 + $0x40] sm:$0xff]
      %v1568 = vld [vmem:[#allocation3 + $0x48] sm:$0xff]
      %1578 = vrot.lane.b32.xlu0 %v1560, 28
      %v1579 = vpop.permute.xlu0 %1578
      %1580 = vrot.lane.b32.xlu0 %v1561, 28
      %v1581 = vpop.permute.xlu0 %1580
      %1582 = vrot.lane.b32.xlu0 %v1562, 28
      %v1583 = vpop.permute.xlu0 %1582
      %1584 = vrot.lane.b32.xlu0 %v1563, 28
      %v1585 = vpop.permute.xlu0 %1584
      %1586 = vrot.lane.b32.xlu0 %v1564, 28
      %v1587 = vpop.permute.xlu0 %1586
      %1588 = vrot.lane.b32.xlu0 %v1565, 28
      %v1589 = vpop.permute.xlu0 %1588
      %1590 = vrot.lane.b32.xlu0 %v1566, 28
      %v1591 = vpop.permute.xlu0 %1590
      %1592 = vrot.lane.b32.xlu0 %v1567, 28
      %v1593 = vpop.permute.xlu0 %1592
      %1594 = vrot.lane.b32.xlu0 %v1568, 28
      %v1595 = vpop.permute.xlu0 %1594
      %vm1596 = vcmask 228352
      %v1597 = vsel %vm1596, %v1579, %v1581
      %v1598 = vsel %vm1596, %v1581, %v1583
      %v1599 = vsel %vm1596, %v1583, %v1585
      %v1600 = vsel %vm1596, %v1585, %v1587
      %v1601 = vsel %vm1596, %v1587, %v1589
      %v1602 = vsel %vm1596, %v1589, %v1591
      %v1603 = vsel %vm1596, %v1591, %v1593
      %v1604 = vsel %vm1596, %v1593, %v1595
      %1613 = vst [vmem:[#allocation2 + $0x580] sm:$0xff] %v1597
      %1614 = vst [vmem:[#allocation2 + $0x588] sm:$0xff] %v1598
      %1615 = vst [vmem:[#allocation2 + $0x590] sm:$0xff] %v1599
      %1616 = vst [vmem:[#allocation2 + $0x598] sm:$0xff] %v1600
      %1617 = vst [vmem:[#allocation2 + $0x5a0] sm:$0xff] %v1601
      %1618 = vst [vmem:[#allocation2 + $0x5a8] sm:$0xff] %v1602
      %1619 = vst [vmem:[#allocation2 + $0x5b0] sm:$0xff] %v1603
      %1620 = vst [vmem:[#allocation2 + $0x5b8] sm:$0xff] %v1604
      %v1621 = vld [vmem:[#allocation3 + $0x8] sm:$0xff]
      %v1622 = vld [vmem:[#allocation3 + $0x10] sm:$0xff]
      %v1623 = vld [vmem:[#allocation3 + $0x18] sm:$0xff]
      %v1624 = vld [vmem:[#allocation3 + $0x20] sm:$0xff]
      %v1625 = vld [vmem:[#allocation3 + $0x28] sm:$0xff]
      %v1626 = vld [vmem:[#allocation3 + $0x30] sm:$0xff]
      %v1627 = vld [vmem:[#allocation3 + $0x38] sm:$0xff]
      %v1628 = vld [vmem:[#allocation3 + $0x40] sm:$0xff]
      %v1629 = vld [vmem:[#allocation3 + $0x48] sm:$0xff]
      %1639 = vrot.lane.b32.xlu0 %v1621, 27
      %v1640 = vpop.permute.xlu0 %1639
      %1641 = vrot.lane.b32.xlu0 %v1622, 27
      %v1642 = vpop.permute.xlu0 %1641
      %1643 = vrot.lane.b32.xlu0 %v1623, 27
      %v1644 = vpop.permute.xlu0 %1643
      %1645 = vrot.lane.b32.xlu0 %v1624, 27
      %v1646 = vpop.permute.xlu0 %1645
      %1647 = vrot.lane.b32.xlu0 %v1625, 27
      %v1648 = vpop.permute.xlu0 %1647
      %1649 = vrot.lane.b32.xlu0 %v1626, 27
      %v1650 = vpop.permute.xlu0 %1649
      %1651 = vrot.lane.b32.xlu0 %v1627, 27
      %v1652 = vpop.permute.xlu0 %1651
      %1653 = vrot.lane.b32.xlu0 %v1628, 27
      %v1654 = vpop.permute.xlu0 %1653
      %1655 = vrot.lane.b32.xlu0 %v1629, 27
      %v1656 = vpop.permute.xlu0 %1655
      %vm1657 = vcmask 220160
      %v1658 = vsel %vm1657, %v1640, %v1642
      %v1659 = vsel %vm1657, %v1642, %v1644
      %v1660 = vsel %vm1657, %v1644, %v1646
      %v1661 = vsel %vm1657, %v1646, %v1648
      %v1662 = vsel %vm1657, %v1648, %v1650
      %v1663 = vsel %vm1657, %v1650, %v1652
      %v1664 = vsel %vm1657, %v1652, %v1654
      %v1665 = vsel %vm1657, %v1654, %v1656
      %1674 = vst [vmem:[#allocation2 + $0x5c0] sm:$0xff] %v1658
      %1675 = vst [vmem:[#allocation2 + $0x5c8] sm:$0xff] %v1659
      %1676 = vst [vmem:[#allocation2 + $0x5d0] sm:$0xff] %v1660
      %1677 = vst [vmem:[#allocation2 + $0x5d8] sm:$0xff] %v1661
      %1678 = vst [vmem:[#allocation2 + $0x5e0] sm:$0xff] %v1662
      %1679 = vst [vmem:[#allocation2 + $0x5e8] sm:$0xff] %v1663
      %1680 = vst [vmem:[#allocation2 + $0x5f0] sm:$0xff] %v1664
      %1681 = vst [vmem:[#allocation2 + $0x5f8] sm:$0xff] %v1665
      %v1682 = vld [vmem:[#allocation3 + $0x8] sm:$0xff]
      %v1683 = vld [vmem:[#allocation3 + $0x10] sm:$0xff]
      %v1684 = vld [vmem:[#allocation3 + $0x18] sm:$0xff]
      %v1685 = vld [vmem:[#allocation3 + $0x20] sm:$0xff]
      %v1686 = vld [vmem:[#allocation3 + $0x28] sm:$0xff]
      %v1687 = vld [vmem:[#allocation3 + $0x30] sm:$0xff]
      %v1688 = vld [vmem:[#allocation3 + $0x38] sm:$0xff]
      %v1689 = vld [vmem:[#allocation3 + $0x40] sm:$0xff]
      %v1690 = vld [vmem:[#allocation3 + $0x48] sm:$0xff]
      %1700 = vrot.lane.b32.xlu0 %v1682, 19
      %v1701 = vpop.permute.xlu0 %1700
      %1702 = vrot.lane.b32.xlu0 %v1683, 19
      %v1703 = vpop.permute.xlu0 %1702
      %1704 = vrot.lane.b32.xlu0 %v1684, 19
      %v1705 = vpop.permute.xlu0 %1704
      %1706 = vrot.lane.b32.xlu0 %v1685, 19
      %v1707 = vpop.permute.xlu0 %1706
      %1708 = vrot.lane.b32.xlu0 %v1686, 19
      %v1709 = vpop.permute.xlu0 %1708
      %1710 = vrot.lane.b32.xlu0 %v1687, 19
      %v1711 = vpop.permute.xlu0 %1710
      %1712 = vrot.lane.b32.xlu0 %v1688, 19
      %v1713 = vpop.permute.xlu0 %1712
      %1714 = vrot.lane.b32.xlu0 %v1689, 19
      %v1715 = vpop.permute.xlu0 %1714
      %1716 = vrot.lane.b32.xlu0 %v1690, 19
      %v1717 = vpop.permute.xlu0 %1716
      %vm1718 = vcmask 154624
      %v1719 = vsel %vm1718, %v1701, %v1703
      %v1720 = vsel %vm1718, %v1703, %v1705
      %v1721 = vsel %vm1718, %v1705, %v1707
      %v1722 = vsel %vm1718, %v1707, %v1709
      %v1723 = vsel %vm1718, %v1709, %v1711
      %v1724 = vsel %vm1718, %v1711, %v1713
      %v1725 = vsel %vm1718, %v1713, %v1715
      %v1726 = vsel %vm1718, %v1715, %v1717
      %1735 = vst [vmem:[#allocation2 + $0x600] sm:$0xff] %v1719
      %1736 = vst [vmem:[#allocation2 + $0x608] sm:$0xff] %v1720
      %1737 = vst [vmem:[#allocation2 + $0x610] sm:$0xff] %v1721
      %1738 = vst [vmem:[#allocation2 + $0x618] sm:$0xff] %v1722
      %1739 = vst [vmem:[#allocation2 + $0x620] sm:$0xff] %v1723
      %1740 = vst [vmem:[#allocation2 + $0x628] sm:$0xff] %v1724
      %1741 = vst [vmem:[#allocation2 + $0x630] sm:$0xff] %v1725
      %1742 = vst [vmem:[#allocation2 + $0x638] sm:$0xff] %v1726
      %v1743 = vld [vmem:[#allocation3 + $0x8] sm:$0xff]
      %v1744 = vld [vmem:[#allocation3 + $0x10] sm:$0xff]
      %v1745 = vld [vmem:[#allocation3 + $0x18] sm:$0xff]
      %v1746 = vld [vmem:[#allocation3 + $0x20] sm:$0xff]
      %v1747 = vld [vmem:[#allocation3 + $0x28] sm:$0xff]
      %v1748 = vld [vmem:[#allocation3 + $0x30] sm:$0xff]
      %v1749 = vld [vmem:[#allocation3 + $0x38] sm:$0xff]
      %v1750 = vld [vmem:[#allocation3 + $0x40] sm:$0xff]
      %v1751 = vld [vmem:[#allocation3 + $0x48] sm:$0xff]
      %1761 = vrot.lane.b32.xlu0 %v1743, 18
      %v1762 = vpop.permute.xlu0 %1761
      %1763 = vrot.lane.b32.xlu0 %v1744, 18
      %v1764 = vpop.permute.xlu0 %1763
      %1765 = vrot.lane.b32.xlu0 %v1745, 18
      %v1766 = vpop.permute.xlu0 %1765
      %1767 = vrot.lane.b32.xlu0 %v1746, 18
      %v1768 = vpop.permute.xlu0 %1767
      %1769 = vrot.lane.b32.xlu0 %v1747, 18
      %v1770 = vpop.permute.xlu0 %1769
      %1771 = vrot.lane.b32.xlu0 %v1748, 18
      %v1772 = vpop.permute.xlu0 %1771
      %1773 = vrot.lane.b32.xlu0 %v1749, 18
      %v1774 = vpop.permute.xlu0 %1773
      %1775 = vrot.lane.b32.xlu0 %v1750, 18
      %v1776 = vpop.permute.xlu0 %1775
      %1777 = vrot.lane.b32.xlu0 %v1751, 18
      %v1778 = vpop.permute.xlu0 %1777
      %vm1779 = vcmask 146432
      %v1780 = vsel %vm1779, %v1762, %v1764
      %v1781 = vsel %vm1779, %v1764, %v1766
      %v1782 = vsel %vm1779, %v1766, %v1768
      %v1783 = vsel %vm1779, %v1768, %v1770
      %v1784 = vsel %vm1779, %v1770, %v1772
      %v1785 = vsel %vm1779, %v1772, %v1774
      %v1786 = vsel %vm1779, %v1774, %v1776
      %v1787 = vsel %vm1779, %v1776, %v1778
      %1796 = vst [vmem:[#allocation2 + $0x640] sm:$0xff] %v1780
      %1797 = vst [vmem:[#allocation2 + $0x648] sm:$0xff] %v1781
      %1798 = vst [vmem:[#allocation2 + $0x650] sm:$0xff] %v1782
      %1799 = vst [vmem:[#allocation2 + $0x658] sm:$0xff] %v1783
      %1800 = vst [vmem:[#allocation2 + $0x660] sm:$0xff] %v1784
      %1801 = vst [vmem:[#allocation2 + $0x668] sm:$0xff] %v1785
      %1802 = vst [vmem:[#allocation2 + $0x670] sm:$0xff] %v1786
      %1803 = vst [vmem:[#allocation2 + $0x678] sm:$0xff] %v1787
      %v1804 = vld [vmem:[#allocation3 + $0x8] sm:$0xff]
      %v1805 = vld [vmem:[#allocation3 + $0x10] sm:$0xff]
      %v1806 = vld [vmem:[#allocation3 + $0x18] sm:$0xff]
      %v1807 = vld [vmem:[#allocation3 + $0x20] sm:$0xff]
      %v1808 = vld [vmem:[#allocation3 + $0x28] sm:$0xff]
      %v1809 = vld [vmem:[#allocation3 + $0x30] sm:$0xff]
      %v1810 = vld [vmem:[#allocation3 + $0x38] sm:$0xff]
      %v1811 = vld [vmem:[#allocation3 + $0x40] sm:$0xff]
      %v1812 = vld [vmem:[#allocation3 + $0x48] sm:$0xff]
      %1822 = vrot.lane.b32.xlu0 %v1804, 17
      %v1823 = vpop.permute.xlu0 %1822
      %1824 = vrot.lane.b32.xlu0 %v1805, 17
      %v1825 = vpop.permute.xlu0 %1824
      %1826 = vrot.lane.b32.xlu0 %v1806, 17
      %v1827 = vpop.permute.xlu0 %1826
      %1828 = vrot.lane.b32.xlu0 %v1807, 17
      %v1829 = vpop.permute.xlu0 %1828
      %1830 = vrot.lane.b32.xlu0 %v1808, 17
      %v1831 = vpop.permute.xlu0 %1830
      %1832 = vrot.lane.b32.xlu0 %v1809, 17
      %v1833 = vpop.permute.xlu0 %1832
      %1834 = vrot.lane.b32.xlu0 %v1810, 17
      %v1835 = vpop.permute.xlu0 %1834
      %1836 = vrot.lane.b32.xlu0 %v1811, 17
      %v1837 = vpop.permute.xlu0 %1836
      %1838 = vrot.lane.b32.xlu0 %v1812, 17
      %v1839 = vpop.permute.xlu0 %1838
      %vm1840 = vcmask 138240
      %v1841 = vsel %vm1840, %v1823, %v1825
      %v1842 = vsel %vm1840, %v1825, %v1827
      %v1843 = vsel %vm1840, %v1827, %v1829
      %v1844 = vsel %vm1840, %v1829, %v1831
      %v1845 = vsel %vm1840, %v1831, %v1833
      %v1846 = vsel %vm1840, %v1833, %v1835
      %v1847 = vsel %vm1840, %v1835, %v1837
      %v1848 = vsel %vm1840, %v1837, %v1839
      %1857 = vst [vmem:[#allocation2 + $0x680] sm:$0xff] %v1841
      %1858 = vst [vmem:[#allocation2 + $0x688] sm:$0xff] %v1842
      %1859 = vst [vmem:[#allocation2 + $0x690] sm:$0xff] %v1843
      %1860 = vst [vmem:[#allocation2 + $0x698] sm:$0xff] %v1844
      %1861 = vst [vmem:[#allocation2 + $0x6a0] sm:$0xff] %v1845
      %1862 = vst [vmem:[#allocation2 + $0x6a8] sm:$0xff] %v1846
      %1863 = vst [vmem:[#allocation2 + $0x6b0] sm:$0xff] %v1847
      %1864 = vst [vmem:[#allocation2 + $0x6b8] sm:$0xff] %v1848
      %v1865 = vld [vmem:[%s2] sm:$0xff]
      %v1866 = vld [vmem:[%s2 + $0x8] sm:$0xff]
      %v1867 = vld [vmem:[%s2 + $0x10] sm:$0xff]
      %v1868 = vld [vmem:[%s2 + $0x18] sm:$0xff]
      %v1869 = vld [vmem:[#allocation2] sm:$0xff]
      %v1870 = vld [vmem:[#allocation2 + $0x8] sm:$0xff]
      %v1871 = vld [vmem:[#allocation2 + $0x10] sm:$0xff]
      %v1872 = vld [vmem:[#allocation2 + $0x18] sm:$0xff]
      %v1873 = vld [vmem:[#allocation2 + $0x20] sm:$0xff]
      %v1874 = vld [vmem:[#allocation2 + $0x28] sm:$0xff]
      %v1875 = vld [vmem:[#allocation2 + $0x30] sm:$0xff]
      %v1876 = vld [vmem:[#allocation2 + $0x38] sm:$0xff]
      %v1877 = vld [vmem:[#allocation2 + $0x40] sm:$0xff]
      %v1878 = vld [vmem:[#allocation2 + $0x48] sm:$0xff]
      %v1879 = vld [vmem:[#allocation2 + $0x50] sm:$0xff]
      %v1880 = vld [vmem:[#allocation2 + $0x58] sm:$0xff]
      %v1881 = vld [vmem:[#allocation2 + $0x60] sm:$0xff]
      %v1882 = vld [vmem:[#allocation2 + $0x68] sm:$0xff]
      %v1883 = vld [vmem:[#allocation2 + $0x70] sm:$0xff]
      %v1884 = vld [vmem:[#allocation2 + $0x78] sm:$0xff]
      %v1885 = vld [vmem:[#allocation2 + $0x80] sm:$0xff]
      %v1886 = vld [vmem:[#allocation2 + $0x88] sm:$0xff]
      %v1887 = vld [vmem:[#allocation2 + $0x90] sm:$0xff]
      %v1888 = vld [vmem:[#allocation2 + $0x98] sm:$0xff]
      %v1889 = vld [vmem:[#allocation2 + $0xa0] sm:$0xff]
      %v1890 = vld [vmem:[#allocation2 + $0xa8] sm:$0xff]
      %v1891 = vld [vmem:[#allocation2 + $0xb0] sm:$0xff]
      %v1892 = vld [vmem:[#allocation2 + $0xb8] sm:$0xff]
      %v1893 = vld [vmem:[#allocation2 + $0xc0] sm:$0xff]
      %v1894 = vld [vmem:[#allocation2 + $0xc8] sm:$0xff]
      %v1895 = vld [vmem:[#allocation2 + $0xd0] sm:$0xff]
      %v1896 = vld [vmem:[#allocation2 + $0xd8] sm:$0xff]
      %v1897 = vld [vmem:[#allocation2 + $0xe0] sm:$0xff]
      %v1898 = vld [vmem:[#allocation2 + $0xe8] sm:$0xff]
      %v1899 = vld [vmem:[#allocation2 + $0xf0] sm:$0xff]
      %v1900 = vld [vmem:[#allocation2 + $0xf8] sm:$0xff]
      %v1901 = vld [vmem:[#allocation2 + $0x100] sm:$0xff]
      %v1902 = vld [vmem:[#allocation2 + $0x108] sm:$0xff]
      %v1903 = vld [vmem:[#allocation2 + $0x110] sm:$0xff]
      %v1904 = vld [vmem:[#allocation2 + $0x118] sm:$0xff]
      %v1905 = vld [vmem:[#allocation2 + $0x120] sm:$0xff]
      %v1906 = vld [vmem:[#allocation2 + $0x128] sm:$0xff]
      %v1907 = vld [vmem:[#allocation2 + $0x130] sm:$0xff]
      %v1908 = vld [vmem:[#allocation2 + $0x138] sm:$0xff]
      %v1909 = vld [vmem:[#allocation2 + $0x140] sm:$0xff]
      %v1910 = vld [vmem:[#allocation2 + $0x148] sm:$0xff]
      %v1911 = vld [vmem:[#allocation2 + $0x150] sm:$0xff]
      %v1912 = vld [vmem:[#allocation2 + $0x158] sm:$0xff]
      %v1913 = vld [vmem:[#allocation2 + $0x160] sm:$0xff]
      %v1914 = vld [vmem:[#allocation2 + $0x168] sm:$0xff]
      %v1915 = vld [vmem:[#allocation2 + $0x170] sm:$0xff]
      %v1916 = vld [vmem:[#allocation2 + $0x178] sm:$0xff]
      %v1917 = vld [vmem:[#allocation2 + $0x180] sm:$0xff]
      %v1918 = vld [vmem:[#allocation2 + $0x188] sm:$0xff]
      %v1919 = vld [vmem:[#allocation2 + $0x190] sm:$0xff]
      %v1920 = vld [vmem:[#allocation2 + $0x198] sm:$0xff]
      %v1921 = vld [vmem:[#allocation2 + $0x1a0] sm:$0xff]
      %v1922 = vld [vmem:[#allocation2 + $0x1a8] sm:$0xff]
      %v1923 = vld [vmem:[#allocation2 + $0x1b0] sm:$0xff]
      %v1924 = vld [vmem:[#allocation2 + $0x1b8] sm:$0xff]
      %v1925 = vld [vmem:[#allocation2 + $0x1c0] sm:$0xff]
      %v1926 = vld [vmem:[#allocation2 + $0x1c8] sm:$0xff]
      %v1927 = vld [vmem:[#allocation2 + $0x1d0] sm:$0xff]
      %v1928 = vld [vmem:[#allocation2 + $0x1d8] sm:$0xff]
      %v1929 = vld [vmem:[#allocation2 + $0x1e0] sm:$0xff]
      %v1930 = vld [vmem:[#allocation2 + $0x1e8] sm:$0xff]
      %v1931 = vld [vmem:[#allocation2 + $0x1f0] sm:$0xff]
      %v1932 = vld [vmem:[#allocation2 + $0x1f8] sm:$0xff]
      %v1933 = vld [vmem:[#allocation2 + $0x200] sm:$0xff]
      %v1934 = vld [vmem:[#allocation2 + $0x208] sm:$0xff]
      %v1935 = vld [vmem:[#allocation2 + $0x210] sm:$0xff]
      %v1936 = vld [vmem:[#allocation2 + $0x218] sm:$0xff]
      %v1937 = vld [vmem:[#allocation2 + $0x220] sm:$0xff]
      %v1938 = vld [vmem:[#allocation2 + $0x228] sm:$0xff]
      %v1939 = vld [vmem:[#allocation2 + $0x230] sm:$0xff]
      %v1940 = vld [vmem:[#allocation2 + $0x238] sm:$0xff]
      %v1941 = vld [vmem:[#allocation2 + $0x240] sm:$0xff]
      %v1942 = vld [vmem:[#allocation2 + $0x248] sm:$0xff]
      %v1943 = vld [vmem:[#allocation2 + $0x250] sm:$0xff]
      %v1944 = vld [vmem:[#allocation2 + $0x258] sm:$0xff]
      %v1945 = vld [vmem:[#allocation2 + $0x260] sm:$0xff]
      %v1946 = vld [vmem:[#allocation2 + $0x268] sm:$0xff]
      %v1947 = vld [vmem:[#allocation2 + $0x270] sm:$0xff]
      %v1948 = vld [vmem:[#allocation2 + $0x278] sm:$0xff]
      %v1949 = vld [vmem:[#allocation2 + $0x280] sm:$0xff]
      %v1950 = vld [vmem:[#allocation2 + $0x288] sm:$0xff]
      %v1951 = vld [vmem:[#allocation2 + $0x290] sm:$0xff]
      %v1952 = vld [vmem:[#allocation2 + $0x298] sm:$0xff]
      %v1953 = vld [vmem:[#allocation2 + $0x2a0] sm:$0xff]
      %v1954 = vld [vmem:[#allocation2 + $0x2a8] sm:$0xff]
      %v1955 = vld [vmem:[#allocation2 + $0x2b0] sm:$0xff]
      %v1956 = vld [vmem:[#allocation2 + $0x2b8] sm:$0xff]
      %v1957 = vld [vmem:[#allocation2 + $0x2c0] sm:$0xff]
      %v1958 = vld [vmem:[#allocation2 + $0x2c8] sm:$0xff]
      %v1959 = vld [vmem:[#allocation2 + $0x2d0] sm:$0xff]
      %v1960 = vld [vmem:[#allocation2 + $0x2d8] sm:$0xff]
      %v1961 = vld [vmem:[#allocation2 + $0x2e0] sm:$0xff]
      %v1962 = vld [vmem:[#allocation2 + $0x2e8] sm:$0xff]
      %v1963 = vld [vmem:[#allocation2 + $0x2f0] sm:$0xff]
      %v1964 = vld [vmem:[#allocation2 + $0x2f8] sm:$0xff]
      %v1965 = vld [vmem:[#allocation2 + $0x300] sm:$0xff]
      %v1966 = vld [vmem:[#allocation2 + $0x308] sm:$0xff]
      %v1967 = vld [vmem:[#allocation2 + $0x310] sm:$0xff]
      %v1968 = vld [vmem:[#allocation2 + $0x318] sm:$0xff]
      %v1969 = vld [vmem:[#allocation2 + $0x320] sm:$0xff]
      %v1970 = vld [vmem:[#allocation2 + $0x328] sm:$0xff]
      %v1971 = vld [vmem:[#allocation2 + $0x330] sm:$0xff]
      %v1972 = vld [vmem:[#allocation2 + $0x338] sm:$0xff]
      %v1973 = vld [vmem:[#allocation2 + $0x340] sm:$0xff]
      %v1974 = vld [vmem:[#allocation2 + $0x348] sm:$0xff]
      %v1975 = vld [vmem:[#allocation2 + $0x350] sm:$0xff]
      %v1976 = vld [vmem:[#allocation2 + $0x358] sm:$0xff]
      %v1977 = vld [vmem:[#allocation2 + $0x360] sm:$0xff]
      %v1978 = vld [vmem:[#allocation2 + $0x368] sm:$0xff]
      %v1979 = vld [vmem:[#allocation2 + $0x370] sm:$0xff]
      %v1980 = vld [vmem:[#allocation2 + $0x378] sm:$0xff]
      %v1981 = vld [vmem:[#allocation2 + $0x380] sm:$0xff]
      %v1982 = vld [vmem:[#allocation2 + $0x388] sm:$0xff]
      %v1983 = vld [vmem:[#allocation2 + $0x390] sm:$0xff]
      %v1984 = vld [vmem:[#allocation2 + $0x398] sm:$0xff]
      %v1985 = vld [vmem:[#allocation2 + $0x3a0] sm:$0xff]
      %v1986 = vld [vmem:[#allocation2 + $0x3a8] sm:$0xff]
      %v1987 = vld [vmem:[#allocation2 + $0x3b0] sm:$0xff]
      %v1988 = vld [vmem:[#allocation2 + $0x3b8] sm:$0xff]
      %v1989 = vld [vmem:[#allocation2 + $0x3c0] sm:$0xff]
      %v1990 = vld [vmem:[#allocation2 + $0x3c8] sm:$0xff]
      %v1991 = vld [vmem:[#allocation2 + $0x3d0] sm:$0xff]
      %v1992 = vld [vmem:[#allocation2 + $0x3d8] sm:$0xff]
      %v1993 = vld [vmem:[#allocation2 + $0x3e0] sm:$0xff]
      %v1994 = vld [vmem:[#allocation2 + $0x3e8] sm:$0xff]
      %v1995 = vld [vmem:[#allocation2 + $0x3f0] sm:$0xff]
      %v1996 = vld [vmem:[#allocation2 + $0x3f8] sm:$0xff]
      %v1997 = vld [vmem:[#allocation2 + $0x400] sm:$0xff]
      %v1998 = vld [vmem:[#allocation2 + $0x408] sm:$0xff]
      %v1999 = vld [vmem:[#allocation2 + $0x410] sm:$0xff]
      %v2000 = vld [vmem:[#allocation2 + $0x418] sm:$0xff]
      %v2001 = vld [vmem:[#allocation2 + $0x420] sm:$0xff]
      %v2002 = vld [vmem:[#allocation2 + $0x428] sm:$0xff]
      %v2003 = vld [vmem:[#allocation2 + $0x430] sm:$0xff]
      %v2004 = vld [vmem:[#allocation2 + $0x438] sm:$0xff]
      %v2005 = vld [vmem:[#allocation2 + $0x440] sm:$0xff]
      %v2006 = vld [vmem:[#allocation2 + $0x448] sm:$0xff]
      %v2007 = vld [vmem:[#allocation2 + $0x450] sm:$0xff]
      %v2008 = vld [vmem:[#allocation2 + $0x458] sm:$0xff]
      %v2009 = vld [vmem:[#allocation2 + $0x460] sm:$0xff]
      %v2010 = vld [vmem:[#allocation2 + $0x468] sm:$0xff]
      %v2011 = vld [vmem:[#allocation2 + $0x470] sm:$0xff]
      %v2012 = vld [vmem:[#allocation2 + $0x478] sm:$0xff]
      %v2013 = vld [vmem:[#allocation2 + $0x480] sm:$0xff]
      %v2014 = vld [vmem:[#allocation2 + $0x488] sm:$0xff]
      %v2015 = vld [vmem:[#allocation2 + $0x490] sm:$0xff]
      %v2016 = vld [vmem:[#allocation2 + $0x498] sm:$0xff]
      %v2017 = vld [vmem:[#allocation2 + $0x4a0] sm:$0xff]
      %v2018 = vld [vmem:[#allocation2 + $0x4a8] sm:$0xff]
      %v2019 = vld [vmem:[#allocation2 + $0x4b0] sm:$0xff]
      %v2020 = vld [vmem:[#allocation2 + $0x4b8] sm:$0xff]
      %v2021 = vld [vmem:[#allocation2 + $0x4c0] sm:$0xff]
      %v2022 = vld [vmem:[#allocation2 + $0x4c8] sm:$0xff]
      %v2023 = vld [vmem:[#allocation2 + $0x4d0] sm:$0xff]
      %v2024 = vld [vmem:[#allocation2 + $0x4d8] sm:$0xff]
      %v2025 = vld [vmem:[#allocation2 + $0x4e0] sm:$0xff]
      %v2026 = vld [vmem:[#allocation2 + $0x4e8] sm:$0xff]
      %v2027 = vld [vmem:[#allocation2 + $0x4f0] sm:$0xff]
      %v2028 = vld [vmem:[#allocation2 + $0x4f8] sm:$0xff]
      %v2029 = vld [vmem:[#allocation2 + $0x500] sm:$0xff]
      %v2030 = vld [vmem:[#allocation2 + $0x508] sm:$0xff]
      %v2031 = vld [vmem:[#allocation2 + $0x510] sm:$0xff]
      %v2032 = vld [vmem:[#allocation2 + $0x518] sm:$0xff]
      %v2033 = vld [vmem:[#allocation2 + $0x520] sm:$0xff]
      %v2034 = vld [vmem:[#allocation2 + $0x528] sm:$0xff]
      %v2035 = vld [vmem:[#allocation2 + $0x530] sm:$0xff]
      %v2036 = vld [vmem:[#allocation2 + $0x538] sm:$0xff]
      %v2037 = vld [vmem:[#allocation2 + $0x540] sm:$0xff]
      %v2038 = vld [vmem:[#allocation2 + $0x548] sm:$0xff]
      %v2039 = vld [vmem:[#allocation2 + $0x550] sm:$0xff]
      %v2040 = vld [vmem:[#allocation2 + $0x558] sm:$0xff]
      %v2041 = vld [vmem:[#allocation2 + $0x560] sm:$0xff]
      %v2042 = vld [vmem:[#allocation2 + $0x568] sm:$0xff]
      %v2043 = vld [vmem:[#allocation2 + $0x570] sm:$0xff]
      %v2044 = vld [vmem:[#allocation2 + $0x578] sm:$0xff]
      %v2045 = vld [vmem:[#allocation2 + $0x580] sm:$0xff]
      %v2046 = vld [vmem:[#allocation2 + $0x588] sm:$0xff]
      %v2047 = vld [vmem:[#allocation2 + $0x590] sm:$0xff]
      %v2048 = vld [vmem:[#allocation2 + $0x598] sm:$0xff]
      %v2049 = vld [vmem:[#allocation2 + $0x5a0] sm:$0xff]
      %v2050 = vld [vmem:[#allocation2 + $0x5a8] sm:$0xff]
      %v2051 = vld [vmem:[#allocation2 + $0x5b0] sm:$0xff]
      %v2052 = vld [vmem:[#allocation2 + $0x5b8] sm:$0xff]
      %v2053 = vld [vmem:[#allocation2 + $0x5c0] sm:$0xff]
      %v2054 = vld [vmem:[#allocation2 + $0x5c8] sm:$0xff]
      %v2055 = vld [vmem:[#allocation2 + $0x5d0] sm:$0xff]
      %v2056 = vld [vmem:[#allocation2 + $0x5d8] sm:$0xff]
      %v2057 = vld [vmem:[#allocation2 + $0x5e0] sm:$0xff]
      %v2058 = vld [vmem:[#allocation2 + $0x5e8] sm:$0xff]
      %v2059 = vld [vmem:[#allocation2 + $0x5f0] sm:$0xff]
      %v2060 = vld [vmem:[#allocation2 + $0x5f8] sm:$0xff]
      %v2061 = vld [vmem:[#allocation2 + $0x600] sm:$0xff]
      %v2062 = vld [vmem:[#allocation2 + $0x608] sm:$0xff]
      %v2063 = vld [vmem:[#allocation2 + $0x610] sm:$0xff]
      %v2064 = vld [vmem:[#allocation2 + $0x618] sm:$0xff]
      %v2065 = vld [vmem:[#allocation2 + $0x620] sm:$0xff]
      %v2066 = vld [vmem:[#allocation2 + $0x628] sm:$0xff]
      %v2067 = vld [vmem:[#allocation2 + $0x630] sm:$0xff]
      %v2068 = vld [vmem:[#allocation2 + $0x638] sm:$0xff]
      %v2069 = vld [vmem:[#allocation2 + $0x640] sm:$0xff]
      %v2070 = vld [vmem:[#allocation2 + $0x648] sm:$0xff]
      %v2071 = vld [vmem:[#allocation2 + $0x650] sm:$0xff]
      %v2072 = vld [vmem:[#allocation2 + $0x658] sm:$0xff]
      %v2073 = vld [vmem:[#allocation2 + $0x660] sm:$0xff]
      %v2074 = vld [vmem:[#allocation2 + $0x668] sm:$0xff]
      %v2075 = vld [vmem:[#allocation2 + $0x670] sm:$0xff]
      %v2076 = vld [vmem:[#allocation2 + $0x678] sm:$0xff]
      %v2077 = vld [vmem:[#allocation2 + $0x680] sm:$0xff]
      %v2078 = vld [vmem:[#allocation2 + $0x688] sm:$0xff]
      %v2079 = vld [vmem:[#allocation2 + $0x690] sm:$0xff]
      %v2080 = vld [vmem:[#allocation2 + $0x698] sm:$0xff]
      %v2081 = vld [vmem:[#allocation2 + $0x6a0] sm:$0xff]
      %v2082 = vld [vmem:[#allocation2 + $0x6a8] sm:$0xff]
      %v2083 = vld [vmem:[#allocation2 + $0x6b0] sm:$0xff]
      %v2084 = vld [vmem:[#allocation2 + $0x6b8] sm:$0xff]
      %v2089 = vunpack.c.l.b16 %v1865
      %v2090 = vunpack.c.h.b16 %v1865
      %v2091 = vunpack.c.l.b16 %v1866
      %v2092 = vunpack.c.h.b16 %v1866
      %v2093 = vunpack.c.l.b16 %v1867
      %v2094 = vunpack.c.h.b16 %v1867
      %v2095 = vunpack.c.l.b16 %v1868
      %v2096 = vunpack.c.h.b16 %v1868
      %v2097 = vpack.c.b16 %v2093, %v2089
      %v2098 = vpack.c.b16 %v2094, %v2090
      %v2099 = vpack.c.b16 %v2095, %v2091
      %v2100 = vpack.c.b16 %v2096, %v2092
      %vm2104 = vcmask 392192
      %v2106 = vsel %vm2104, %v2100, 0
      %2108 = vmatprep.subr.bf16.mxu0 %v1870
      %2109 = vmatpush1.bf16.msra.mxu0 %v1869
      %2110 = vmatprep.subr.bf16.mxu0 %v1878
      %2111 = vmatpush1.bf16.msra.mxu0 %v1877
      %2112 = vmatprep.subr.bf16.mxu0 %v1886
      %2113 = vmatpush1.bf16.msra.mxu0 %v1885
      %2114 = vmatprep.subr.bf16.mxu0 %v1894
      %2115 = vmatpush1.bf16.msra.mxu0 %v1893
      %2116 = vmatprep.subr.bf16.mxu0 %v1902
      %2117 = vmatpush1.bf16.msra.mxu0 %v1901
      %2118 = vmatprep.subr.bf16.mxu0 %v1910
      %2119 = vmatpush1.bf16.msra.mxu0 %v1909
      %2120 = vmatprep.subr.bf16.mxu0 %v1918
      %2121 = vmatpush1.bf16.msra.mxu0 %v1917
      %2122 = vmatprep.subr.bf16.mxu0 %v1926
      %2123 = vmatpush1.bf16.msra.mxu0 %v1925
      %2124 = vmatprep.subr.bf16.mxu0 %v1934
      %2125 = vmatpush1.bf16.msra.mxu0 %v1933
      %2126 = vmatprep.subr.bf16.mxu0 %v1942
      %2127 = vmatpush1.bf16.msra.mxu0 %v1941
      %2128 = vmatprep.subr.bf16.mxu0 %v1950
      %2129 = vmatpush1.bf16.msra.mxu0 %v1949
      %2130 = vmatprep.subr.bf16.mxu0 %v1958
      %2131 = vmatpush1.bf16.msra.mxu0 %v1957
      %2132 = vmatprep.subr.bf16.mxu0 %v1966
      %2133 = vmatpush1.bf16.msra.mxu0 %v1965
      %2134 = vmatprep.subr.bf16.mxu0 %v1974
      %2135 = vmatpush1.bf16.msra.mxu0 %v1973
      %2136 = vmatprep.subr.bf16.mxu0 %v1982
      %2137 = vmatpush1.bf16.msra.mxu0 %v1981
      %2138 = vmatprep.subr.bf16.mxu0 %v1990
      %2139 = vmatpush1.bf16.msra.mxu0 %v1989
      %2140 = vmatprep.mubr.bf16.mxu0 %v2098
      %2141 = vmatmul.mubr.bf16.gmra.mrb[0].mxu0 %v2097
      %v2142 = vpop.f32.mrb[0].mxu0
      %v2143 = vadd.f32 0.0, %v2142
      %v2144 = vpop.f32.mrb[0].mxu0
      %v2145 = vadd.f32 0.0, %v2144
      %v2146 = vpop.f32.mrb[0].mxu0
      %v2147 = vadd.f32 0.0, %v2146
      %v2148 = vpop.f32.mrb[0].mxu0
      %v2149 = vadd.f32 0.0, %v2148
      %2150 = vdwg.mxu0
      %2151 = vmatprep.subr.bf16.mxu0 %v1998
      %2152 = vmatpush1.bf16.msra.mxu0 %v1997
      %2153 = vmatprep.subr.bf16.mxu0 %v2006
      %2154 = vmatpush1.bf16.msra.mxu0 %v2005
      %2155 = vmatprep.subr.bf16.mxu0 %v2014
      %2156 = vmatpush1.bf16.msra.mxu0 %v2013
      %2157 = vmatprep.subr.bf16.mxu0 %v2022
      %2158 = vmatpush1.bf16.msra.mxu0 %v2021
      %2159 = vmatprep.subr.bf16.mxu0 %v2030
      %2160 = vmatpush1.bf16.msra.mxu0 %v2029
      %2161 = vmatprep.subr.bf16.mxu0 %v2038
      %2162 = vmatpush1.bf16.msra.mxu0 %v2037
      %2163 = vmatprep.subr.bf16.mxu0 %v2046
      %2164 = vmatpush1.bf16.msra.mxu0 %v2045
      %2165 = vmatprep.subr.bf16.mxu0 %v2054
      %2166 = vmatpush1.bf16.msra.mxu0 %v2053
      %2167 = vmatprep.subr.bf16.mxu0 %v2062
      %2168 = vmatpush1.bf16.msra.mxu0 %v2061
      %2169 = vmatprep.subr.bf16.mxu0 %v2070
      %2170 = vmatpush1.bf16.msra.mxu0 %v2069
      %2171 = vmatprep.subr.bf16.mxu0 %v2078
      %2172 = vmatpush1.bf16.msra.mxu0 %v2077
      %2173 = vmatprep.subr.bf16.mxu0 0
      %2174 = vmatpush1.bf16.msra.mxu0 0
      %2175 = vmatprep.subr.bf16.mxu0 0
      %2176 = vmatpush1.bf16.msra.mxu0 0
      %2177 = vmatprep.subr.bf16.mxu0 0
      %2178 = vmatpush1.bf16.msra.mxu0 0
      %2179 = vmatprep.subr.bf16.mxu0 0
      %2180 = vmatpush1.bf16.msra.mxu0 0
      %2181 = vmatprep.subr.bf16.mxu0 0
      %2182 = vmatpush1.bf16.msra.mxu0 0
      %2183 = vmatprep.mubr.bf16.mxu0 %v2106
      %2184 = vmatmul.mubr.bf16.gmra.mrb[0].mxu0 %v2099
      %v2185 = vpop.f32.mrb[0].mxu0
      %v2186 = vadd.f32 %v2143, %v2185
      %v2187 = vpop.f32.mrb[0].mxu0
      %v2188 = vadd.f32 %v2145, %v2187
      %v2189 = vpop.f32.mrb[0].mxu0
      %v2190 = vadd.f32 %v2147, %v2189
      %v2191 = vpop.f32.mrb[0].mxu0
      %v2192 = vadd.f32 %v2149, %v2191
      %2193 = vdwg.mxu0
      %2194 = vmatprep.subr.bf16.mxu0 %v1872
      %2195 = vmatpush1.bf16.msra.mxu0 %v1871
      %2196 = vmatprep.subr.bf16.mxu0 %v1880
      %2197 = vmatpush1.bf16.msra.mxu0 %v1879
      %2198 = vmatprep.subr.bf16.mxu0 %v1888
      %2199 = vmatpush1.bf16.msra.mxu0 %v1887
      %2200 = vmatprep.subr.bf16.mxu0 %v1896
      %2201 = vmatpush1.bf16.msra.mxu0 %v1895
      %2202 = vmatprep.subr.bf16.mxu0 %v1904
      %2203 = vmatpush1.bf16.msra.mxu0 %v1903
      %2204 = vmatprep.subr.bf16.mxu0 %v1912
      %2205 = vmatpush1.bf16.msra.mxu0 %v1911
      %2206 = vmatprep.subr.bf16.mxu0 %v1920
      %2207 = vmatpush1.bf16.msra.mxu0 %v1919
      %2208 = vmatprep.subr.bf16.mxu0 %v1928
      %2209 = vmatpush1.bf16.msra.mxu0 %v1927
      %2210 = vmatprep.subr.bf16.mxu0 %v1936
      %2211 = vmatpush1.bf16.msra.mxu0 %v1935
      %2212 = vmatprep.subr.bf16.mxu0 %v1944
      %2213 = vmatpush1.bf16.msra.mxu0 %v1943
      %2214 = vmatprep.subr.bf16.mxu0 %v1952
      %2215 = vmatpush1.bf16.msra.mxu0 %v1951
      %2216 = vmatprep.subr.bf16.mxu0 %v1960
      %2217 = vmatpush1.bf16.msra.mxu0 %v1959
      %2218 = vmatprep.subr.bf16.mxu0 %v1968
      %2219 = vmatpush1.bf16.msra.mxu0 %v1967
      %2220 = vmatprep.subr.bf16.mxu0 %v1976
      %2221 = vmatpush1.bf16.msra.mxu0 %v1975
      %2222 = vmatprep.subr.bf16.mxu0 %v1984
      %2223 = vmatpush1.bf16.msra.mxu0 %v1983
      %2224 = vmatprep.subr.bf16.mxu0 %v1992
      %2225 = vmatpush1.bf16.msra.mxu0 %v1991
      %2226 = vmatprep.mubr.bf16.mxu0 %v2098
      %2227 = vmatmul.mubr.bf16.gmra.mrb[0].mxu0 %v2097
      %v2228 = vpop.f32.mrb[0].mxu0
      %v2229 = vadd.f32 0.0, %v2228
      %v2230 = vpop.f32.mrb[0].mxu0
      %v2231 = vadd.f32 0.0, %v2230
      %v2232 = vpop.f32.mrb[0].mxu0
      %v2233 = vadd.f32 0.0, %v2232
      %v2234 = vpop.f32.mrb[0].mxu0
      %v2235 = vadd.f32 0.0, %v2234
      %2236 = vdwg.mxu0
      %2237 = vmatprep.subr.bf16.mxu0 %v2000
      %2238 = vmatpush1.bf16.msra.mxu0 %v1999
      %2239 = vmatprep.subr.bf16.mxu0 %v2008
      %2240 = vmatpush1.bf16.msra.mxu0 %v2007
      %2241 = vmatprep.subr.bf16.mxu0 %v2016
      %2242 = vmatpush1.bf16.msra.mxu0 %v2015
      %2243 = vmatprep.subr.bf16.mxu0 %v2024
      %2244 = vmatpush1.bf16.msra.mxu0 %v2023
      %2245 = vmatprep.subr.bf16.mxu0 %v2032
      %2246 = vmatpush1.bf16.msra.mxu0 %v2031
      %2247 = vmatprep.subr.bf16.mxu0 %v2040
      %2248 = vmatpush1.bf16.msra.mxu0 %v2039
      %2249 = vmatprep.subr.bf16.mxu0 %v2048
      %2250 = vmatpush1.bf16.msra.mxu0 %v2047
      %2251 = vmatprep.subr.bf16.mxu0 %v2056
      %2252 = vmatpush1.bf16.msra.mxu0 %v2055
      %2253 = vmatprep.subr.bf16.mxu0 %v2064
      %2254 = vmatpush1.bf16.msra.mxu0 %v2063
      %2255 = vmatprep.subr.bf16.mxu0 %v2072
      %2256 = vmatpush1.bf16.msra.mxu0 %v2071
      %2257 = vmatprep.subr.bf16.mxu0 %v2080
      %2258 = vmatpush1.bf16.msra.mxu0 %v2079
      %2259 = vmatprep.subr.bf16.mxu0 0
      %2260 = vmatpush1.bf16.msra.mxu0 0
      %2261 = vmatprep.subr.bf16.mxu0 0
      %2262 = vmatpush1.bf16.msra.mxu0 0
      %2263 = vmatprep.subr.bf16.mxu0 0
      %2264 = vmatpush1.bf16.msra.mxu0 0
      %2265 = vmatprep.subr.bf16.mxu0 0
      %2266 = vmatpush1.bf16.msra.mxu0 0
      %2267 = vmatprep.subr.bf16.mxu0 0
      %2268 = vmatpush1.bf16.msra.mxu0 0
      %2269 = vmatprep.mubr.bf16.mxu0 %v2106
      %2270 = vmatmul.mubr.bf16.gmra.mrb[0].mxu0 %v2099
      %v2271 = vpop.f32.mrb[0].mxu0
      %v2272 = vadd.f32 %v2229, %v2271
      %v2273 = vpop.f32.mrb[0].mxu0
      %v2274 = vadd.f32 %v2231, %v2273
      %v2275 = vpop.f32.mrb[0].mxu0
      %v2276 = vadd.f32 %v2233, %v2275
      %v2277 = vpop.f32.mrb[0].mxu0
      %v2278 = vadd.f32 %v2235, %v2277
      %2279 = vdwg.mxu0
      %2280 = vmatprep.subr.bf16.mxu0 %v1874
      %2281 = vmatpush1.bf16.msra.mxu0 %v1873
      %2282 = vmatprep.subr.bf16.mxu0 %v1882
      %2283 = vmatpush1.bf16.msra.mxu0 %v1881
      %2284 = vmatprep.subr.bf16.mxu0 %v1890
      %2285 = vmatpush1.bf16.msra.mxu0 %v1889
      %2286 = vmatprep.subr.bf16.mxu0 %v1898
      %2287 = vmatpush1.bf16.msra.mxu0 %v1897
      %2288 = vmatprep.subr.bf16.mxu0 %v1906
      %2289 = vmatpush1.bf16.msra.mxu0 %v1905
      %2290 = vmatprep.subr.bf16.mxu0 %v1914
      %2291 = vmatpush1.bf16.msra.mxu0 %v1913
      %2292 = vmatprep.subr.bf16.mxu0 %v1922
      %2293 = vmatpush1.bf16.msra.mxu0 %v1921
      %2294 = vmatprep.subr.bf16.mxu0 %v1930
      %2295 = vmatpush1.bf16.msra.mxu0 %v1929
      %2296 = vmatprep.subr.bf16.mxu0 %v1938
      %2297 = vmatpush1.bf16.msra.mxu0 %v1937
      %2298 = vmatprep.subr.bf16.mxu0 %v1946
      %2299 = vmatpush1.bf16.msra.mxu0 %v1945
      %2300 = vmatprep.subr.bf16.mxu0 %v1954
      %2301 = vmatpush1.bf16.msra.mxu0 %v1953
      %2302 = vmatprep.subr.bf16.mxu0 %v1962
      %2303 = vmatpush1.bf16.msra.mxu0 %v1961
      %2304 = vmatprep.subr.bf16.mxu0 %v1970
      %2305 = vmatpush1.bf16.msra.mxu0 %v1969
      %2306 = vmatprep.subr.bf16.mxu0 %v1978
      %2307 = vmatpush1.bf16.msra.mxu0 %v1977
      %2308 = vmatprep.subr.bf16.mxu0 %v1986
      %2309 = vmatpush1.bf16.msra.mxu0 %v1985
      %2310 = vmatprep.subr.bf16.mxu0 %v1994
      %2311 = vmatpush1.bf16.msra.mxu0 %v1993
      %2312 = vmatprep.mubr.bf16.mxu0 %v2098
      %2313 = vmatmul.mubr.bf16.gmra.mrb[0].mxu0 %v2097
      %v2314 = vpop.f32.mrb[0].mxu0
      %v2315 = vadd.f32 0.0, %v2314
      %v2316 = vpop.f32.mrb[0].mxu0
      %v2317 = vadd.f32 0.0, %v2316
      %v2318 = vpop.f32.mrb[0].mxu0
      %v2319 = vadd.f32 0.0, %v2318
      %v2320 = vpop.f32.mrb[0].mxu0
      %v2321 = vadd.f32 0.0, %v2320
      %2322 = vdwg.mxu0
      %2323 = vmatprep.subr.bf16.mxu0 %v2002
      %2324 = vmatpush1.bf16.msra.mxu0 %v2001
      %2325 = vmatprep.subr.bf16.mxu0 %v2010
      %2326 = vmatpush1.bf16.msra.mxu0 %v2009
      %2327 = vmatprep.subr.bf16.mxu0 %v2018
      %2328 = vmatpush1.bf16.msra.mxu0 %v2017
      %2329 = vmatprep.subr.bf16.mxu0 %v2026
      %2330 = vmatpush1.bf16.msra.mxu0 %v2025
      %2331 = vmatprep.subr.bf16.mxu0 %v2034
      %2332 = vmatpush1.bf16.msra.mxu0 %v2033
      %2333 = vmatprep.subr.bf16.mxu0 %v2042
      %2334 = vmatpush1.bf16.msra.mxu0 %v2041
      %2335 = vmatprep.subr.bf16.mxu0 %v2050
      %2336 = vmatpush1.bf16.msra.mxu0 %v2049
      %2337 = vmatprep.subr.bf16.mxu0 %v2058
      %2338 = vmatpush1.bf16.msra.mxu0 %v2057
      %2339 = vmatprep.subr.bf16.mxu0 %v2066
      %2340 = vmatpush1.bf16.msra.mxu0 %v2065
      %2341 = vmatprep.subr.bf16.mxu0 %v2074
      %2342 = vmatpush1.bf16.msra.mxu0 %v2073
      %2343 = vmatprep.subr.bf16.mxu0 %v2082
      %2344 = vmatpush1.bf16.msra.mxu0 %v2081
      %2345 = vmatprep.subr.bf16.mxu0 0
      %2346 = vmatpush1.bf16.msra.mxu0 0
      %2347 = vmatprep.subr.bf16.mxu0 0
      %2348 = vmatpush1.bf16.msra.mxu0 0
      %2349 = vmatprep.subr.bf16.mxu0 0
      %2350 = vmatpush1.bf16.msra.mxu0 0
      %2351 = vmatprep.subr.bf16.mxu0 0
      %2352 = vmatpush1.bf16.msra.mxu0 0
      %2353 = vmatprep.subr.bf16.mxu0 0
      %2354 = vmatpush1.bf16.msra.mxu0 0
      %2355 = vmatprep.mubr.bf16.mxu0 %v2106
      %2356 = vmatmul.mubr.bf16.gmra.mrb[0].mxu0 %v2099
      %v2357 = vpop.f32.mrb[0].mxu0
      %v2358 = vadd.f32 %v2315, %v2357
      %v2359 = vpop.f32.mrb[0].mxu0
      %v2360 = vadd.f32 %v2317, %v2359
      %v2361 = vpop.f32.mrb[0].mxu0
      %v2362 = vadd.f32 %v2319, %v2361
      %v2363 = vpop.f32.mrb[0].mxu0
      %v2364 = vadd.f32 %v2321, %v2363
      %2365 = vdwg.mxu0
      %2366 = vmatprep.subr.bf16.mxu0 %v1876
      %2367 = vmatpush1.bf16.msra.mxu0 %v1875
      %2368 = vmatprep.subr.bf16.mxu0 %v1884
      %2369 = vmatpush1.bf16.msra.mxu0 %v1883
      %2370 = vmatprep.subr.bf16.mxu0 %v1892
      %2371 = vmatpush1.bf16.msra.mxu0 %v1891
      %2372 = vmatprep.subr.bf16.mxu0 %v1900
      %2373 = vmatpush1.bf16.msra.mxu0 %v1899
      %2374 = vmatprep.subr.bf16.mxu0 %v1908
      %2375 = vmatpush1.bf16.msra.mxu0 %v1907
      %2376 = vmatprep.subr.bf16.mxu0 %v1916
      %2377 = vmatpush1.bf16.msra.mxu0 %v1915
      %2378 = vmatprep.subr.bf16.mxu0 %v1924
      %2379 = vmatpush1.bf16.msra.mxu0 %v1923
      %2380 = vmatprep.subr.bf16.mxu0 %v1932
      %2381 = vmatpush1.bf16.msra.mxu0 %v1931
      %2382 = vmatprep.subr.bf16.mxu0 %v1940
      %2383 = vmatpush1.bf16.msra.mxu0 %v1939
      %2384 = vmatprep.subr.bf16.mxu0 %v1948
      %2385 = vmatpush1.bf16.msra.mxu0 %v1947
      %2386 = vmatprep.subr.bf16.mxu0 %v1956
      %2387 = vmatpush1.bf16.msra.mxu0 %v1955
      %2388 = vmatprep.subr.bf16.mxu0 %v1964
      %2389 = vmatpush1.bf16.msra.mxu0 %v1963
      %2390 = vmatprep.subr.bf16.mxu0 %v1972
      %2391 = vmatpush1.bf16.msra.mxu0 %v1971
      %2392 = vmatprep.subr.bf16.mxu0 %v1980
      %2393 = vmatpush1.bf16.msra.mxu0 %v1979
      %2394 = vmatprep.subr.bf16.mxu0 %v1988
      %2395 = vmatpush1.bf16.msra.mxu0 %v1987
      %2396 = vmatprep.subr.bf16.mxu0 %v1996
      %2397 = vmatpush1.bf16.msra.mxu0 %v1995
      %2398 = vmatprep.mubr.bf16.mxu0 %v2098
      %2399 = vmatmul.mubr.bf16.gmra.mrb[0].mxu0 %v2097
      %v2400 = vpop.f32.mrb[0].mxu0
      %v2401 = vadd.f32 0.0, %v2400
      %v2402 = vpop.f32.mrb[0].mxu0
      %v2403 = vadd.f32 0.0, %v2402
      %v2404 = vpop.f32.mrb[0].mxu0
      %v2405 = vadd.f32 0.0, %v2404
      %v2406 = vpop.f32.mrb[0].mxu0
      %v2407 = vadd.f32 0.0, %v2406
      %2408 = vdwg.mxu0
      %2409 = vmatprep.subr.bf16.mxu0 %v2004
      %2410 = vmatpush1.bf16.msra.mxu0 %v2003
      %2411 = vmatprep.subr.bf16.mxu0 %v2012
      %2412 = vmatpush1.bf16.msra.mxu0 %v2011
      %2413 = vmatprep.subr.bf16.mxu0 %v2020
      %2414 = vmatpush1.bf16.msra.mxu0 %v2019
      %2415 = vmatprep.subr.bf16.mxu0 %v2028
      %2416 = vmatpush1.bf16.msra.mxu0 %v2027
      %2417 = vmatprep.subr.bf16.mxu0 %v2036
      %2418 = vmatpush1.bf16.msra.mxu0 %v2035
      %2419 = vmatprep.subr.bf16.mxu0 %v2044
      %2420 = vmatpush1.bf16.msra.mxu0 %v2043
      %2421 = vmatprep.subr.bf16.mxu0 %v2052
      %2422 = vmatpush1.bf16.msra.mxu0 %v2051
      %2423 = vmatprep.subr.bf16.mxu0 %v2060
      %2424 = vmatpush1.bf16.msra.mxu0 %v2059
      %2425 = vmatprep.subr.bf16.mxu0 %v2068
      %2426 = vmatpush1.bf16.msra.mxu0 %v2067
      %2427 = vmatprep.subr.bf16.mxu0 %v2076
      %2428 = vmatpush1.bf16.msra.mxu0 %v2075
      %2429 = vmatprep.subr.bf16.mxu0 %v2084
      %2430 = vmatpush1.bf16.msra.mxu0 %v2083
      %2431 = vmatprep.subr.bf16.mxu0 0
      %2432 = vmatpush1.bf16.msra.mxu0 0
      %2433 = vmatprep.subr.bf16.mxu0 0
      %2434 = vmatpush1.bf16.msra.mxu0 0
      %2435 = vmatprep.subr.bf16.mxu0 0
      %2436 = vmatpush1.bf16.msra.mxu0 0
      %2437 = vmatprep.subr.bf16.mxu0 0
      %2438 = vmatpush1.bf16.msra.mxu0 0
      %2439 = vmatprep.subr.bf16.mxu0 0
      %2440 = vmatpush1.bf16.msra.mxu0 0
      %2441 = vmatprep.mubr.bf16.mxu0 %v2106
      %2442 = vmatmul.mubr.bf16.gmra.mrb[0].mxu0 %v2099
      %v2443 = vpop.f32.mrb[0].mxu0
      %v2444 = vadd.f32 %v2401, %v2443
      %v2445 = vpop.f32.mrb[0].mxu0
      %v2446 = vadd.f32 %v2403, %v2445
      %v2447 = vpop.f32.mrb[0].mxu0
      %v2448 = vadd.f32 %v2405, %v2447
      %v2449 = vpop.f32.mrb[0].mxu0
      %v2450 = vadd.f32 %v2407, %v2449
      %2451 = vdwg.mxu0
      %v2453 = vlaneseq
      %v2454 = vshrl.u32 %v2453, 7
      %v2455 = vsub.s32 0, %v2454
      %v2456 = vrot.slane %v226, %v2455
      %v2457 = vlaneseq
      %v2458 = vshrl.u32 %v2457, 7
      %v2459 = vsub.s32 1, %v2458
      %v2460 = vrot.slane %v226, %v2459
      %v2461 = vlaneseq
      %v2462 = vshrl.u32 %v2461, 7
      %v2463 = vsub.s32 2, %v2462
      %v2464 = vrot.slane %v226, %v2463
      %v2465 = vlaneseq
      %v2466 = vshrl.u32 %v2465, 7
      %v2467 = vsub.s32 3, %v2466
      %v2468 = vrot.slane %v226, %v2467
      %v2469 = vlaneseq
      %v2470 = vshrl.u32 %v2469, 7
      %v2471 = vsub.s32 4, %v2470
      %v2472 = vrot.slane %v226, %v2471
      %v2473 = vlaneseq
      %v2474 = vshrl.u32 %v2473, 7
      %v2475 = vsub.s32 5, %v2474
      %v2476 = vrot.slane %v226, %v2475
      %v2477 = vlaneseq
      %v2478 = vshrl.u32 %v2477, 7
      %v2479 = vsub.s32 6, %v2478
      %v2480 = vrot.slane %v226, %v2479
      %v2481 = vlaneseq
      %v2482 = vshrl.u32 %v2481, 7
      %v2483 = vsub.s32 7, %v2482
      %v2484 = vrot.slane %v226, %v2483
      %v2493 = vmul.f32 %v2186, %v2456
      %v2494 = vmul.f32 %v2188, %v2460
      %v2495 = vmul.f32 %v2272, %v2464
      %v2496 = vmul.f32 %v2274, %v2468
      %v2497 = vmul.f32 %v2358, %v2472
      %v2498 = vmul.f32 %v2360, %v2476
      %v2499 = vmul.f32 %v2444, %v2480
      %v2500 = vmul.f32 %v2446, %v2484
      %v2501 = vmul.f32 %v2190, %v2456
      %v2502 = vmul.f32 %v2192, %v2460
      %v2503 = vmul.f32 %v2276, %v2464
      %v2504 = vmul.f32 %v2278, %v2468
      %v2505 = vmul.f32 %v2362, %v2472
      %v2506 = vmul.f32 %v2364, %v2476
      %v2507 = vmul.f32 %v2448, %v2480
      %v2508 = vmul.f32 %v2450, %v2484
      %v2509 = vadd.f32 %v2493, %v2494
      %v2510 = vadd.f32 %v2509, %v2495
      %v2511 = vadd.f32 %v2510, %v2496
      %v2512 = vadd.f32 %v2511, %v2497
      %v2513 = vadd.f32 %v2512, %v2498
      %v2514 = vadd.f32 %v2513, %v2499
      %v2515 = vadd.f32 %v2514, %v2500
      %2516 = vadd.xlane.f32.xlu0 %v2515
      %v2517 = vpop.xlane.xlu0 %2516
      %v2518 = vadd.f32 %v2501, %v2502
      %v2519 = vadd.f32 %v2518, %v2503
      %v2520 = vadd.f32 %v2519, %v2504
      %v2521 = vadd.f32 %v2520, %v2505
      %v2522 = vadd.f32 %v2521, %v2506
      %v2523 = vadd.f32 %v2522, %v2507
      %v2524 = vadd.f32 %v2523, %v2508
      %2525 = vadd.xlane.f32.xlu0 %v2524
      %v2526 = vpop.xlane.xlu0 %2525
      %v2527 = vmul.f32 %v2517, 0.001953125
      %v2528 = vmul.f32 %v2526, 0.001953125
      %v2529 = vmul.f32 %v2493, %v2186
      %v2530 = vmul.f32 %v2494, %v2188
      %v2531 = vmul.f32 %v2495, %v2272
      %v2532 = vmul.f32 %v2496, %v2274
      %v2533 = vmul.f32 %v2497, %v2358
      %v2534 = vmul.f32 %v2498, %v2360
      %v2535 = vmul.f32 %v2499, %v2444
      %v2536 = vmul.f32 %v2500, %v2446
      %v2537 = vmul.f32 %v2501, %v2190
      %v2538 = vmul.f32 %v2502, %v2192
      %v2539 = vmul.f32 %v2503, %v2276
      %v2540 = vmul.f32 %v2504, %v2278
      %v2541 = vmul.f32 %v2505, %v2362
      %v2542 = vmul.f32 %v2506, %v2364
      %v2543 = vmul.f32 %v2507, %v2448
      %v2544 = vmul.f32 %v2508, %v2450
      %v2545 = vadd.f32 %v2529, %v2530
      %v2546 = vadd.f32 %v2545, %v2531
      %v2547 = vadd.f32 %v2546, %v2532
      %v2548 = vadd.f32 %v2547, %v2533
      %v2549 = vadd.f32 %v2548, %v2534
      %v2550 = vadd.f32 %v2549, %v2535
      %v2551 = vadd.f32 %v2550, %v2536
      %2552 = vadd.xlane.f32.xlu0 %v2551
      %v2553 = vpop.xlane.xlu0 %2552
      %v2554 = vadd.f32 %v2537, %v2538
      %v2555 = vadd.f32 %v2554, %v2539
      %v2556 = vadd.f32 %v2555, %v2540
      %v2557 = vadd.f32 %v2556, %v2541
      %v2558 = vadd.f32 %v2557, %v2542
      %v2559 = vadd.f32 %v2558, %v2543
      %v2560 = vadd.f32 %v2559, %v2544
      %2561 = vadd.xlane.f32.xlu0 %v2560
      %v2562 = vpop.xlane.xlu0 %2561
      %v2563 = vmul.f32 %v2553, 0.001953125
      %v2564 = vmul.f32 %v2562, 0.001953125
      %v2565 = vmul.f32 %v2527, %v2527
      %v2566 = vmul.f32 %v2528, %v2528
      %v2567 = vsub.f32 %v2563, %v2565
      %v2568 = vsub.f32 %v2564, %v2566
      %v2569 = vld [vmem:[%s4] sm:$0xff]
      %v2570 = vld [vmem:[%s4 + $0x8] sm:$0xff]
      %v2571 = vmax.f32 %v2567, 0.0
      %v2572 = vmax.f32 %v2568, 0.0
      %v2573 = vadd.f32 %v2571, 1e-05
      %v2574 = vadd.f32 %v2572, 1e-05
      %v2575 = vrsqrt.pop %v2573
      %v2576 = vrsqrt.pop %v2574
      %v2577 = vmul.f32 %v2569, %v2575
      %v2578 = vmul.f32 %v2570, %v2576
      %v2579 = vmul.f32 %v2527, %v2577
      %v2580 = vmul.f32 %v2528, %v2578
      %2583 = vrot.lane.b32.xlu0 %v2579, 1
      %v2584 = vpop.permute.xlu0 %2583
      %2585 = vrot.lane.b32.xlu0 %v2580, 1
      %v2586 = vpop.permute.xlu0 %2585
      %v2589 = vsub.f32 %v2569, %v2584
      %v2590 = vsub.f32 %v2570, %v2586
      %2592 = vset.pattern.permute.xlu0 0
      %2593 = vperm.xlu0 %2592, %v2577
      %v2594 = vpop.permute.xlu0 %2593
      %2597 = vset.pattern.permute.xlu0 0
      %2598 = vperm.xlu0 %2597, %v2578
      %v2599 = vpop.permute.xlu0 %2598
      %v2601 = vmul.f32 %v2186, %v2594
      %v2602 = vmul.f32 %v2188, %v2594
      %v2603 = vmul.f32 %v2272, %v2594
      %v2604 = vmul.f32 %v2274, %v2594
      %v2605 = vmul.f32 %v2358, %v2594
      %v2606 = vmul.f32 %v2360, %v2594
      %v2607 = vmul.f32 %v2444, %v2594
      %v2608 = vmul.f32 %v2446, %v2594
      %v2609 = vmul.f32 %v2190, %v2599
      %v2610 = vmul.f32 %v2192, %v2599
      %v2611 = vmul.f32 %v2276, %v2599
      %v2612 = vmul.f32 %v2278, %v2599
      %v2613 = vmul.f32 %v2362, %v2599
      %v2614 = vmul.f32 %v2364, %v2599
      %v2615 = vmul.f32 %v2448, %v2599
      %v2616 = vmul.f32 %v2450, %v2599
      %2618 = vset.pattern.permute.xlu0 1
      %2619 = vperm.xlu0 %2618, %v2589
      %v2620 = vpop.permute.xlu0 %2619
      %2623 = vset.pattern.permute.xlu0 1
      %2624 = vperm.xlu0 %2623, %v2590
      %v2625 = vpop.permute.xlu0 %2624
      %v2627 = vadd.f32 %v2601, %v2620
      %v2628 = vadd.f32 %v2602, %v2620
      %v2629 = vadd.f32 %v2603, %v2620
      %v2630 = vadd.f32 %v2604, %v2620
      %v2631 = vadd.f32 %v2605, %v2620
      %v2632 = vadd.f32 %v2606, %v2620
      %v2633 = vadd.f32 %v2607, %v2620
      %v2634 = vadd.f32 %v2608, %v2620
      %v2635 = vadd.f32 %v2609, %v2625
      %v2636 = vadd.f32 %v2610, %v2625
      %v2637 = vadd.f32 %v2611, %v2625
      %v2638 = vadd.f32 %v2612, %v2625
      %v2639 = vadd.f32 %v2613, %v2625
      %v2640 = vadd.f32 %v2614, %v2625
      %v2641 = vadd.f32 %v2615, %v2625
      %v2642 = vadd.f32 %v2616, %v2625
      %vm2643 = vcmp.gt.f32.partialorder %v2627, 0.0
      %vm2644 = vcmp.gt.f32.partialorder %v2628, 0.0
      %vm2645 = vcmp.gt.f32.partialorder %v2629, 0.0
      %vm2646 = vcmp.gt.f32.partialorder %v2630, 0.0
      %vm2647 = vcmp.gt.f32.partialorder %v2631, 0.0
      %vm2648 = vcmp.gt.f32.partialorder %v2632, 0.0
      %vm2649 = vcmp.gt.f32.partialorder %v2633, 0.0
      %vm2650 = vcmp.gt.f32.partialorder %v2634, 0.0
      %vm2651 = vcmp.gt.f32.partialorder %v2635, 0.0
      %vm2652 = vcmp.gt.f32.partialorder %v2636, 0.0
      %vm2653 = vcmp.gt.f32.partialorder %v2637, 0.0
      %vm2654 = vcmp.gt.f32.partialorder %v2638, 0.0
      %vm2655 = vcmp.gt.f32.partialorder %v2639, 0.0
      %vm2656 = vcmp.gt.f32.partialorder %v2640, 0.0
      %vm2657 = vcmp.gt.f32.partialorder %v2641, 0.0
      %vm2658 = vcmp.gt.f32.partialorder %v2642, 0.0
      %v2659 = vmul.f32 %v2627, 0.01
      %v2660 = vmul.f32 %v2628, 0.01
      %v2661 = vmul.f32 %v2629, 0.01
      %v2662 = vmul.f32 %v2630, 0.01
      %v2663 = vmul.f32 %v2631, 0.01
      %v2664 = vmul.f32 %v2632, 0.01
      %v2665 = vmul.f32 %v2633, 0.01
      %v2666 = vmul.f32 %v2634, 0.01
      %v2667 = vmul.f32 %v2635, 0.01
      %v2668 = vmul.f32 %v2636, 0.01
      %v2669 = vmul.f32 %v2637, 0.01
      %v2670 = vmul.f32 %v2638, 0.01
      %v2671 = vmul.f32 %v2639, 0.01
      %v2672 = vmul.f32 %v2640, 0.01
      %v2673 = vmul.f32 %v2641, 0.01
      %v2674 = vmul.f32 %v2642, 0.01
      %v2675 = vsel %vm2643, %v2627, %v2659
      %v2676 = vsel %vm2644, %v2628, %v2660
      %v2677 = vsel %vm2645, %v2629, %v2661
      %v2678 = vsel %vm2646, %v2630, %v2662
      %v2679 = vsel %vm2647, %v2631, %v2663
      %v2680 = vsel %vm2648, %v2632, %v2664
      %v2681 = vsel %vm2649, %v2633, %v2665
      %v2682 = vsel %vm2650, %v2634, %v2666
      %v2683 = vsel %vm2651, %v2635, %v2667
      %v2684 = vsel %vm2652, %v2636, %v2668
      %v2685 = vsel %vm2653, %v2637, %v2669
      %v2686 = vsel %vm2654, %v2638, %v2670
      %v2687 = vsel %vm2655, %v2639, %v2671
      %v2688 = vsel %vm2656, %v2640, %v2672
      %v2689 = vsel %vm2657, %v2641, %v2673
      %v2690 = vsel %vm2658, %v2642, %v2674
      %v2691 = vmul.f32 %v2675, %v2456
      %v2692 = vmul.f32 %v2676, %v2460
      %v2693 = vmul.f32 %v2677, %v2464
      %v2694 = vmul.f32 %v2678, %v2468
      %v2695 = vmul.f32 %v2679, %v2472
      %v2696 = vmul.f32 %v2680, %v2476
      %v2697 = vmul.f32 %v2681, %v2480
      %v2698 = vmul.f32 %v2682, %v2484
      %v2699 = vmul.f32 %v2683, %v2456
      %v2700 = vmul.f32 %v2684, %v2460
      %v2701 = vmul.f32 %v2685, %v2464
      %v2702 = vmul.f32 %v2686, %v2468
      %v2703 = vmul.f32 %v2687, %v2472
      %v2704 = vmul.f32 %v2688, %v2476
      %v2705 = vmul.f32 %v2689, %v2480
      %v2706 = vmul.f32 %v2690, %v2484
      %2707 = vst [vmem:[#allocation4] sm:$0xff] 0
      %2708 = vst [vmem:[#allocation4 + $0x48] sm:$0xff] 0
      %v2709 = vpack.c.bf16 %v2699, %v2691
      %v2710 = vpack.c.bf16 %v2700, %v2692
      %v2711 = vpack.c.bf16 %v2701, %v2693
      %v2712 = vpack.c.bf16 %v2702, %v2694
      %v2713 = vpack.c.bf16 %v2703, %v2695
      %v2714 = vpack.c.bf16 %v2704, %v2696
      %v2715 = vpack.c.bf16 %v2705, %v2697
      %v2716 = vpack.c.bf16 %v2706, %v2698
      %2717 = vst [vmem:[#allocation4 + $0x8] sm:$0xff] %v2709
      %2718 = vst [vmem:[#allocation4 + $0x10] sm:$0xff] %v2710
      %2719 = vst [vmem:[#allocation4 + $0x18] sm:$0xff] %v2711
      %2720 = vst [vmem:[#allocation4 + $0x20] sm:$0xff] %v2712
      %2721 = vst [vmem:[#allocation4 + $0x28] sm:$0xff] %v2713
      %2722 = vst [vmem:[#allocation4 + $0x30] sm:$0xff] %v2714
      %2723 = vst [vmem:[#allocation4 + $0x38] sm:$0xff] %v2715
      %2724 = vst [vmem:[#allocation4 + $0x40] sm:$0xff] %v2716
      %v2725 = vld [vmem:[#allocation4] sm:$0xff]
      %v2726 = vld [vmem:[#allocation4 + $0x8] sm:$0xff]
      %v2727 = vld [vmem:[#allocation4 + $0x10] sm:$0xff]
      %v2728 = vld [vmem:[#allocation4 + $0x18] sm:$0xff]
      %v2729 = vld [vmem:[#allocation4 + $0x20] sm:$0xff]
      %v2730 = vld [vmem:[#allocation4 + $0x28] sm:$0xff]
      %v2731 = vld [vmem:[#allocation4 + $0x30] sm:$0xff]
      %v2732 = vld [vmem:[#allocation4 + $0x38] sm:$0xff]
      %v2733 = vld [vmem:[#allocation4 + $0x40] sm:$0xff]
      %2743 = vrot.lane.b32.xlu0 %v2725, 111
      %v2744 = vpop.permute.xlu0 %2743
      %2745 = vrot.lane.b32.xlu0 %v2726, 111
      %v2746 = vpop.permute.xlu0 %2745
      %2747 = vrot.lane.b32.xlu0 %v2727, 111
      %v2748 = vpop.permute.xlu0 %2747
      %2749 = vrot.lane.b32.xlu0 %v2728, 111
      %v2750 = vpop.permute.xlu0 %2749
      %2751 = vrot.lane.b32.xlu0 %v2729, 111
      %v2752 = vpop.permute.xlu0 %2751
      %2753 = vrot.lane.b32.xlu0 %v2730, 111
      %v2754 = vpop.permute.xlu0 %2753
      %2755 = vrot.lane.b32.xlu0 %v2731, 111
      %v2756 = vpop.permute.xlu0 %2755
      %2757 = vrot.lane.b32.xlu0 %v2732, 111
      %v2758 = vpop.permute.xlu0 %2757
      %2759 = vrot.lane.b32.xlu0 %v2733, 111
      %v2760 = vpop.permute.xlu0 %2759
      %v2761 = vsel %vm299, %v2744, %v2746
      %v2762 = vsel %vm299, %v2746, %v2748
      %v2763 = vsel %vm299, %v2748, %v2750
      %v2764 = vsel %vm299, %v2750, %v2752
      %v2765 = vsel %vm299, %v2752, %v2754
      %v2766 = vsel %vm299, %v2754, %v2756
      %v2767 = vsel %vm299, %v2756, %v2758
      %v2768 = vsel %vm299, %v2758, %v2760
      %2777 = vst [vmem:[#allocation2] sm:$0xff] %v2761
      %2778 = vst [vmem:[#allocation2 + $0x8] sm:$0xff] %v2762
      %2779 = vst [vmem:[#allocation2 + $0x10] sm:$0xff] %v2763
      %2780 = vst [vmem:[#allocation2 + $0x18] sm:$0xff] %v2764
      %2781 = vst [vmem:[#allocation2 + $0x20] sm:$0xff] %v2765
      %2782 = vst [vmem:[#allocation2 + $0x28] sm:$0xff] %v2766
      %2783 = vst [vmem:[#allocation2 + $0x30] sm:$0xff] %v2767
      %2784 = vst [vmem:[#allocation2 + $0x38] sm:$0xff] %v2768
      %v2785 = vld [vmem:[#allocation4] sm:$0xff]
      %v2786 = vld [vmem:[#allocation4 + $0x8] sm:$0xff]
      %v2787 = vld [vmem:[#allocation4 + $0x10] sm:$0xff]
      %v2788 = vld [vmem:[#allocation4 + $0x18] sm:$0xff]
      %v2789 = vld [vmem:[#allocation4 + $0x20] sm:$0xff]
      %v2790 = vld [vmem:[#allocation4 + $0x28] sm:$0xff]
      %v2791 = vld [vmem:[#allocation4 + $0x30] sm:$0xff]
      %v2792 = vld [vmem:[#allocation4 + $0x38] sm:$0xff]
      %v2793 = vld [vmem:[#allocation4 + $0x40] sm:$0xff]
      %2803 = vrot.lane.b32.xlu0 %v2785, 110
      %v2804 = vpop.permute.xlu0 %2803
      %2805 = vrot.lane.b32.xlu0 %v2786, 110
      %v2806 = vpop.permute.xlu0 %2805
      %2807 = vrot.lane.b32.xlu0 %v2787, 110
      %v2808 = vpop.permute.xlu0 %2807
      %2809 = vrot.lane.b32.xlu0 %v2788, 110
      %v2810 = vpop.permute.xlu0 %2809
      %2811 = vrot.lane.b32.xlu0 %v2789, 110
      %v2812 = vpop.permute.xlu0 %2811
      %2813 = vrot.lane.b32.xlu0 %v2790, 110
      %v2814 = vpop.permute.xlu0 %2813
      %2815 = vrot.lane.b32.xlu0 %v2791, 110
      %v2816 = vpop.permute.xlu0 %2815
      %2817 = vrot.lane.b32.xlu0 %v2792, 110
      %v2818 = vpop.permute.xlu0 %2817
      %2819 = vrot.lane.b32.xlu0 %v2793, 110
      %v2820 = vpop.permute.xlu0 %2819
      %v2821 = vsel %vm360, %v2804, %v2806
      %v2822 = vsel %vm360, %v2806, %v2808
      %v2823 = vsel %vm360, %v2808, %v2810
      %v2824 = vsel %vm360, %v2810, %v2812
      %v2825 = vsel %vm360, %v2812, %v2814
      %v2826 = vsel %vm360, %v2814, %v2816
      %v2827 = vsel %vm360, %v2816, %v2818
      %v2828 = vsel %vm360, %v2818, %v2820
      %2837 = vst [vmem:[#allocation2 + $0x40] sm:$0xff] %v2821
      %2838 = vst [vmem:[#allocation2 + $0x48] sm:$0xff] %v2822
      %2839 = vst [vmem:[#allocation2 + $0x50] sm:$0xff] %v2823
      %2840 = vst [vmem:[#allocation2 + $0x58] sm:$0xff] %v2824
      %2841 = vst [vmem:[#allocation2 + $0x60] sm:$0xff] %v2825
      %2842 = vst [vmem:[#allocation2 + $0x68] sm:$0xff] %v2826
      %2843 = vst [vmem:[#allocation2 + $0x70] sm:$0xff] %v2827
      %2844 = vst [vmem:[#allocation2 + $0x78] sm:$0xff] %v2828
      %v2845 = vld [vmem:[#allocation4] sm:$0xff]
      %v2846 = vld [vmem:[#allocation4 + $0x8] sm:$0xff]
      %v2847 = vld [vmem:[#allocation4 + $0x10] sm:$0xff]
      %v2848 = vld [vmem:[#allocation4 + $0x18] sm:$0xff]
      %v2849 = vld [vmem:[#allocation4 + $0x20] sm:$0xff]
      %v2850 = vld [vmem:[#allocation4 + $0x28] sm:$0xff]
      %v2851 = vld [vmem:[#allocation4 + $0x30] sm:$0xff]
      %v2852 = vld [vmem:[#allocation4 + $0x38] sm:$0xff]
      %v2853 = vld [vmem:[#allocation4 + $0x40] sm:$0xff]
      %2863 = vrot.lane.b32.xlu0 %v2845, 109
      %v2864 = vpop.permute.xlu0 %2863
      %2865 = vrot.lane.b32.xlu0 %v2846, 109
      %v2866 = vpop.permute.xlu0 %2865
      %2867 = vrot.lane.b32.xlu0 %v2847, 109
      %v2868 = vpop.permute.xlu0 %2867
      %2869 = vrot.lane.b32.xlu0 %v2848, 109
      %v2870 = vpop.permute.xlu0 %2869
      %2871 = vrot.lane.b32.xlu0 %v2849, 109
      %v2872 = vpop.permute.xlu0 %2871
      %2873 = vrot.lane.b32.xlu0 %v2850, 109
      %v2874 = vpop.permute.xlu0 %2873
      %2875 = vrot.lane.b32.xlu0 %v2851, 109
      %v2876 = vpop.permute.xlu0 %2875
      %2877 = vrot.lane.b32.xlu0 %v2852, 109
      %v2878 = vpop.permute.xlu0 %2877
      %2879 = vrot.lane.b32.xlu0 %v2853, 109
      %v2880 = vpop.permute.xlu0 %2879
      %v2881 = vsel %vm421, %v2864, %v2866
      %v2882 = vsel %vm421, %v2866, %v2868
      %v2883 = vsel %vm421, %v2868, %v2870
      %v2884 = vsel %vm421, %v2870, %v2872
      %v2885 = vsel %vm421, %v2872, %v2874
      %v2886 = vsel %vm421, %v2874, %v2876
      %v2887 = vsel %vm421, %v2876, %v2878
      %v2888 = vsel %vm421, %v2878, %v2880
      %2897 = vst [vmem:[#allocation2 + $0x80] sm:$0xff] %v2881
      %2898 = vst [vmem:[#allocation2 + $0x88] sm:$0xff] %v2882
      %2899 = vst [vmem:[#allocation2 + $0x90] sm:$0xff] %v2883
      %2900 = vst [vmem:[#allocation2 + $0x98] sm:$0xff] %v2884
      %2901 = vst [vmem:[#allocation2 + $0xa0] sm:$0xff] %v2885
      %2902 = vst [vmem:[#allocation2 + $0xa8] sm:$0xff] %v2886
      %2903 = vst [vmem:[#allocation2 + $0xb0] sm:$0xff] %v2887
      %2904 = vst [vmem:[#allocation2 + $0xb8] sm:$0xff] %v2888
      %v2905 = vld [vmem:[#allocation4] sm:$0xff]
      %v2906 = vld [vmem:[#allocation4 + $0x8] sm:$0xff]
      %v2907 = vld [vmem:[#allocation4 + $0x10] sm:$0xff]
      %v2908 = vld [vmem:[#allocation4 + $0x18] sm:$0xff]
      %v2909 = vld [vmem:[#allocation4 + $0x20] sm:$0xff]
      %v2910 = vld [vmem:[#allocation4 + $0x28] sm:$0xff]
      %v2911 = vld [vmem:[#allocation4 + $0x30] sm:$0xff]
      %v2912 = vld [vmem:[#allocation4 + $0x38] sm:$0xff]
      %v2913 = vld [vmem:[#allocation4 + $0x40] sm:$0xff]
      %2923 = vrot.lane.b32.xlu0 %v2905, 101
      %v2924 = vpop.permute.xlu0 %2923
      %2925 = vrot.lane.b32.xlu0 %v2906, 101
      %v2926 = vpop.permute.xlu0 %2925
      %2927 = vrot.lane.b32.xlu0 %v2907, 101
      %v2928 = vpop.permute.xlu0 %2927
      %2929 = vrot.lane.b32.xlu0 %v2908, 101
      %v2930 = vpop.permute.xlu0 %2929
      %2931 = vrot.lane.b32.xlu0 %v2909, 101
      %v2932 = vpop.permute.xlu0 %2931
      %2933 = vrot.lane.b32.xlu0 %v2910, 101
      %v2934 = vpop.permute.xlu0 %2933
      %2935 = vrot.lane.b32.xlu0 %v2911, 101
      %v2936 = vpop.permute.xlu0 %2935
      %2937 = vrot.lane.b32.xlu0 %v2912, 101
      %v2938 = vpop.permute.xlu0 %2937
      %2939 = vrot.lane.b32.xlu0 %v2913, 101
      %v2940 = vpop.permute.xlu0 %2939
      %v2941 = vsel %vm482, %v2924, %v2926
      %v2942 = vsel %vm482, %v2926, %v2928
      %v2943 = vsel %vm482, %v2928, %v2930
      %v2944 = vsel %vm482, %v2930, %v2932
      %v2945 = vsel %vm482, %v2932, %v2934
      %v2946 = vsel %vm482, %v2934, %v2936
      %v2947 = vsel %vm482, %v2936, %v2938
      %v2948 = vsel %vm482, %v2938, %v2940
      %2957 = vst [vmem:[#allocation2 + $0xc0] sm:$0xff] %v2941
      %2958 = vst [vmem:[#allocation2 + $0xc8] sm:$0xff] %v2942
      %2959 = vst [vmem:[#allocation2 + $0xd0] sm:$0xff] %v2943
      %2960 = vst [vmem:[#allocation2 + $0xd8] sm:$0xff] %v2944
      %2961 = vst [vmem:[#allocation2 + $0xe0] sm:$0xff] %v2945
      %2962 = vst [vmem:[#allocation2 + $0xe8] sm:$0xff] %v2946
      %2963 = vst [vmem:[#allocation2 + $0xf0] sm:$0xff] %v2947
      %2964 = vst [vmem:[#allocation2 + $0xf8] sm:$0xff] %v2948
      %v2965 = vld [vmem:[#allocation4] sm:$0xff]
      %v2966 = vld [vmem:[#allocation4 + $0x8] sm:$0xff]
      %v2967 = vld [vmem:[#allocation4 + $0x10] sm:$0xff]
      %v2968 = vld [vmem:[#allocation4 + $0x18] sm:$0xff]
      %v2969 = vld [vmem:[#allocation4 + $0x20] sm:$0xff]
      %v2970 = vld [vmem:[#allocation4 + $0x28] sm:$0xff]
      %v2971 = vld [vmem:[#allocation4 + $0x30] sm:$0xff]
      %v2972 = vld [vmem:[#allocation4 + $0x38] sm:$0xff]
      %v2973 = vld [vmem:[#allocation4 + $0x40] sm:$0xff]
      %2983 = vrot.lane.b32.xlu0 %v2965, 100
      %v2984 = vpop.permute.xlu0 %2983
      %2985 = vrot.lane.b32.xlu0 %v2966, 100
      %v2986 = vpop.permute.xlu0 %2985
      %2987 = vrot.lane.b32.xlu0 %v2967, 100
      %v2988 = vpop.permute.xlu0 %2987
      %2989 = vrot.lane.b32.xlu0 %v2968, 100
      %v2990 = vpop.permute.xlu0 %2989
      %2991 = vrot.lane.b32.xlu0 %v2969, 100
      %v2992 = vpop.permute.xlu0 %2991
      %2993 = vrot.lane.b32.xlu0 %v2970, 100
      %v2994 = vpop.permute.xlu0 %2993
      %2995 = vrot.lane.b32.xlu0 %v2971, 100
      %v2996 = vpop.permute.xlu0 %2995
      %2997 = vrot.lane.b32.xlu0 %v2972, 100
      %v2998 = vpop.permute.xlu0 %2997
      %2999 = vrot.lane.b32.xlu0 %v2973, 100
      %v3000 = vpop.permute.xlu0 %2999
      %v3001 = vsel %vm543, %v2984, %v2986
      %v3002 = vsel %vm543, %v2986, %v2988
      %v3003 = vsel %vm543, %v2988, %v2990
      %v3004 = vsel %vm543, %v2990, %v2992
      %v3005 = vsel %vm543, %v2992, %v2994
      %v3006 = vsel %vm543, %v2994, %v2996
      %v3007 = vsel %vm543, %v2996, %v2998
      %v3008 = vsel %vm543, %v2998, %v3000
      %3017 = vst [vmem:[#allocation2 + $0x100] sm:$0xff] %v3001
      %3018 = vst [vmem:[#allocation2 + $0x108] sm:$0xff] %v3002
      %3019 = vst [vmem:[#allocation2 + $0x110] sm:$0xff] %v3003
      %3020 = vst [vmem:[#allocation2 + $0x118] sm:$0xff] %v3004
      %3021 = vst [vmem:[#allocation2 + $0x120] sm:$0xff] %v3005
      %3022 = vst [vmem:[#allocation2 + $0x128] sm:$0xff] %v3006
      %3023 = vst [vmem:[#allocation2 + $0x130] sm:$0xff] %v3007
      %3024 = vst [vmem:[#allocation2 + $0x138] sm:$0xff] %v3008
      %v3025 = vld [vmem:[#allocation4] sm:$0xff]
      %v3026 = vld [vmem:[#allocation4 + $0x8] sm:$0xff]
      %v3027 = vld [vmem:[#allocation4 + $0x10] sm:$0xff]
      %v3028 = vld [vmem:[#allocation4 + $0x18] sm:$0xff]
      %v3029 = vld [vmem:[#allocation4 + $0x20] sm:$0xff]
      %v3030 = vld [vmem:[#allocation4 + $0x28] sm:$0xff]
      %v3031 = vld [vmem:[#allocation4 + $0x30] sm:$0xff]
      %v3032 = vld [vmem:[#allocation4 + $0x38] sm:$0xff]
      %v3033 = vld [vmem:[#allocation4 + $0x40] sm:$0xff]
      %3043 = vrot.lane.b32.xlu0 %v3025, 99
      %v3044 = vpop.permute.xlu0 %3043
      %3045 = vrot.lane.b32.xlu0 %v3026, 99
      %v3046 = vpop.permute.xlu0 %3045
      %3047 = vrot.lane.b32.xlu0 %v3027, 99
      %v3048 = vpop.permute.xlu0 %3047
      %3049 = vrot.lane.b32.xlu0 %v3028, 99
      %v3050 = vpop.permute.xlu0 %3049
      %3051 = vrot.lane.b32.xlu0 %v3029, 99
      %v3052 = vpop.permute.xlu0 %3051
      %3053 = vrot.lane.b32.xlu0 %v3030, 99
      %v3054 = vpop.permute.xlu0 %3053
      %3055 = vrot.lane.b32.xlu0 %v3031, 99
      %v3056 = vpop.permute.xlu0 %3055
      %3057 = vrot.lane.b32.xlu0 %v3032, 99
      %v3058 = vpop.permute.xlu0 %3057
      %3059 = vrot.lane.b32.xlu0 %v3033, 99
      %v3060 = vpop.permute.xlu0 %3059
      %v3061 = vsel %vm604, %v3044, %v3046
      %v3062 = vsel %vm604, %v3046, %v3048
      %v3063 = vsel %vm604, %v3048, %v3050
      %v3064 = vsel %vm604, %v3050, %v3052
      %v3065 = vsel %vm604, %v3052, %v3054
      %v3066 = vsel %vm604, %v3054, %v3056
      %v3067 = vsel %vm604, %v3056, %v3058
      %v3068 = vsel %vm604, %v3058, %v3060
      %3077 = vst [vmem:[#allocation2 + $0x140] sm:$0xff] %v3061
      %3078 = vst [vmem:[#allocation2 + $0x148] sm:$0xff] %v3062
      %3079 = vst [vmem:[#allocation2 + $0x150] sm:$0xff] %v3063
      %3080 = vst [vmem:[#allocation2 + $0x158] sm:$0xff] %v3064
      %3081 = vst [vmem:[#allocation2 + $0x160] sm:$0xff] %v3065
      %3082 = vst [vmem:[#allocation2 + $0x168] sm:$0xff] %v3066
      %3083 = vst [vmem:[#allocation2 + $0x170] sm:$0xff] %v3067
      %3084 = vst [vmem:[#allocation2 + $0x178] sm:$0xff] %v3068
      %v3085 = vld [vmem:[#allocation4] sm:$0xff]
      %v3086 = vld [vmem:[#allocation4 + $0x8] sm:$0xff]
      %v3087 = vld [vmem:[#allocation4 + $0x10] sm:$0xff]
      %v3088 = vld [vmem:[#allocation4 + $0x18] sm:$0xff]
      %v3089 = vld [vmem:[#allocation4 + $0x20] sm:$0xff]
      %v3090 = vld [vmem:[#allocation4 + $0x28] sm:$0xff]
      %v3091 = vld [vmem:[#allocation4 + $0x30] sm:$0xff]
      %v3092 = vld [vmem:[#allocation4 + $0x38] sm:$0xff]
      %v3093 = vld [vmem:[#allocation4 + $0x40] sm:$0xff]
      %3103 = vrot.lane.b32.xlu0 %v3085, 91
      %v3104 = vpop.permute.xlu0 %3103
      %3105 = vrot.lane.b32.xlu0 %v3086, 91
      %v3106 = vpop.permute.xlu0 %3105
      %3107 = vrot.lane.b32.xlu0 %v3087, 91
      %v3108 = vpop.permute.xlu0 %3107
      %3109 = vrot.lane.b32.xlu0 %v3088, 91
      %v3110 = vpop.permute.xlu0 %3109
      %3111 = vrot.lane.b32.xlu0 %v3089, 91
      %v3112 = vpop.permute.xlu0 %3111
      %3113 = vrot.lane.b32.xlu0 %v3090, 91
      %v3114 = vpop.permute.xlu0 %3113
      %3115 = vrot.lane.b32.xlu0 %v3091, 91
      %v3116 = vpop.permute.xlu0 %3115
      %3117 = vrot.lane.b32.xlu0 %v3092, 91
      %v3118 = vpop.permute.xlu0 %3117
      %3119 = vrot.lane.b32.xlu0 %v3093, 91
      %v3120 = vpop.permute.xlu0 %3119
      %v3121 = vsel %vm665, %v3104, %v3106
      %v3122 = vsel %vm665, %v3106, %v3108
      %v3123 = vsel %vm665, %v3108, %v3110
      %v3124 = vsel %vm665, %v3110, %v3112
      %v3125 = vsel %vm665, %v3112, %v3114
      %v3126 = vsel %vm665, %v3114, %v3116
      %v3127 = vsel %vm665, %v3116, %v3118
      %v3128 = vsel %vm665, %v3118, %v3120
      %3137 = vst [vmem:[#allocation2 + $0x180] sm:$0xff] %v3121
      %3138 = vst [vmem:[#allocation2 + $0x188] sm:$0xff] %v3122
      %3139 = vst [vmem:[#allocation2 + $0x190] sm:$0xff] %v3123
      %3140 = vst [vmem:[#allocation2 + $0x198] sm:$0xff] %v3124
      %3141 = vst [vmem:[#allocation2 + $0x1a0] sm:$0xff] %v3125
      %3142 = vst [vmem:[#allocation2 + $0x1a8] sm:$0xff] %v3126
      %3143 = vst [vmem:[#allocation2 + $0x1b0] sm:$0xff] %v3127
      %3144 = vst [vmem:[#allocation2 + $0x1b8] sm:$0xff] %v3128
      %v3145 = vld [vmem:[#allocation4] sm:$0xff]
      %v3146 = vld [vmem:[#allocation4 + $0x8] sm:$0xff]
      %v3147 = vld [vmem:[#allocation4 + $0x10] sm:$0xff]
      %v3148 = vld [vmem:[#allocation4 + $0x18] sm:$0xff]
      %v3149 = vld [vmem:[#allocation4 + $0x20] sm:$0xff]
      %v3150 = vld [vmem:[#allocation4 + $0x28] sm:$0xff]
      %v3151 = vld [vmem:[#allocation4 + $0x30] sm:$0xff]
      %v3152 = vld [vmem:[#allocation4 + $0x38] sm:$0xff]
      %v3153 = vld [vmem:[#allocation4 + $0x40] sm:$0xff]
      %3163 = vrot.lane.b32.xlu0 %v3145, 90
      %v3164 = vpop.permute.xlu0 %3163
      %3165 = vrot.lane.b32.xlu0 %v3146, 90
      %v3166 = vpop.permute.xlu0 %3165
      %3167 = vrot.lane.b32.xlu0 %v3147, 90
      %v3168 = vpop.permute.xlu0 %3167
      %3169 = vrot.lane.b32.xlu0 %v3148, 90
      %v3170 = vpop.permute.xlu0 %3169
      %3171 = vrot.lane.b32.xlu0 %v3149, 90
      %v3172 = vpop.permute.xlu0 %3171
      %3173 = vrot.lane.b32.xlu0 %v3150, 90
      %v3174 = vpop.permute.xlu0 %3173
      %3175 = vrot.lane.b32.xlu0 %v3151, 90
      %v3176 = vpop.permute.xlu0 %3175
      %3177 = vrot.lane.b32.xlu0 %v3152, 90
      %v3178 = vpop.permute.xlu0 %3177
      %3179 = vrot.lane.b32.xlu0 %v3153, 90
      %v3180 = vpop.permute.xlu0 %3179
      %v3181 = vsel %vm726, %v3164, %v3166
      %v3182 = vsel %vm726, %v3166, %v3168
      %v3183 = vsel %vm726, %v3168, %v3170
      %v3184 = vsel %vm726, %v3170, %v3172
      %v3185 = vsel %vm726, %v3172, %v3174
      %v3186 = vsel %vm726, %v3174, %v3176
      %v3187 = vsel %vm726, %v3176, %v3178
      %v3188 = vsel %vm726, %v3178, %v3180
      %3197 = vst [vmem:[#allocation2 + $0x1c0] sm:$0xff] %v3181
      %3198 = vst [vmem:[#allocation2 + $0x1c8] sm:$0xff] %v3182
      %3199 = vst [vmem:[#allocation2 + $0x1d0] sm:$0xff] %v3183
      %3200 = vst [vmem:[#allocation2 + $0x1d8] sm:$0xff] %v3184
      %3201 = vst [vmem:[#allocation2 + $0x1e0] sm:$0xff] %v3185
      %3202 = vst [vmem:[#allocation2 + $0x1e8] sm:$0xff] %v3186
      %3203 = vst [vmem:[#allocation2 + $0x1f0] sm:$0xff] %v3187
      %3204 = vst [vmem:[#allocation2 + $0x1f8] sm:$0xff] %v3188
      %v3205 = vld [vmem:[#allocation4] sm:$0xff]
      %v3206 = vld [vmem:[#allocation4 + $0x8] sm:$0xff]
      %v3207 = vld [vmem:[#allocation4 + $0x10] sm:$0xff]
      %v3208 = vld [vmem:[#allocation4 + $0x18] sm:$0xff]
      %v3209 = vld [vmem:[#allocation4 + $0x20] sm:$0xff]
      %v3210 = vld [vmem:[#allocation4 + $0x28] sm:$0xff]
      %v3211 = vld [vmem:[#allocation4 + $0x30] sm:$0xff]
      %v3212 = vld [vmem:[#allocation4 + $0x38] sm:$0xff]
      %v3213 = vld [vmem:[#allocation4 + $0x40] sm:$0xff]
      %3223 = vrot.lane.b32.xlu0 %v3205, 89
      %v3224 = vpop.permute.xlu0 %3223
      %3225 = vrot.lane.b32.xlu0 %v3206, 89
      %v3226 = vpop.permute.xlu0 %3225
      %3227 = vrot.lane.b32.xlu0 %v3207, 89
      %v3228 = vpop.permute.xlu0 %3227
      %3229 = vrot.lane.b32.xlu0 %v3208, 89
      %v3230 = vpop.permute.xlu0 %3229
      %3231 = vrot.lane.b32.xlu0 %v3209, 89
      %v3232 = vpop.permute.xlu0 %3231
      %3233 = vrot.lane.b32.xlu0 %v3210, 89
      %v3234 = vpop.permute.xlu0 %3233
      %3235 = vrot.lane.b32.xlu0 %v3211, 89
      %v3236 = vpop.permute.xlu0 %3235
      %3237 = vrot.lane.b32.xlu0 %v3212, 89
      %v3238 = vpop.permute.xlu0 %3237
      %3239 = vrot.lane.b32.xlu0 %v3213, 89
      %v3240 = vpop.permute.xlu0 %3239
      %v3241 = vsel %vm787, %v3224, %v3226
      %v3242 = vsel %vm787, %v3226, %v3228
      %v3243 = vsel %vm787, %v3228, %v3230
      %v3244 = vsel %vm787, %v3230, %v3232
      %v3245 = vsel %vm787, %v3232, %v3234
      %v3246 = vsel %vm787, %v3234, %v3236
      %v3247 = vsel %vm787, %v3236, %v3238
      %v3248 = vsel %vm787, %v3238, %v3240
      %3257 = vst [vmem:[#allocation2 + $0x200] sm:$0xff] %v3241
      %3258 = vst [vmem:[#allocation2 + $0x208] sm:$0xff] %v3242
      %3259 = vst [vmem:[#allocation2 + $0x210] sm:$0xff] %v3243
      %3260 = vst [vmem:[#allocation2 + $0x218] sm:$0xff] %v3244
      %3261 = vst [vmem:[#allocation2 + $0x220] sm:$0xff] %v3245
      %3262 = vst [vmem:[#allocation2 + $0x228] sm:$0xff] %v3246
      %3263 = vst [vmem:[#allocation2 + $0x230] sm:$0xff] %v3247
      %3264 = vst [vmem:[#allocation2 + $0x238] sm:$0xff] %v3248
      %v3265 = vld [vmem:[#allocation4] sm:$0xff]
      %v3266 = vld [vmem:[#allocation4 + $0x8] sm:$0xff]
      %v3267 = vld [vmem:[#allocation4 + $0x10] sm:$0xff]
      %v3268 = vld [vmem:[#allocation4 + $0x18] sm:$0xff]
      %v3269 = vld [vmem:[#allocation4 + $0x20] sm:$0xff]
      %v3270 = vld [vmem:[#allocation4 + $0x28] sm:$0xff]
      %v3271 = vld [vmem:[#allocation4 + $0x30] sm:$0xff]
      %v3272 = vld [vmem:[#allocation4 + $0x38] sm:$0xff]
      %v3273 = vld [vmem:[#allocation4 + $0x40] sm:$0xff]
      %3283 = vrot.lane.b32.xlu0 %v3265, 11
      %v3284 = vpop.permute.xlu0 %3283
      %3285 = vrot.lane.b32.xlu0 %v3266, 11
      %v3286 = vpop.permute.xlu0 %3285
      %3287 = vrot.lane.b32.xlu0 %v3267, 11
      %v3288 = vpop.permute.xlu0 %3287
      %3289 = vrot.lane.b32.xlu0 %v3268, 11
      %v3290 = vpop.permute.xlu0 %3289
      %3291 = vrot.lane.b32.xlu0 %v3269, 11
      %v3292 = vpop.permute.xlu0 %3291
      %3293 = vrot.lane.b32.xlu0 %v3270, 11
      %v3294 = vpop.permute.xlu0 %3293
      %3295 = vrot.lane.b32.xlu0 %v3271, 11
      %v3296 = vpop.permute.xlu0 %3295
      %3297 = vrot.lane.b32.xlu0 %v3272, 11
      %v3298 = vpop.permute.xlu0 %3297
      %3299 = vrot.lane.b32.xlu0 %v3273, 11
      %v3300 = vpop.permute.xlu0 %3299
      %v3301 = vsel %vm848, %v3284, %v3286
      %v3302 = vsel %vm848, %v3286, %v3288
      %v3303 = vsel %vm848, %v3288, %v3290
      %v3304 = vsel %vm848, %v3290, %v3292
      %v3305 = vsel %vm848, %v3292, %v3294
      %v3306 = vsel %vm848, %v3294, %v3296
      %v3307 = vsel %vm848, %v3296, %v3298
      %v3308 = vsel %vm848, %v3298, %v3300
      %3317 = vst [vmem:[#allocation2 + $0x240] sm:$0xff] %v3301
      %3318 = vst [vmem:[#allocation2 + $0x248] sm:$0xff] %v3302
      %3319 = vst [vmem:[#allocation2 + $0x250] sm:$0xff] %v3303
      %3320 = vst [vmem:[#allocation2 + $0x258] sm:$0xff] %v3304
      %3321 = vst [vmem:[#allocation2 + $0x260] sm:$0xff] %v3305
      %3322 = vst [vmem:[#allocation2 + $0x268] sm:$0xff] %v3306
      %3323 = vst [vmem:[#allocation2 + $0x270] sm:$0xff] %v3307
      %3324 = vst [vmem:[#allocation2 + $0x278] sm:$0xff] %v3308
      %v3325 = vld [vmem:[#allocation4] sm:$0xff]
      %v3326 = vld [vmem:[#allocation4 + $0x8] sm:$0xff]
      %v3327 = vld [vmem:[#allocation4 + $0x10] sm:$0xff]
      %v3328 = vld [vmem:[#allocation4 + $0x18] sm:$0xff]
      %v3329 = vld [vmem:[#allocation4 + $0x20] sm:$0xff]
      %v3330 = vld [vmem:[#allocation4 + $0x28] sm:$0xff]
      %v3331 = vld [vmem:[#allocation4 + $0x30] sm:$0xff]
      %v3332 = vld [vmem:[#allocation4 + $0x38] sm:$0xff]
      %v3333 = vld [vmem:[#allocation4 + $0x40] sm:$0xff]
      %3343 = vrot.lane.b32.xlu0 %v3325, 10
      %v3344 = vpop.permute.xlu0 %3343
      %3345 = vrot.lane.b32.xlu0 %v3326, 10
      %v3346 = vpop.permute.xlu0 %3345
      %3347 = vrot.lane.b32.xlu0 %v3327, 10
      %v3348 = vpop.permute.xlu0 %3347
      %3349 = vrot.lane.b32.xlu0 %v3328, 10
      %v3350 = vpop.permute.xlu0 %3349
      %3351 = vrot.lane.b32.xlu0 %v3329, 10
      %v3352 = vpop.permute.xlu0 %3351
      %3353 = vrot.lane.b32.xlu0 %v3330, 10
      %v3354 = vpop.permute.xlu0 %3353
      %3355 = vrot.lane.b32.xlu0 %v3331, 10
      %v3356 = vpop.permute.xlu0 %3355
      %3357 = vrot.lane.b32.xlu0 %v3332, 10
      %v3358 = vpop.permute.xlu0 %3357
      %3359 = vrot.lane.b32.xlu0 %v3333, 10
      %v3360 = vpop.permute.xlu0 %3359
      %v3361 = vsel %vm909, %v3344, %v3346
      %v3362 = vsel %vm909, %v3346, %v3348
      %v3363 = vsel %vm909, %v3348, %v3350
      %v3364 = vsel %vm909, %v3350, %v3352
      %v3365 = vsel %vm909, %v3352, %v3354
      %v3366 = vsel %vm909, %v3354, %v3356
      %v3367 = vsel %vm909, %v3356, %v3358
      %v3368 = vsel %vm909, %v3358, %v3360
      %3377 = vst [vmem:[#allocation2 + $0x280] sm:$0xff] %v3361
      %3378 = vst [vmem:[#allocation2 + $0x288] sm:$0xff] %v3362
      %3379 = vst [vmem:[#allocation2 + $0x290] sm:$0xff] %v3363
      %3380 = vst [vmem:[#allocation2 + $0x298] sm:$0xff] %v3364
      %3381 = vst [vmem:[#allocation2 + $0x2a0] sm:$0xff] %v3365
      %3382 = vst [vmem:[#allocation2 + $0x2a8] sm:$0xff] %v3366
      %3383 = vst [vmem:[#allocation2 + $0x2b0] sm:$0xff] %v3367
      %3384 = vst [vmem:[#allocation2 + $0x2b8] sm:$0xff] %v3368
      %v3385 = vld [vmem:[#allocation4] sm:$0xff]
      %v3386 = vld [vmem:[#allocation4 + $0x8] sm:$0xff]
      %v3387 = vld [vmem:[#allocation4 + $0x10] sm:$0xff]
      %v3388 = vld [vmem:[#allocation4 + $0x18] sm:$0xff]
      %v3389 = vld [vmem:[#allocation4 + $0x20] sm:$0xff]
      %v3390 = vld [vmem:[#allocation4 + $0x28] sm:$0xff]
      %v3391 = vld [vmem:[#allocation4 + $0x30] sm:$0xff]
      %v3392 = vld [vmem:[#allocation4 + $0x38] sm:$0xff]
      %v3393 = vld [vmem:[#allocation4 + $0x40] sm:$0xff]
      %3403 = vrot.lane.b32.xlu0 %v3385, 9
      %v3404 = vpop.permute.xlu0 %3403
      %3405 = vrot.lane.b32.xlu0 %v3386, 9
      %v3406 = vpop.permute.xlu0 %3405
      %3407 = vrot.lane.b32.xlu0 %v3387, 9
      %v3408 = vpop.permute.xlu0 %3407
      %3409 = vrot.lane.b32.xlu0 %v3388, 9
      %v3410 = vpop.permute.xlu0 %3409
      %3411 = vrot.lane.b32.xlu0 %v3389, 9
      %v3412 = vpop.permute.xlu0 %3411
      %3413 = vrot.lane.b32.xlu0 %v3390, 9
      %v3414 = vpop.permute.xlu0 %3413
      %3415 = vrot.lane.b32.xlu0 %v3391, 9
      %v3416 = vpop.permute.xlu0 %3415
      %3417 = vrot.lane.b32.xlu0 %v3392, 9
      %v3418 = vpop.permute.xlu0 %3417
      %3419 = vrot.lane.b32.xlu0 %v3393, 9
      %v3420 = vpop.permute.xlu0 %3419
      %v3421 = vsel %vm970, %v3404, %v3406
      %v3422 = vsel %vm970, %v3406, %v3408
      %v3423 = vsel %vm970, %v3408, %v3410
      %v3424 = vsel %vm970, %v3410, %v3412
      %v3425 = vsel %vm970, %v3412, %v3414
      %v3426 = vsel %vm970, %v3414, %v3416
      %v3427 = vsel %vm970, %v3416, %v3418
      %v3428 = vsel %vm970, %v3418, %v3420
      %3437 = vst [vmem:[#allocation2 + $0x2c0] sm:$0xff] %v3421
      %3438 = vst [vmem:[#allocation2 + $0x2c8] sm:$0xff] %v3422
      %3439 = vst [vmem:[#allocation2 + $0x2d0] sm:$0xff] %v3423
      %3440 = vst [vmem:[#allocation2 + $0x2d8] sm:$0xff] %v3424
      %3441 = vst [vmem:[#allocation2 + $0x2e0] sm:$0xff] %v3425
      %3442 = vst [vmem:[#allocation2 + $0x2e8] sm:$0xff] %v3426
      %3443 = vst [vmem:[#allocation2 + $0x2f0] sm:$0xff] %v3427
      %3444 = vst [vmem:[#allocation2 + $0x2f8] sm:$0xff] %v3428
      %v3445 = vld [vmem:[#allocation4] sm:$0xff]
      %v3446 = vld [vmem:[#allocation4 + $0x8] sm:$0xff]
      %v3447 = vld [vmem:[#allocation4 + $0x10] sm:$0xff]
      %v3448 = vld [vmem:[#allocation4 + $0x18] sm:$0xff]
      %v3449 = vld [vmem:[#allocation4 + $0x20] sm:$0xff]
      %v3450 = vld [vmem:[#allocation4 + $0x28] sm:$0xff]
      %v3451 = vld [vmem:[#allocation4 + $0x30] sm:$0xff]
      %v3452 = vld [vmem:[#allocation4 + $0x38] sm:$0xff]
      %v3453 = vld [vmem:[#allocation4 + $0x40] sm:$0xff]
      %3463 = vrot.lane.b32.xlu0 %v3445, 1
      %v3464 = vpop.permute.xlu0 %3463
      %3465 = vrot.lane.b32.xlu0 %v3446, 1
      %v3466 = vpop.permute.xlu0 %3465
      %3467 = vrot.lane.b32.xlu0 %v3447, 1
      %v3468 = vpop.permute.xlu0 %3467
      %3469 = vrot.lane.b32.xlu0 %v3448, 1
      %v3470 = vpop.permute.xlu0 %3469
      %3471 = vrot.lane.b32.xlu0 %v3449, 1
      %v3472 = vpop.permute.xlu0 %3471
      %3473 = vrot.lane.b32.xlu0 %v3450, 1
      %v3474 = vpop.permute.xlu0 %3473
      %3475 = vrot.lane.b32.xlu0 %v3451, 1
      %v3476 = vpop.permute.xlu0 %3475
      %3477 = vrot.lane.b32.xlu0 %v3452, 1
      %v3478 = vpop.permute.xlu0 %3477
      %3479 = vrot.lane.b32.xlu0 %v3453, 1
      %v3480 = vpop.permute.xlu0 %3479
      %v3481 = vsel %vm1031, %v3464, %v3466
      %v3482 = vsel %vm1031, %v3466, %v3468
      %v3483 = vsel %vm1031, %v3468, %v3470
      %v3484 = vsel %vm1031, %v3470, %v3472
      %v3485 = vsel %vm1031, %v3472, %v3474
      %v3486 = vsel %vm1031, %v3474, %v3476
      %v3487 = vsel %vm1031, %v3476, %v3478
      %v3488 = vsel %vm1031, %v3478, %v3480
      %3497 = vst [vmem:[#allocation2 + $0x300] sm:$0xff] %v3481
      %3498 = vst [vmem:[#allocation2 + $0x308] sm:$0xff] %v3482
      %3499 = vst [vmem:[#allocation2 + $0x310] sm:$0xff] %v3483
      %3500 = vst [vmem:[#allocation2 + $0x318] sm:$0xff] %v3484
      %3501 = vst [vmem:[#allocation2 + $0x320] sm:$0xff] %v3485
      %3502 = vst [vmem:[#allocation2 + $0x328] sm:$0xff] %v3486
      %3503 = vst [vmem:[#allocation2 + $0x330] sm:$0xff] %v3487
      %3504 = vst [vmem:[#allocation2 + $0x338] sm:$0xff] %v3488
      %v3505 = vld [vmem:[#allocation4 + $0x8] sm:$0xff]
      %v3506 = vld [vmem:[#allocation4 + $0x10] sm:$0xff]
      %v3507 = vld [vmem:[#allocation4 + $0x18] sm:$0xff]
      %v3508 = vld [vmem:[#allocation4 + $0x20] sm:$0xff]
      %v3509 = vld [vmem:[#allocation4 + $0x28] sm:$0xff]
      %v3510 = vld [vmem:[#allocation4 + $0x30] sm:$0xff]
      %v3511 = vld [vmem:[#allocation4 + $0x38] sm:$0xff]
      %v3512 = vld [vmem:[#allocation4 + $0x40] sm:$0xff]
      %3513 = vst [vmem:[#allocation2 + $0x340] sm:$0xff] %v3505
      %3514 = vst [vmem:[#allocation2 + $0x348] sm:$0xff] %v3506
      %3515 = vst [vmem:[#allocation2 + $0x350] sm:$0xff] %v3507
      %3516 = vst [vmem:[#allocation2 + $0x358] sm:$0xff] %v3508
      %3517 = vst [vmem:[#allocation2 + $0x360] sm:$0xff] %v3509
      %3518 = vst [vmem:[#allocation2 + $0x368] sm:$0xff] %v3510
      %3519 = vst [vmem:[#allocation2 + $0x370] sm:$0xff] %v3511
      %3520 = vst [vmem:[#allocation2 + $0x378] sm:$0xff] %v3512
      %v3521 = vld [vmem:[#allocation4 + $0x8] sm:$0xff]
      %v3522 = vld [vmem:[#allocation4 + $0x10] sm:$0xff]
      %v3523 = vld [vmem:[#allocation4 + $0x18] sm:$0xff]
      %v3524 = vld [vmem:[#allocation4 + $0x20] sm:$0xff]
      %v3525 = vld [vmem:[#allocation4 + $0x28] sm:$0xff]
      %v3526 = vld [vmem:[#allocation4 + $0x30] sm:$0xff]
      %v3527 = vld [vmem:[#allocation4 + $0x38] sm:$0xff]
      %v3528 = vld [vmem:[#allocation4 + $0x40] sm:$0xff]
      %v3529 = vld [vmem:[#allocation4 + $0x48] sm:$0xff]
      %3539 = vrot.lane.b32.xlu0 %v3521, 127
      %v3540 = vpop.permute.xlu0 %3539
      %3541 = vrot.lane.b32.xlu0 %v3522, 127
      %v3542 = vpop.permute.xlu0 %3541
      %3543 = vrot.lane.b32.xlu0 %v3523, 127
      %v3544 = vpop.permute.xlu0 %3543
      %3545 = vrot.lane.b32.xlu0 %v3524, 127
      %v3546 = vpop.permute.xlu0 %3545
      %3547 = vrot.lane.b32.xlu0 %v3525, 127
      %v3548 = vpop.permute.xlu0 %3547
      %3549 = vrot.lane.b32.xlu0 %v3526, 127
      %v3550 = vpop.permute.xlu0 %3549
      %3551 = vrot.lane.b32.xlu0 %v3527, 127
      %v3552 = vpop.permute.xlu0 %3551
      %3553 = vrot.lane.b32.xlu0 %v3528, 127
      %v3554 = vpop.permute.xlu0 %3553
      %3555 = vrot.lane.b32.xlu0 %v3529, 127
      %v3556 = vpop.permute.xlu0 %3555
      %v3557 = vsel %vm1108, %v3540, %v3542
      %v3558 = vsel %vm1108, %v3542, %v3544
      %v3559 = vsel %vm1108, %v3544, %v3546
      %v3560 = vsel %vm1108, %v3546, %v3548
      %v3561 = vsel %vm1108, %v3548, %v3550
      %v3562 = vsel %vm1108, %v3550, %v3552
      %v3563 = vsel %vm1108, %v3552, %v3554
      %v3564 = vsel %vm1108, %v3554, %v3556
      %3573 = vst [vmem:[#allocation2 + $0x380] sm:$0xff] %v3557
      %3574 = vst [vmem:[#allocation2 + $0x388] sm:$0xff] %v3558
      %3575 = vst [vmem:[#allocation2 + $0x390] sm:$0xff] %v3559
      %3576 = vst [vmem:[#allocation2 + $0x398] sm:$0xff] %v3560
      %3577 = vst [vmem:[#allocation2 + $0x3a0] sm:$0xff] %v3561
      %3578 = vst [vmem:[#allocation2 + $0x3a8] sm:$0xff] %v3562
      %3579 = vst [vmem:[#allocation2 + $0x3b0] sm:$0xff] %v3563
      %3580 = vst [vmem:[#allocation2 + $0x3b8] sm:$0xff] %v3564
      %v3581 = vld [vmem:[#allocation4 + $0x8] sm:$0xff]
      %v3582 = vld [vmem:[#allocation4 + $0x10] sm:$0xff]
      %v3583 = vld [vmem:[#allocation4 + $0x18] sm:$0xff]
      %v3584 = vld [vmem:[#allocation4 + $0x20] sm:$0xff]
      %v3585 = vld [vmem:[#allocation4 + $0x28] sm:$0xff]
      %v3586 = vld [vmem:[#allocation4 + $0x30] sm:$0xff]
      %v3587 = vld [vmem:[#allocation4 + $0x38] sm:$0xff]
      %v3588 = vld [vmem:[#allocation4 + $0x40] sm:$0xff]
      %v3589 = vld [vmem:[#allocation4 + $0x48] sm:$0xff]
      %3599 = vrot.lane.b32.xlu0 %v3581, 119
      %v3600 = vpop.permute.xlu0 %3599
      %3601 = vrot.lane.b32.xlu0 %v3582, 119
      %v3602 = vpop.permute.xlu0 %3601
      %3603 = vrot.lane.b32.xlu0 %v3583, 119
      %v3604 = vpop.permute.xlu0 %3603
      %3605 = vrot.lane.b32.xlu0 %v3584, 119
      %v3606 = vpop.permute.xlu0 %3605
      %3607 = vrot.lane.b32.xlu0 %v3585, 119
      %v3608 = vpop.permute.xlu0 %3607
      %3609 = vrot.lane.b32.xlu0 %v3586, 119
      %v3610 = vpop.permute.xlu0 %3609
      %3611 = vrot.lane.b32.xlu0 %v3587, 119
      %v3612 = vpop.permute.xlu0 %3611
      %3613 = vrot.lane.b32.xlu0 %v3588, 119
      %v3614 = vpop.permute.xlu0 %3613
      %3615 = vrot.lane.b32.xlu0 %v3589, 119
      %v3616 = vpop.permute.xlu0 %3615
      %v3617 = vsel %vm1169, %v3600, %v3602
      %v3618 = vsel %vm1169, %v3602, %v3604
      %v3619 = vsel %vm1169, %v3604, %v3606
      %v3620 = vsel %vm1169, %v3606, %v3608
      %v3621 = vsel %vm1169, %v3608, %v3610
      %v3622 = vsel %vm1169, %v3610, %v3612
      %v3623 = vsel %vm1169, %v3612, %v3614
      %v3624 = vsel %vm1169, %v3614, %v3616
      %3633 = vst [vmem:[#allocation2 + $0x3c0] sm:$0xff] %v3617
      %3634 = vst [vmem:[#allocation2 + $0x3c8] sm:$0xff] %v3618
      %3635 = vst [vmem:[#allocation2 + $0x3d0] sm:$0xff] %v3619
      %3636 = vst [vmem:[#allocation2 + $0x3d8] sm:$0xff] %v3620
      %3637 = vst [vmem:[#allocation2 + $0x3e0] sm:$0xff] %v3621
      %3638 = vst [vmem:[#allocation2 + $0x3e8] sm:$0xff] %v3622
      %3639 = vst [vmem:[#allocation2 + $0x3f0] sm:$0xff] %v3623
      %3640 = vst [vmem:[#allocation2 + $0x3f8] sm:$0xff] %v3624
      %v3641 = vld [vmem:[#allocation4 + $0x8] sm:$0xff]
      %v3642 = vld [vmem:[#allocation4 + $0x10] sm:$0xff]
      %v3643 = vld [vmem:[#allocation4 + $0x18] sm:$0xff]
      %v3644 = vld [vmem:[#allocation4 + $0x20] sm:$0xff]
      %v3645 = vld [vmem:[#allocation4 + $0x28] sm:$0xff]
      %v3646 = vld [vmem:[#allocation4 + $0x30] sm:$0xff]
      %v3647 = vld [vmem:[#allocation4 + $0x38] sm:$0xff]
      %v3648 = vld [vmem:[#allocation4 + $0x40] sm:$0xff]
      %v3649 = vld [vmem:[#allocation4 + $0x48] sm:$0xff]
      %3659 = vrot.lane.b32.xlu0 %v3641, 118
      %v3660 = vpop.permute.xlu0 %3659
      %3661 = vrot.lane.b32.xlu0 %v3642, 118
      %v3662 = vpop.permute.xlu0 %3661
      %3663 = vrot.lane.b32.xlu0 %v3643, 118
      %v3664 = vpop.permute.xlu0 %3663
      %3665 = vrot.lane.b32.xlu0 %v3644, 118
      %v3666 = vpop.permute.xlu0 %3665
      %3667 = vrot.lane.b32.xlu0 %v3645, 118
      %v3668 = vpop.permute.xlu0 %3667
      %3669 = vrot.lane.b32.xlu0 %v3646, 118
      %v3670 = vpop.permute.xlu0 %3669
      %3671 = vrot.lane.b32.xlu0 %v3647, 118
      %v3672 = vpop.permute.xlu0 %3671
      %3673 = vrot.lane.b32.xlu0 %v3648, 118
      %v3674 = vpop.permute.xlu0 %3673
      %3675 = vrot.lane.b32.xlu0 %v3649, 118
      %v3676 = vpop.permute.xlu0 %3675
      %v3677 = vsel %vm1230, %v3660, %v3662
      %v3678 = vsel %vm1230, %v3662, %v3664
      %v3679 = vsel %vm1230, %v3664, %v3666
      %v3680 = vsel %vm1230, %v3666, %v3668
      %v3681 = vsel %vm1230, %v3668, %v3670
      %v3682 = vsel %vm1230, %v3670, %v3672
      %v3683 = vsel %vm1230, %v3672, %v3674
      %v3684 = vsel %vm1230, %v3674, %v3676
      %3693 = vst [vmem:[#allocation2 + $0x400] sm:$0xff] %v3677
      %3694 = vst [vmem:[#allocation2 + $0x408] sm:$0xff] %v3678
      %3695 = vst [vmem:[#allocation2 + $0x410] sm:$0xff] %v3679
      %3696 = vst [vmem:[#allocation2 + $0x418] sm:$0xff] %v3680
      %3697 = vst [vmem:[#allocation2 + $0x420] sm:$0xff] %v3681
      %3698 = vst [vmem:[#allocation2 + $0x428] sm:$0xff] %v3682
      %3699 = vst [vmem:[#allocation2 + $0x430] sm:$0xff] %v3683
      %3700 = vst [vmem:[#allocation2 + $0x438] sm:$0xff] %v3684
      %v3701 = vld [vmem:[#allocation4 + $0x8] sm:$0xff]
      %v3702 = vld [vmem:[#allocation4 + $0x10] sm:$0xff]
      %v3703 = vld [vmem:[#allocation4 + $0x18] sm:$0xff]
      %v3704 = vld [vmem:[#allocation4 + $0x20] sm:$0xff]
      %v3705 = vld [vmem:[#allocation4 + $0x28] sm:$0xff]
      %v3706 = vld [vmem:[#allocation4 + $0x30] sm:$0xff]
      %v3707 = vld [vmem:[#allocation4 + $0x38] sm:$0xff]
      %v3708 = vld [vmem:[#allocation4 + $0x40] sm:$0xff]
      %v3709 = vld [vmem:[#allocation4 + $0x48] sm:$0xff]
      %3719 = vrot.lane.b32.xlu0 %v3701, 117
      %v3720 = vpop.permute.xlu0 %3719
      %3721 = vrot.lane.b32.xlu0 %v3702, 117
      %v3722 = vpop.permute.xlu0 %3721
      %3723 = vrot.lane.b32.xlu0 %v3703, 117
      %v3724 = vpop.permute.xlu0 %3723
      %3725 = vrot.lane.b32.xlu0 %v3704, 117
      %v3726 = vpop.permute.xlu0 %3725
      %3727 = vrot.lane.b32.xlu0 %v3705, 117
      %v3728 = vpop.permute.xlu0 %3727
      %3729 = vrot.lane.b32.xlu0 %v3706, 117
      %v3730 = vpop.permute.xlu0 %3729
      %3731 = vrot.lane.b32.xlu0 %v3707, 117
      %v3732 = vpop.permute.xlu0 %3731
      %3733 = vrot.lane.b32.xlu0 %v3708, 117
      %v3734 = vpop.permute.xlu0 %3733
      %3735 = vrot.lane.b32.xlu0 %v3709, 117
      %v3736 = vpop.permute.xlu0 %3735
      %v3737 = vsel %vm1291, %v3720, %v3722
      %v3738 = vsel %vm1291, %v3722, %v3724
      %v3739 = vsel %vm1291, %v3724, %v3726
      %v3740 = vsel %vm1291, %v3726, %v3728
      %v3741 = vsel %vm1291, %v3728, %v3730
      %v3742 = vsel %vm1291, %v3730, %v3732
      %v3743 = vsel %vm1291, %v3732, %v3734
      %v3744 = vsel %vm1291, %v3734, %v3736
      %3753 = vst [vmem:[#allocation2 + $0x440] sm:$0xff] %v3737
      %3754 = vst [vmem:[#allocation2 + $0x448] sm:$0xff] %v3738
      %3755 = vst [vmem:[#allocation2 + $0x450] sm:$0xff] %v3739
      %3756 = vst [vmem:[#allocation2 + $0x458] sm:$0xff] %v3740
      %3757 = vst [vmem:[#allocation2 + $0x460] sm:$0xff] %v3741
      %3758 = vst [vmem:[#allocation2 + $0x468] sm:$0xff] %v3742
      %3759 = vst [vmem:[#allocation2 + $0x470] sm:$0xff] %v3743
      %3760 = vst [vmem:[#allocation2 + $0x478] sm:$0xff] %v3744
      %v3761 = vld [vmem:[#allocation4 + $0x8] sm:$0xff]
      %v3762 = vld [vmem:[#allocation4 + $0x10] sm:$0xff]
      %v3763 = vld [vmem:[#allocation4 + $0x18] sm:$0xff]
      %v3764 = vld [vmem:[#allocation4 + $0x20] sm:$0xff]
      %v3765 = vld [vmem:[#allocation4 + $0x28] sm:$0xff]
      %v3766 = vld [vmem:[#allocation4 + $0x30] sm:$0xff]
      %v3767 = vld [vmem:[#allocation4 + $0x38] sm:$0xff]
      %v3768 = vld [vmem:[#allocation4 + $0x40] sm:$0xff]
      %v3769 = vld [vmem:[#allocation4 + $0x48] sm:$0xff]
      %3779 = vrot.lane.b32.xlu0 %v3761, 39
      %v3780 = vpop.permute.xlu0 %3779
      %3781 = vrot.lane.b32.xlu0 %v3762, 39
      %v3782 = vpop.permute.xlu0 %3781
      %3783 = vrot.lane.b32.xlu0 %v3763, 39
      %v3784 = vpop.permute.xlu0 %3783
      %3785 = vrot.lane.b32.xlu0 %v3764, 39
      %v3786 = vpop.permute.xlu0 %3785
      %3787 = vrot.lane.b32.xlu0 %v3765, 39
      %v3788 = vpop.permute.xlu0 %3787
      %3789 = vrot.lane.b32.xlu0 %v3766, 39
      %v3790 = vpop.permute.xlu0 %3789
      %3791 = vrot.lane.b32.xlu0 %v3767, 39
      %v3792 = vpop.permute.xlu0 %3791
      %3793 = vrot.lane.b32.xlu0 %v3768, 39
      %v3794 = vpop.permute.xlu0 %3793
      %3795 = vrot.lane.b32.xlu0 %v3769, 39
      %v3796 = vpop.permute.xlu0 %3795
      %v3797 = vsel %vm1352, %v3780, %v3782
      %v3798 = vsel %vm1352, %v3782, %v3784
      %v3799 = vsel %vm1352, %v3784, %v3786
      %v3800 = vsel %vm1352, %v3786, %v3788
      %v3801 = vsel %vm1352, %v3788, %v3790
      %v3802 = vsel %vm1352, %v3790, %v3792
      %v3803 = vsel %vm1352, %v3792, %v3794
      %v3804 = vsel %vm1352, %v3794, %v3796
      %3813 = vst [vmem:[#allocation2 + $0x480] sm:$0xff] %v3797
      %3814 = vst [vmem:[#allocation2 + $0x488] sm:$0xff] %v3798
      %3815 = vst [vmem:[#allocation2 + $0x490] sm:$0xff] %v3799
      %3816 = vst [vmem:[#allocation2 + $0x498] sm:$0xff] %v3800
      %3817 = vst [vmem:[#allocation2 + $0x4a0] sm:$0xff] %v3801
      %3818 = vst [vmem:[#allocation2 + $0x4a8] sm:$0xff] %v3802
      %3819 = vst [vmem:[#allocation2 + $0x4b0] sm:$0xff] %v3803
      %3820 = vst [vmem:[#allocation2 + $0x4b8] sm:$0xff] %v3804
      %v3821 = vld [vmem:[#allocation4 + $0x8] sm:$0xff]
      %v3822 = vld [vmem:[#allocation4 + $0x10] sm:$0xff]
      %v3823 = vld [vmem:[#allocation4 + $0x18] sm:$0xff]
      %v3824 = vld [vmem:[#allocation4 + $0x20] sm:$0xff]
      %v3825 = vld [vmem:[#allocation4 + $0x28] sm:$0xff]
      %v3826 = vld [vmem:[#allocation4 + $0x30] sm:$0xff]
      %v3827 = vld [vmem:[#allocation4 + $0x38] sm:$0xff]
      %v3828 = vld [vmem:[#allocation4 + $0x40] sm:$0xff]
      %v3829 = vld [vmem:[#allocation4 + $0x48] sm:$0xff]
      %3839 = vrot.lane.b32.xlu0 %v3821, 38
      %v3840 = vpop.permute.xlu0 %3839
      %3841 = vrot.lane.b32.xlu0 %v3822, 38
      %v3842 = vpop.permute.xlu0 %3841
      %3843 = vrot.lane.b32.xlu0 %v3823, 38
      %v3844 = vpop.permute.xlu0 %3843
      %3845 = vrot.lane.b32.xlu0 %v3824, 38
      %v3846 = vpop.permute.xlu0 %3845
      %3847 = vrot.lane.b32.xlu0 %v3825, 38
      %v3848 = vpop.permute.xlu0 %3847
      %3849 = vrot.lane.b32.xlu0 %v3826, 38
      %v3850 = vpop.permute.xlu0 %3849
      %3851 = vrot.lane.b32.xlu0 %v3827, 38
      %v3852 = vpop.permute.xlu0 %3851
      %3853 = vrot.lane.b32.xlu0 %v3828, 38
      %v3854 = vpop.permute.xlu0 %3853
      %3855 = vrot.lane.b32.xlu0 %v3829, 38
      %v3856 = vpop.permute.xlu0 %3855
      %v3857 = vsel %vm1413, %v3840, %v3842
      %v3858 = vsel %vm1413, %v3842, %v3844
      %v3859 = vsel %vm1413, %v3844, %v3846
      %v3860 = vsel %vm1413, %v3846, %v3848
      %v3861 = vsel %vm1413, %v3848, %v3850
      %v3862 = vsel %vm1413, %v3850, %v3852
      %v3863 = vsel %vm1413, %v3852, %v3854
      %v3864 = vsel %vm1413, %v3854, %v3856
      %3873 = vst [vmem:[#allocation2 + $0x4c0] sm:$0xff] %v3857
      %3874 = vst [vmem:[#allocation2 + $0x4c8] sm:$0xff] %v3858
      %3875 = vst [vmem:[#allocation2 + $0x4d0] sm:$0xff] %v3859
      %3876 = vst [vmem:[#allocation2 + $0x4d8] sm:$0xff] %v3860
      %3877 = vst [vmem:[#allocation2 + $0x4e0] sm:$0xff] %v3861
      %3878 = vst [vmem:[#allocation2 + $0x4e8] sm:$0xff] %v3862
      %3879 = vst [vmem:[#allocation2 + $0x4f0] sm:$0xff] %v3863
      %3880 = vst [vmem:[#allocation2 + $0x4f8] sm:$0xff] %v3864
      %v3881 = vld [vmem:[#allocation4 + $0x8] sm:$0xff]
      %v3882 = vld [vmem:[#allocation4 + $0x10] sm:$0xff]
      %v3883 = vld [vmem:[#allocation4 + $0x18] sm:$0xff]
      %v3884 = vld [vmem:[#allocation4 + $0x20] sm:$0xff]
      %v3885 = vld [vmem:[#allocation4 + $0x28] sm:$0xff]
      %v3886 = vld [vmem:[#allocation4 + $0x30] sm:$0xff]
      %v3887 = vld [vmem:[#allocation4 + $0x38] sm:$0xff]
      %v3888 = vld [vmem:[#allocation4 + $0x40] sm:$0xff]
      %v3889 = vld [vmem:[#allocation4 + $0x48] sm:$0xff]
      %3899 = vrot.lane.b32.xlu0 %v3881, 37
      %v3900 = vpop.permute.xlu0 %3899
      %3901 = vrot.lane.b32.xlu0 %v3882, 37
      %v3902 = vpop.permute.xlu0 %3901
      %3903 = vrot.lane.b32.xlu0 %v3883, 37
      %v3904 = vpop.permute.xlu0 %3903
      %3905 = vrot.lane.b32.xlu0 %v3884, 37
      %v3906 = vpop.permute.xlu0 %3905
      %3907 = vrot.lane.b32.xlu0 %v3885, 37
      %v3908 = vpop.permute.xlu0 %3907
      %3909 = vrot.lane.b32.xlu0 %v3886, 37
      %v3910 = vpop.permute.xlu0 %3909
      %3911 = vrot.lane.b32.xlu0 %v3887, 37
      %v3912 = vpop.permute.xlu0 %3911
      %3913 = vrot.lane.b32.xlu0 %v3888, 37
      %v3914 = vpop.permute.xlu0 %3913
      %3915 = vrot.lane.b32.xlu0 %v3889, 37
      %v3916 = vpop.permute.xlu0 %3915
      %v3917 = vsel %vm1474, %v3900, %v3902
      %v3918 = vsel %vm1474, %v3902, %v3904
      %v3919 = vsel %vm1474, %v3904, %v3906
      %v3920 = vsel %vm1474, %v3906, %v3908
      %v3921 = vsel %vm1474, %v3908, %v3910
      %v3922 = vsel %vm1474, %v3910, %v3912
      %v3923 = vsel %vm1474, %v3912, %v3914
      %v3924 = vsel %vm1474, %v3914, %v3916
      %3933 = vst [vmem:[#allocation2 + $0x500] sm:$0xff] %v3917
      %3934 = vst [vmem:[#allocation2 + $0x508] sm:$0xff] %v3918
      %3935 = vst [vmem:[#allocation2 + $0x510] sm:$0xff] %v3919
      %3936 = vst [vmem:[#allocation2 + $0x518] sm:$0xff] %v3920
      %3937 = vst [vmem:[#allocation2 + $0x520] sm:$0xff] %v3921
      %3938 = vst [vmem:[#allocation2 + $0x528] sm:$0xff] %v3922
      %3939 = vst [vmem:[#allocation2 + $0x530] sm:$0xff] %v3923
      %3940 = vst [vmem:[#allocation2 + $0x538] sm:$0xff] %v3924
      %v3941 = vld [vmem:[#allocation4 + $0x8] sm:$0xff]
      %v3942 = vld [vmem:[#allocation4 + $0x10] sm:$0xff]
      %v3943 = vld [vmem:[#allocation4 + $0x18] sm:$0xff]
      %v3944 = vld [vmem:[#allocation4 + $0x20] sm:$0xff]
      %v3945 = vld [vmem:[#allocation4 + $0x28] sm:$0xff]
      %v3946 = vld [vmem:[#allocation4 + $0x30] sm:$0xff]
      %v3947 = vld [vmem:[#allocation4 + $0x38] sm:$0xff]
      %v3948 = vld [vmem:[#allocation4 + $0x40] sm:$0xff]
      %v3949 = vld [vmem:[#allocation4 + $0x48] sm:$0xff]
      %3959 = vrot.lane.b32.xlu0 %v3941, 29
      %v3960 = vpop.permute.xlu0 %3959
      %3961 = vrot.lane.b32.xlu0 %v3942, 29
      %v3962 = vpop.permute.xlu0 %3961
      %3963 = vrot.lane.b32.xlu0 %v3943, 29
      %v3964 = vpop.permute.xlu0 %3963
      %3965 = vrot.lane.b32.xlu0 %v3944, 29
      %v3966 = vpop.permute.xlu0 %3965
      %3967 = vrot.lane.b32.xlu0 %v3945, 29
      %v3968 = vpop.permute.xlu0 %3967
      %3969 = vrot.lane.b32.xlu0 %v3946, 29
      %v3970 = vpop.permute.xlu0 %3969
      %3971 = vrot.lane.b32.xlu0 %v3947, 29
      %v3972 = vpop.permute.xlu0 %3971
      %3973 = vrot.lane.b32.xlu0 %v3948, 29
      %v3974 = vpop.permute.xlu0 %3973
      %3975 = vrot.lane.b32.xlu0 %v3949, 29
      %v3976 = vpop.permute.xlu0 %3975
      %v3977 = vsel %vm1535, %v3960, %v3962
      %v3978 = vsel %vm1535, %v3962, %v3964
      %v3979 = vsel %vm1535, %v3964, %v3966
      %v3980 = vsel %vm1535, %v3966, %v3968
      %v3981 = vsel %vm1535, %v3968, %v3970
      %v3982 = vsel %vm1535, %v3970, %v3972
      %v3983 = vsel %vm1535, %v3972, %v3974
      %v3984 = vsel %vm1535, %v3974, %v3976
      %3993 = vst [vmem:[#allocation2 + $0x540] sm:$0xff] %v3977
      %3994 = vst [vmem:[#allocation2 + $0x548] sm:$0xff] %v3978
      %3995 = vst [vmem:[#allocation2 + $0x550] sm:$0xff] %v3979
      %3996 = vst [vmem:[#allocation2 + $0x558] sm:$0xff] %v3980
      %3997 = vst [vmem:[#allocation2 + $0x560] sm:$0xff] %v3981
      %3998 = vst [vmem:[#allocation2 + $0x568] sm:$0xff] %v3982
      %3999 = vst [vmem:[#allocation2 + $0x570] sm:$0xff] %v3983
      %4000 = vst [vmem:[#allocation2 + $0x578] sm:$0xff] %v3984
      %v4001 = vld [vmem:[#allocation4 + $0x8] sm:$0xff]
      %v4002 = vld [vmem:[#allocation4 + $0x10] sm:$0xff]
      %v4003 = vld [vmem:[#allocation4 + $0x18] sm:$0xff]
      %v4004 = vld [vmem:[#allocation4 + $0x20] sm:$0xff]
      %v4005 = vld [vmem:[#allocation4 + $0x28] sm:$0xff]
      %v4006 = vld [vmem:[#allocation4 + $0x30] sm:$0xff]
      %v4007 = vld [vmem:[#allocation4 + $0x38] sm:$0xff]
      %v4008 = vld [vmem:[#allocation4 + $0x40] sm:$0xff]
      %v4009 = vld [vmem:[#allocation4 + $0x48] sm:$0xff]
      %4019 = vrot.lane.b32.xlu0 %v4001, 28
      %v4020 = vpop.permute.xlu0 %4019
      %4021 = vrot.lane.b32.xlu0 %v4002, 28
      %v4022 = vpop.permute.xlu0 %4021
      %4023 = vrot.lane.b32.xlu0 %v4003, 28
      %v4024 = vpop.permute.xlu0 %4023
      %4025 = vrot.lane.b32.xlu0 %v4004, 28
      %v4026 = vpop.permute.xlu0 %4025
      %4027 = vrot.lane.b32.xlu0 %v4005, 28
      %v4028 = vpop.permute.xlu0 %4027
      %4029 = vrot.lane.b32.xlu0 %v4006, 28
      %v4030 = vpop.permute.xlu0 %4029
      %4031 = vrot.lane.b32.xlu0 %v4007, 28
      %v4032 = vpop.permute.xlu0 %4031
      %4033 = vrot.lane.b32.xlu0 %v4008, 28
      %v4034 = vpop.permute.xlu0 %4033
      %4035 = vrot.lane.b32.xlu0 %v4009, 28
      %v4036 = vpop.permute.xlu0 %4035
      %v4037 = vsel %vm1596, %v4020, %v4022
      %v4038 = vsel %vm1596, %v4022, %v4024
      %v4039 = vsel %vm1596, %v4024, %v4026
      %v4040 = vsel %vm1596, %v4026, %v4028
      %v4041 = vsel %vm1596, %v4028, %v4030
      %v4042 = vsel %vm1596, %v4030, %v4032
      %v4043 = vsel %vm1596, %v4032, %v4034
      %v4044 = vsel %vm1596, %v4034, %v4036
      %4053 = vst [vmem:[#allocation2 + $0x580] sm:$0xff] %v4037
      %4054 = vst [vmem:[#allocation2 + $0x588] sm:$0xff] %v4038
      %4055 = vst [vmem:[#allocation2 + $0x590] sm:$0xff] %v4039
      %4056 = vst [vmem:[#allocation2 + $0x598] sm:$0xff] %v4040
      %4057 = vst [vmem:[#allocation2 + $0x5a0] sm:$0xff] %v4041
      %4058 = vst [vmem:[#allocation2 + $0x5a8] sm:$0xff] %v4042
      %4059 = vst [vmem:[#allocation2 + $0x5b0] sm:$0xff] %v4043
      %4060 = vst [vmem:[#allocation2 + $0x5b8] sm:$0xff] %v4044
      %v4061 = vld [vmem:[#allocation4 + $0x8] sm:$0xff]
      %v4062 = vld [vmem:[#allocation4 + $0x10] sm:$0xff]
      %v4063 = vld [vmem:[#allocation4 + $0x18] sm:$0xff]
      %v4064 = vld [vmem:[#allocation4 + $0x20] sm:$0xff]
      %v4065 = vld [vmem:[#allocation4 + $0x28] sm:$0xff]
      %v4066 = vld [vmem:[#allocation4 + $0x30] sm:$0xff]
      %v4067 = vld [vmem:[#allocation4 + $0x38] sm:$0xff]
      %v4068 = vld [vmem:[#allocation4 + $0x40] sm:$0xff]
      %v4069 = vld [vmem:[#allocation4 + $0x48] sm:$0xff]
      %4079 = vrot.lane.b32.xlu0 %v4061, 27
      %v4080 = vpop.permute.xlu0 %4079
      %4081 = vrot.lane.b32.xlu0 %v4062, 27
      %v4082 = vpop.permute.xlu0 %4081
      %4083 = vrot.lane.b32.xlu0 %v4063, 27
      %v4084 = vpop.permute.xlu0 %4083
      %4085 = vrot.lane.b32.xlu0 %v4064, 27
      %v4086 = vpop.permute.xlu0 %4085
      %4087 = vrot.lane.b32.xlu0 %v4065, 27
      %v4088 = vpop.permute.xlu0 %4087
      %4089 = vrot.lane.b32.xlu0 %v4066, 27
      %v4090 = vpop.permute.xlu0 %4089
      %4091 = vrot.lane.b32.xlu0 %v4067, 27
      %v4092 = vpop.permute.xlu0 %4091
      %4093 = vrot.lane.b32.xlu0 %v4068, 27
      %v4094 = vpop.permute.xlu0 %4093
      %4095 = vrot.lane.b32.xlu0 %v4069, 27
      %v4096 = vpop.permute.xlu0 %4095
      %v4097 = vsel %vm1657, %v4080, %v4082
      %v4098 = vsel %vm1657, %v4082, %v4084
      %v4099 = vsel %vm1657, %v4084, %v4086
      %v4100 = vsel %vm1657, %v4086, %v4088
      %v4101 = vsel %vm1657, %v4088, %v4090
      %v4102 = vsel %vm1657, %v4090, %v4092
      %v4103 = vsel %vm1657, %v4092, %v4094
      %v4104 = vsel %vm1657, %v4094, %v4096
      %4113 = vst [vmem:[#allocation2 + $0x5c0] sm:$0xff] %v4097
      %4114 = vst [vmem:[#allocation2 + $0x5c8] sm:$0xff] %v4098
      %4115 = vst [vmem:[#allocation2 + $0x5d0] sm:$0xff] %v4099
      %4116 = vst [vmem:[#allocation2 + $0x5d8] sm:$0xff] %v4100
      %4117 = vst [vmem:[#allocation2 + $0x5e0] sm:$0xff] %v4101
      %4118 = vst [vmem:[#allocation2 + $0x5e8] sm:$0xff] %v4102
      %4119 = vst [vmem:[#allocation2 + $0x5f0] sm:$0xff] %v4103
      %4120 = vst [vmem:[#allocation2 + $0x5f8] sm:$0xff] %v4104
      %v4121 = vld [vmem:[#allocation4 + $0x8] sm:$0xff]
      %v4122 = vld [vmem:[#allocation4 + $0x10] sm:$0xff]
      %v4123 = vld [vmem:[#allocation4 + $0x18] sm:$0xff]
      %v4124 = vld [vmem:[#allocation4 + $0x20] sm:$0xff]
      %v4125 = vld [vmem:[#allocation4 + $0x28] sm:$0xff]
      %v4126 = vld [vmem:[#allocation4 + $0x30] sm:$0xff]
      %v4127 = vld [vmem:[#allocation4 + $0x38] sm:$0xff]
      %v4128 = vld [vmem:[#allocation4 + $0x40] sm:$0xff]
      %v4129 = vld [vmem:[#allocation4 + $0x48] sm:$0xff]
      %4139 = vrot.lane.b32.xlu0 %v4121, 19
      %v4140 = vpop.permute.xlu0 %4139
      %4141 = vrot.lane.b32.xlu0 %v4122, 19
      %v4142 = vpop.permute.xlu0 %4141
      %4143 = vrot.lane.b32.xlu0 %v4123, 19
      %v4144 = vpop.permute.xlu0 %4143
      %4145 = vrot.lane.b32.xlu0 %v4124, 19
      %v4146 = vpop.permute.xlu0 %4145
      %4147 = vrot.lane.b32.xlu0 %v4125, 19
      %v4148 = vpop.permute.xlu0 %4147
      %4149 = vrot.lane.b32.xlu0 %v4126, 19
      %v4150 = vpop.permute.xlu0 %4149
      %4151 = vrot.lane.b32.xlu0 %v4127, 19
      %v4152 = vpop.permute.xlu0 %4151
      %4153 = vrot.lane.b32.xlu0 %v4128, 19
      %v4154 = vpop.permute.xlu0 %4153
      %4155 = vrot.lane.b32.xlu0 %v4129, 19
      %v4156 = vpop.permute.xlu0 %4155
      %v4157 = vsel %vm1718, %v4140, %v4142
      %v4158 = vsel %vm1718, %v4142, %v4144
      %v4159 = vsel %vm1718, %v4144, %v4146
      %v4160 = vsel %vm1718, %v4146, %v4148
      %v4161 = vsel %vm1718, %v4148, %v4150
      %v4162 = vsel %vm1718, %v4150, %v4152
      %v4163 = vsel %vm1718, %v4152, %v4154
      %v4164 = vsel %vm1718, %v4154, %v4156
      %4173 = vst [vmem:[#allocation2 + $0x600] sm:$0xff] %v4157
      %4174 = vst [vmem:[#allocation2 + $0x608] sm:$0xff] %v4158
      %4175 = vst [vmem:[#allocation2 + $0x610] sm:$0xff] %v4159
      %4176 = vst [vmem:[#allocation2 + $0x618] sm:$0xff] %v4160
      %4177 = vst [vmem:[#allocation2 + $0x620] sm:$0xff] %v4161
      %4178 = vst [vmem:[#allocation2 + $0x628] sm:$0xff] %v4162
      %4179 = vst [vmem:[#allocation2 + $0x630] sm:$0xff] %v4163
      %4180 = vst [vmem:[#allocation2 + $0x638] sm:$0xff] %v4164
      %v4181 = vld [vmem:[#allocation4 + $0x8] sm:$0xff]
      %v4182 = vld [vmem:[#allocation4 + $0x10] sm:$0xff]
      %v4183 = vld [vmem:[#allocation4 + $0x18] sm:$0xff]
      %v4184 = vld [vmem:[#allocation4 + $0x20] sm:$0xff]
      %v4185 = vld [vmem:[#allocation4 + $0x28] sm:$0xff]
      %v4186 = vld [vmem:[#allocation4 + $0x30] sm:$0xff]
      %v4187 = vld [vmem:[#allocation4 + $0x38] sm:$0xff]
      %v4188 = vld [vmem:[#allocation4 + $0x40] sm:$0xff]
      %v4189 = vld [vmem:[#allocation4 + $0x48] sm:$0xff]
      %4199 = vrot.lane.b32.xlu0 %v4181, 18
      %v4200 = vpop.permute.xlu0 %4199
      %4201 = vrot.lane.b32.xlu0 %v4182, 18
      %v4202 = vpop.permute.xlu0 %4201
      %4203 = vrot.lane.b32.xlu0 %v4183, 18
      %v4204 = vpop.permute.xlu0 %4203
      %4205 = vrot.lane.b32.xlu0 %v4184, 18
      %v4206 = vpop.permute.xlu0 %4205
      %4207 = vrot.lane.b32.xlu0 %v4185, 18
      %v4208 = vpop.permute.xlu0 %4207
      %4209 = vrot.lane.b32.xlu0 %v4186, 18
      %v4210 = vpop.permute.xlu0 %4209
      %4211 = vrot.lane.b32.xlu0 %v4187, 18
      %v4212 = vpop.permute.xlu0 %4211
      %4213 = vrot.lane.b32.xlu0 %v4188, 18
      %v4214 = vpop.permute.xlu0 %4213
      %4215 = vrot.lane.b32.xlu0 %v4189, 18
      %v4216 = vpop.permute.xlu0 %4215
      %v4217 = vsel %vm1779, %v4200, %v4202
      %v4218 = vsel %vm1779, %v4202, %v4204
      %v4219 = vsel %vm1779, %v4204, %v4206
      %v4220 = vsel %vm1779, %v4206, %v4208
      %v4221 = vsel %vm1779, %v4208, %v4210
      %v4222 = vsel %vm1779, %v4210, %v4212
      %v4223 = vsel %vm1779, %v4212, %v4214
      %v4224 = vsel %vm1779, %v4214, %v4216
      %4233 = vst [vmem:[#allocation2 + $0x640] sm:$0xff] %v4217
      %4234 = vst [vmem:[#allocation2 + $0x648] sm:$0xff] %v4218
      %4235 = vst [vmem:[#allocation2 + $0x650] sm:$0xff] %v4219
      %4236 = vst [vmem:[#allocation2 + $0x658] sm:$0xff] %v4220
      %4237 = vst [vmem:[#allocation2 + $0x660] sm:$0xff] %v4221
      %4238 = vst [vmem:[#allocation2 + $0x668] sm:$0xff] %v4222
      %4239 = vst [vmem:[#allocation2 + $0x670] sm:$0xff] %v4223
      %4240 = vst [vmem:[#allocation2 + $0x678] sm:$0xff] %v4224
      %v4241 = vld [vmem:[#allocation4 + $0x8] sm:$0xff]
      %v4242 = vld [vmem:[#allocation4 + $0x10] sm:$0xff]
      %v4243 = vld [vmem:[#allocation4 + $0x18] sm:$0xff]
      %v4244 = vld [vmem:[#allocation4 + $0x20] sm:$0xff]
      %v4245 = vld [vmem:[#allocation4 + $0x28] sm:$0xff]
      %v4246 = vld [vmem:[#allocation4 + $0x30] sm:$0xff]
      %v4247 = vld [vmem:[#allocation4 + $0x38] sm:$0xff]
      %v4248 = vld [vmem:[#allocation4 + $0x40] sm:$0xff]
      %v4249 = vld [vmem:[#allocation4 + $0x48] sm:$0xff]
      %4259 = vrot.lane.b32.xlu0 %v4241, 17
      %v4260 = vpop.permute.xlu0 %4259
      %4261 = vrot.lane.b32.xlu0 %v4242, 17
      %v4262 = vpop.permute.xlu0 %4261
      %4263 = vrot.lane.b32.xlu0 %v4243, 17
      %v4264 = vpop.permute.xlu0 %4263
      %4265 = vrot.lane.b32.xlu0 %v4244, 17
      %v4266 = vpop.permute.xlu0 %4265
      %4267 = vrot.lane.b32.xlu0 %v4245, 17
      %v4268 = vpop.permute.xlu0 %4267
      %4269 = vrot.lane.b32.xlu0 %v4246, 17
      %v4270 = vpop.permute.xlu0 %4269
      %4271 = vrot.lane.b32.xlu0 %v4247, 17
      %v4272 = vpop.permute.xlu0 %4271
      %4273 = vrot.lane.b32.xlu0 %v4248, 17
      %v4274 = vpop.permute.xlu0 %4273
      %4275 = vrot.lane.b32.xlu0 %v4249, 17
      %v4276 = vpop.permute.xlu0 %4275
      %v4277 = vsel %vm1840, %v4260, %v4262
      %v4278 = vsel %vm1840, %v4262, %v4264
      %v4279 = vsel %vm1840, %v4264, %v4266
      %v4280 = vsel %vm1840, %v4266, %v4268
      %v4281 = vsel %vm1840, %v4268, %v4270
      %v4282 = vsel %vm1840, %v4270, %v4272
      %v4283 = vsel %vm1840, %v4272, %v4274
      %v4284 = vsel %vm1840, %v4274, %v4276
      %4293 = vst [vmem:[#allocation2 + $0x680] sm:$0xff] %v4277
      %4294 = vst [vmem:[#allocation2 + $0x688] sm:$0xff] %v4278
      %4295 = vst [vmem:[#allocation2 + $0x690] sm:$0xff] %v4279
      %4296 = vst [vmem:[#allocation2 + $0x698] sm:$0xff] %v4280
      %4297 = vst [vmem:[#allocation2 + $0x6a0] sm:$0xff] %v4281
      %4298 = vst [vmem:[#allocation2 + $0x6a8] sm:$0xff] %v4282
      %4299 = vst [vmem:[#allocation2 + $0x6b0] sm:$0xff] %v4283
      %4300 = vst [vmem:[#allocation2 + $0x6b8] sm:$0xff] %v4284
      %v4301 = vld [vmem:[%s3] sm:$0xff]
      %v4302 = vld [vmem:[%s3 + $0x8] sm:$0xff]
      %v4303 = vld [vmem:[%s3 + $0x10] sm:$0xff]
      %v4304 = vld [vmem:[%s3 + $0x18] sm:$0xff]
      %v4305 = vld [vmem:[#allocation2] sm:$0xff]
      %v4306 = vld [vmem:[#allocation2 + $0x8] sm:$0xff]
      %v4307 = vld [vmem:[#allocation2 + $0x10] sm:$0xff]
      %v4308 = vld [vmem:[#allocation2 + $0x18] sm:$0xff]
      %v4309 = vld [vmem:[#allocation2 + $0x20] sm:$0xff]
      %v4310 = vld [vmem:[#allocation2 + $0x28] sm:$0xff]
      %v4311 = vld [vmem:[#allocation2 + $0x30] sm:$0xff]
      %v4312 = vld [vmem:[#allocation2 + $0x38] sm:$0xff]
      %v4313 = vld [vmem:[#allocation2 + $0x40] sm:$0xff]
      %v4314 = vld [vmem:[#allocation2 + $0x48] sm:$0xff]
      %v4315 = vld [vmem:[#allocation2 + $0x50] sm:$0xff]
      %v4316 = vld [vmem:[#allocation2 + $0x58] sm:$0xff]
      %v4317 = vld [vmem:[#allocation2 + $0x60] sm:$0xff]
      %v4318 = vld [vmem:[#allocation2 + $0x68] sm:$0xff]
      %v4319 = vld [vmem:[#allocation2 + $0x70] sm:$0xff]
      %v4320 = vld [vmem:[#allocation2 + $0x78] sm:$0xff]
      %v4321 = vld [vmem:[#allocation2 + $0x80] sm:$0xff]
      %v4322 = vld [vmem:[#allocation2 + $0x88] sm:$0xff]
      %v4323 = vld [vmem:[#allocation2 + $0x90] sm:$0xff]
      %v4324 = vld [vmem:[#allocation2 + $0x98] sm:$0xff]
      %v4325 = vld [vmem:[#allocation2 + $0xa0] sm:$0xff]
      %v4326 = vld [vmem:[#allocation2 + $0xa8] sm:$0xff]
      %v4327 = vld [vmem:[#allocation2 + $0xb0] sm:$0xff]
      %v4328 = vld [vmem:[#allocation2 + $0xb8] sm:$0xff]
      %v4329 = vld [vmem:[#allocation2 + $0xc0] sm:$0xff]
      %v4330 = vld [vmem:[#allocation2 + $0xc8] sm:$0xff]
      %v4331 = vld [vmem:[#allocation2 + $0xd0] sm:$0xff]
      %v4332 = vld [vmem:[#allocation2 + $0xd8] sm:$0xff]
      %v4333 = vld [vmem:[#allocation2 + $0xe0] sm:$0xff]
      %v4334 = vld [vmem:[#allocation2 + $0xe8] sm:$0xff]
      %v4335 = vld [vmem:[#allocation2 + $0xf0] sm:$0xff]
      %v4336 = vld [vmem:[#allocation2 + $0xf8] sm:$0xff]
      %v4337 = vld [vmem:[#allocation2 + $0x100] sm:$0xff]
      %v4338 = vld [vmem:[#allocation2 + $0x108] sm:$0xff]
      %v4339 = vld [vmem:[#allocation2 + $0x110] sm:$0xff]
      %v4340 = vld [vmem:[#allocation2 + $0x118] sm:$0xff]
      %v4341 = vld [vmem:[#allocation2 + $0x120] sm:$0xff]
      %v4342 = vld [vmem:[#allocation2 + $0x128] sm:$0xff]
      %v4343 = vld [vmem:[#allocation2 + $0x130] sm:$0xff]
      %v4344 = vld [vmem:[#allocation2 + $0x138] sm:$0xff]
      %v4345 = vld [vmem:[#allocation2 + $0x140] sm:$0xff]
      %v4346 = vld [vmem:[#allocation2 + $0x148] sm:$0xff]
      %v4347 = vld [vmem:[#allocation2 + $0x150] sm:$0xff]
      %v4348 = vld [vmem:[#allocation2 + $0x158] sm:$0xff]
      %v4349 = vld [vmem:[#allocation2 + $0x160] sm:$0xff]
      %v4350 = vld [vmem:[#allocation2 + $0x168] sm:$0xff]
      %v4351 = vld [vmem:[#allocation2 + $0x170] sm:$0xff]
      %v4352 = vld [vmem:[#allocation2 + $0x178] sm:$0xff]
      %v4353 = vld [vmem:[#allocation2 + $0x180] sm:$0xff]
      %v4354 = vld [vmem:[#allocation2 + $0x188] sm:$0xff]
      %v4355 = vld [vmem:[#allocation2 + $0x190] sm:$0xff]
      %v4356 = vld [vmem:[#allocation2 + $0x198] sm:$0xff]
      %v4357 = vld [vmem:[#allocation2 + $0x1a0] sm:$0xff]
      %v4358 = vld [vmem:[#allocation2 + $0x1a8] sm:$0xff]
      %v4359 = vld [vmem:[#allocation2 + $0x1b0] sm:$0xff]
      %v4360 = vld [vmem:[#allocation2 + $0x1b8] sm:$0xff]
      %v4361 = vld [vmem:[#allocation2 + $0x1c0] sm:$0xff]
      %v4362 = vld [vmem:[#allocation2 + $0x1c8] sm:$0xff]
      %v4363 = vld [vmem:[#allocation2 + $0x1d0] sm:$0xff]
      %v4364 = vld [vmem:[#allocation2 + $0x1d8] sm:$0xff]
      %v4365 = vld [vmem:[#allocation2 + $0x1e0] sm:$0xff]
      %v4366 = vld [vmem:[#allocation2 + $0x1e8] sm:$0xff]
      %v4367 = vld [vmem:[#allocation2 + $0x1f0] sm:$0xff]
      %v4368 = vld [vmem:[#allocation2 + $0x1f8] sm:$0xff]
      %v4369 = vld [vmem:[#allocation2 + $0x200] sm:$0xff]
      %v4370 = vld [vmem:[#allocation2 + $0x208] sm:$0xff]
      %v4371 = vld [vmem:[#allocation2 + $0x210] sm:$0xff]
      %v4372 = vld [vmem:[#allocation2 + $0x218] sm:$0xff]
      %v4373 = vld [vmem:[#allocation2 + $0x220] sm:$0xff]
      %v4374 = vld [vmem:[#allocation2 + $0x228] sm:$0xff]
      %v4375 = vld [vmem:[#allocation2 + $0x230] sm:$0xff]
      %v4376 = vld [vmem:[#allocation2 + $0x238] sm:$0xff]
      %v4377 = vld [vmem:[#allocation2 + $0x240] sm:$0xff]
      %v4378 = vld [vmem:[#allocation2 + $0x248] sm:$0xff]
      %v4379 = vld [vmem:[#allocation2 + $0x250] sm:$0xff]
      %v4380 = vld [vmem:[#allocation2 + $0x258] sm:$0xff]
      %v4381 = vld [vmem:[#allocation2 + $0x260] sm:$0xff]
      %v4382 = vld [vmem:[#allocation2 + $0x268] sm:$0xff]
      %v4383 = vld [vmem:[#allocation2 + $0x270] sm:$0xff]
      %v4384 = vld [vmem:[#allocation2 + $0x278] sm:$0xff]
      %v4385 = vld [vmem:[#allocation2 + $0x280] sm:$0xff]
      %v4386 = vld [vmem:[#allocation2 + $0x288] sm:$0xff]
      %v4387 = vld [vmem:[#allocation2 + $0x290] sm:$0xff]
      %v4388 = vld [vmem:[#allocation2 + $0x298] sm:$0xff]
      %v4389 = vld [vmem:[#allocation2 + $0x2a0] sm:$0xff]
      %v4390 = vld [vmem:[#allocation2 + $0x2a8] sm:$0xff]
      %v4391 = vld [vmem:[#allocation2 + $0x2b0] sm:$0xff]
      %v4392 = vld [vmem:[#allocation2 + $0x2b8] sm:$0xff]
      %v4393 = vld [vmem:[#allocation2 + $0x2c0] sm:$0xff]
      %v4394 = vld [vmem:[#allocation2 + $0x2c8] sm:$0xff]
      %v4395 = vld [vmem:[#allocation2 + $0x2d0] sm:$0xff]
      %v4396 = vld [vmem:[#allocation2 + $0x2d8] sm:$0xff]
      %v4397 = vld [vmem:[#allocation2 + $0x2e0] sm:$0xff]
      %v4398 = vld [vmem:[#allocation2 + $0x2e8] sm:$0xff]
      %v4399 = vld [vmem:[#allocation2 + $0x2f0] sm:$0xff]
      %v4400 = vld [vmem:[#allocation2 + $0x2f8] sm:$0xff]
      %v4401 = vld [vmem:[#allocation2 + $0x300] sm:$0xff]
      %v4402 = vld [vmem:[#allocation2 + $0x308] sm:$0xff]
      %v4403 = vld [vmem:[#allocation2 + $0x310] sm:$0xff]
      %v4404 = vld [vmem:[#allocation2 + $0x318] sm:$0xff]
      %v4405 = vld [vmem:[#allocation2 + $0x320] sm:$0xff]
      %v4406 = vld [vmem:[#allocation2 + $0x328] sm:$0xff]
      %v4407 = vld [vmem:[#allocation2 + $0x330] sm:$0xff]
      %v4408 = vld [vmem:[#allocation2 + $0x338] sm:$0xff]
      %v4409 = vld [vmem:[#allocation2 + $0x340] sm:$0xff]
      %v4410 = vld [vmem:[#allocation2 + $0x348] sm:$0xff]
      %v4411 = vld [vmem:[#allocation2 + $0x350] sm:$0xff]
      %v4412 = vld [vmem:[#allocation2 + $0x358] sm:$0xff]
      %v4413 = vld [vmem:[#allocation2 + $0x360] sm:$0xff]
      %v4414 = vld [vmem:[#allocation2 + $0x368] sm:$0xff]
      %v4415 = vld [vmem:[#allocation2 + $0x370] sm:$0xff]
      %v4416 = vld [vmem:[#allocation2 + $0x378] sm:$0xff]
      %v4417 = vld [vmem:[#allocation2 + $0x380] sm:$0xff]
      %v4418 = vld [vmem:[#allocation2 + $0x388] sm:$0xff]
      %v4419 = vld [vmem:[#allocation2 + $0x390] sm:$0xff]
      %v4420 = vld [vmem:[#allocation2 + $0x398] sm:$0xff]
      %v4421 = vld [vmem:[#allocation2 + $0x3a0] sm:$0xff]
      %v4422 = vld [vmem:[#allocation2 + $0x3a8] sm:$0xff]
      %v4423 = vld [vmem:[#allocation2 + $0x3b0] sm:$0xff]
      %v4424 = vld [vmem:[#allocation2 + $0x3b8] sm:$0xff]
      %v4425 = vld [vmem:[#allocation2 + $0x3c0] sm:$0xff]
      %v4426 = vld [vmem:[#allocation2 + $0x3c8] sm:$0xff]
      %v4427 = vld [vmem:[#allocation2 + $0x3d0] sm:$0xff]
      %v4428 = vld [vmem:[#allocation2 + $0x3d8] sm:$0xff]
      %v4429 = vld [vmem:[#allocation2 + $0x3e0] sm:$0xff]
      %v4430 = vld [vmem:[#allocation2 + $0x3e8] sm:$0xff]
      %v4431 = vld [vmem:[#allocation2 + $0x3f0] sm:$0xff]
      %v4432 = vld [vmem:[#allocation2 + $0x3f8] sm:$0xff]
      %v4433 = vld [vmem:[#allocation2 + $0x400] sm:$0xff]
      %v4434 = vld [vmem:[#allocation2 + $0x408] sm:$0xff]
      %v4435 = vld [vmem:[#allocation2 + $0x410] sm:$0xff]
      %v4436 = vld [vmem:[#allocation2 + $0x418] sm:$0xff]
      %v4437 = vld [vmem:[#allocation2 + $0x420] sm:$0xff]
      %v4438 = vld [vmem:[#allocation2 + $0x428] sm:$0xff]
      %v4439 = vld [vmem:[#allocation2 + $0x430] sm:$0xff]
      %v4440 = vld [vmem:[#allocation2 + $0x438] sm:$0xff]
      %v4441 = vld [vmem:[#allocation2 + $0x440] sm:$0xff]
      %v4442 = vld [vmem:[#allocation2 + $0x448] sm:$0xff]
      %v4443 = vld [vmem:[#allocation2 + $0x450] sm:$0xff]
      %v4444 = vld [vmem:[#allocation2 + $0x458] sm:$0xff]
      %v4445 = vld [vmem:[#allocation2 + $0x460] sm:$0xff]
      %v4446 = vld [vmem:[#allocation2 + $0x468] sm:$0xff]
      %v4447 = vld [vmem:[#allocation2 + $0x470] sm:$0xff]
      %v4448 = vld [vmem:[#allocation2 + $0x478] sm:$0xff]
      %v4449 = vld [vmem:[#allocation2 + $0x480] sm:$0xff]
      %v4450 = vld [vmem:[#allocation2 + $0x488] sm:$0xff]
      %v4451 = vld [vmem:[#allocation2 + $0x490] sm:$0xff]
      %v4452 = vld [vmem:[#allocation2 + $0x498] sm:$0xff]
      %v4453 = vld [vmem:[#allocation2 + $0x4a0] sm:$0xff]
      %v4454 = vld [vmem:[#allocation2 + $0x4a8] sm:$0xff]
      %v4455 = vld [vmem:[#allocation2 + $0x4b0] sm:$0xff]
      %v4456 = vld [vmem:[#allocation2 + $0x4b8] sm:$0xff]
      %v4457 = vld [vmem:[#allocation2 + $0x4c0] sm:$0xff]
      %v4458 = vld [vmem:[#allocation2 + $0x4c8] sm:$0xff]
      %v4459 = vld [vmem:[#allocation2 + $0x4d0] sm:$0xff]
      %v4460 = vld [vmem:[#allocation2 + $0x4d8] sm:$0xff]
      %v4461 = vld [vmem:[#allocation2 + $0x4e0] sm:$0xff]
      %v4462 = vld [vmem:[#allocation2 + $0x4e8] sm:$0xff]
      %v4463 = vld [vmem:[#allocation2 + $0x4f0] sm:$0xff]
      %v4464 = vld [vmem:[#allocation2 + $0x4f8] sm:$0xff]
      %v4465 = vld [vmem:[#allocation2 + $0x500] sm:$0xff]
      %v4466 = vld [vmem:[#allocation2 + $0x508] sm:$0xff]
      %v4467 = vld [vmem:[#allocation2 + $0x510] sm:$0xff]
      %v4468 = vld [vmem:[#allocation2 + $0x518] sm:$0xff]
      %v4469 = vld [vmem:[#allocation2 + $0x520] sm:$0xff]
      %v4470 = vld [vmem:[#allocation2 + $0x528] sm:$0xff]
      %v4471 = vld [vmem:[#allocation2 + $0x530] sm:$0xff]
      %v4472 = vld [vmem:[#allocation2 + $0x538] sm:$0xff]
      %v4473 = vld [vmem:[#allocation2 + $0x540] sm:$0xff]
      %v4474 = vld [vmem:[#allocation2 + $0x548] sm:$0xff]
      %v4475 = vld [vmem:[#allocation2 + $0x550] sm:$0xff]
      %v4476 = vld [vmem:[#allocation2 + $0x558] sm:$0xff]
      %v4477 = vld [vmem:[#allocation2 + $0x560] sm:$0xff]
      %v4478 = vld [vmem:[#allocation2 + $0x568] sm:$0xff]
      %v4479 = vld [vmem:[#allocation2 + $0x570] sm:$0xff]
      %v4480 = vld [vmem:[#allocation2 + $0x578] sm:$0xff]
      %v4481 = vld [vmem:[#allocation2 + $0x580] sm:$0xff]
      %v4482 = vld [vmem:[#allocation2 + $0x588] sm:$0xff]
      %v4483 = vld [vmem:[#allocation2 + $0x590] sm:$0xff]
      %v4484 = vld [vmem:[#allocation2 + $0x598] sm:$0xff]
      %v4485 = vld [vmem:[#allocation2 + $0x5a0] sm:$0xff]
      %v4486 = vld [vmem:[#allocation2 + $0x5a8] sm:$0xff]
      %v4487 = vld [vmem:[#allocation2 + $0x5b0] sm:$0xff]
      %v4488 = vld [vmem:[#allocation2 + $0x5b8] sm:$0xff]
      %v4489 = vld [vmem:[#allocation2 + $0x5c0] sm:$0xff]
      %v4490 = vld [vmem:[#allocation2 + $0x5c8] sm:$0xff]
      %v4491 = vld [vmem:[#allocation2 + $0x5d0] sm:$0xff]
      %v4492 = vld [vmem:[#allocation2 + $0x5d8] sm:$0xff]
      %v4493 = vld [vmem:[#allocation2 + $0x5e0] sm:$0xff]
      %v4494 = vld [vmem:[#allocation2 + $0x5e8] sm:$0xff]
      %v4495 = vld [vmem:[#allocation2 + $0x5f0] sm:$0xff]
      %v4496 = vld [vmem:[#allocation2 + $0x5f8] sm:$0xff]
      %v4497 = vld [vmem:[#allocation2 + $0x600] sm:$0xff]
      %v4498 = vld [vmem:[#allocation2 + $0x608] sm:$0xff]
      %v4499 = vld [vmem:[#allocation2 + $0x610] sm:$0xff]
      %v4500 = vld [vmem:[#allocation2 + $0x618] sm:$0xff]
      %v4501 = vld [vmem:[#allocation2 + $0x620] sm:$0xff]
      %v4502 = vld [vmem:[#allocation2 + $0x628] sm:$0xff]
      %v4503 = vld [vmem:[#allocation2 + $0x630] sm:$0xff]
      %v4504 = vld [vmem:[#allocation2 + $0x638] sm:$0xff]
      %v4505 = vld [vmem:[#allocation2 + $0x640] sm:$0xff]
      %v4506 = vld [vmem:[#allocation2 + $0x648] sm:$0xff]
      %v4507 = vld [vmem:[#allocation2 + $0x650] sm:$0xff]
      %v4508 = vld [vmem:[#allocation2 + $0x658] sm:$0xff]
      %v4509 = vld [vmem:[#allocation2 + $0x660] sm:$0xff]
      %v4510 = vld [vmem:[#allocation2 + $0x668] sm:$0xff]
      %v4511 = vld [vmem:[#allocation2 + $0x670] sm:$0xff]
      %v4512 = vld [vmem:[#allocation2 + $0x678] sm:$0xff]
      %v4513 = vld [vmem:[#allocation2 + $0x680] sm:$0xff]
      %v4514 = vld [vmem:[#allocation2 + $0x688] sm:$0xff]
      %v4515 = vld [vmem:[#allocation2 + $0x690] sm:$0xff]
      %v4516 = vld [vmem:[#allocation2 + $0x698] sm:$0xff]
      %v4517 = vld [vmem:[#allocation2 + $0x6a0] sm:$0xff]
      %v4518 = vld [vmem:[#allocation2 + $0x6a8] sm:$0xff]
      %v4519 = vld [vmem:[#allocation2 + $0x6b0] sm:$0xff]
      %v4520 = vld [vmem:[#allocation2 + $0x6b8] sm:$0xff]
      %v4525 = vunpack.c.l.b16 %v4301
      %v4526 = vunpack.c.h.b16 %v4301
      %v4527 = vunpack.c.l.b16 %v4302
      %v4528 = vunpack.c.h.b16 %v4302
      %v4529 = vunpack.c.l.b16 %v4303
      %v4530 = vunpack.c.h.b16 %v4303
      %v4531 = vunpack.c.l.b16 %v4304
      %v4532 = vunpack.c.h.b16 %v4304
      %v4533 = vpack.c.b16 %v4529, %v4525
      %v4534 = vpack.c.b16 %v4530, %v4526
      %v4535 = vpack.c.b16 %v4531, %v4527
      %v4536 = vpack.c.b16 %v4532, %v4528
      %v4541 = vsel %vm2104, %v4536, 0
      %4543 = vmatprep.subr.bf16.mxu0 %v4306
      %4544 = vmatpush1.bf16.msra.mxu0 %v4305
      %4545 = vmatprep.subr.bf16.mxu0 %v4314
      %4546 = vmatpush1.bf16.msra.mxu0 %v4313
      %4547 = vmatprep.subr.bf16.mxu0 %v4322
      %4548 = vmatpush1.bf16.msra.mxu0 %v4321
      %4549 = vmatprep.subr.bf16.mxu0 %v4330
      %4550 = vmatpush1.bf16.msra.mxu0 %v4329
      %4551 = vmatprep.subr.bf16.mxu0 %v4338
      %4552 = vmatpush1.bf16.msra.mxu0 %v4337
      %4553 = vmatprep.subr.bf16.mxu0 %v4346
      %4554 = vmatpush1.bf16.msra.mxu0 %v4345
      %4555 = vmatprep.subr.bf16.mxu0 %v4354
      %4556 = vmatpush1.bf16.msra.mxu0 %v4353
      %4557 = vmatprep.subr.bf16.mxu0 %v4362
      %4558 = vmatpush1.bf16.msra.mxu0 %v4361
      %4559 = vmatprep.subr.bf16.mxu0 %v4370
      %4560 = vmatpush1.bf16.msra.mxu0 %v4369
      %4561 = vmatprep.subr.bf16.mxu0 %v4378
      %4562 = vmatpush1.bf16.msra.mxu0 %v4377
      %4563 = vmatprep.subr.bf16.mxu0 %v4386
      %4564 = vmatpush1.bf16.msra.mxu0 %v4385
      %4565 = vmatprep.subr.bf16.mxu0 %v4394
      %4566 = vmatpush1.bf16.msra.mxu0 %v4393
      %4567 = vmatprep.subr.bf16.mxu0 %v4402
      %4568 = vmatpush1.bf16.msra.mxu0 %v4401
      %4569 = vmatprep.subr.bf16.mxu0 %v4410
      %4570 = vmatpush1.bf16.msra.mxu0 %v4409
      %4571 = vmatprep.subr.bf16.mxu0 %v4418
      %4572 = vmatpush1.bf16.msra.mxu0 %v4417
      %4573 = vmatprep.subr.bf16.mxu0 %v4426
      %4574 = vmatpush1.bf16.msra.mxu0 %v4425
      %4575 = vmatprep.mubr.bf16.mxu0 %v4534
      %4576 = vmatmul.mubr.bf16.gmra.mrb[0].mxu0 %v4533
      %v4577 = vpop.f32.mrb[0].mxu0
      %v4578 = vadd.f32 0.0, %v4577
      %v4579 = vpop.f32.mrb[0].mxu0
      %v4580 = vadd.f32 0.0, %v4579
      %v4581 = vpop.f32.mrb[0].mxu0
      %v4582 = vadd.f32 0.0, %v4581
      %v4583 = vpop.f32.mrb[0].mxu0
      %v4584 = vadd.f32 0.0, %v4583
      %4585 = vdwg.mxu0
      %4586 = vmatprep.subr.bf16.mxu0 %v4434
      %4587 = vmatpush1.bf16.msra.mxu0 %v4433
      %4588 = vmatprep.subr.bf16.mxu0 %v4442
      %4589 = vmatpush1.bf16.msra.mxu0 %v4441
      %4590 = vmatprep.subr.bf16.mxu0 %v4450
      %4591 = vmatpush1.bf16.msra.mxu0 %v4449
      %4592 = vmatprep.subr.bf16.mxu0 %v4458
      %4593 = vmatpush1.bf16.msra.mxu0 %v4457
      %4594 = vmatprep.subr.bf16.mxu0 %v4466
      %4595 = vmatpush1.bf16.msra.mxu0 %v4465
      %4596 = vmatprep.subr.bf16.mxu0 %v4474
      %4597 = vmatpush1.bf16.msra.mxu0 %v4473
      %4598 = vmatprep.subr.bf16.mxu0 %v4482
      %4599 = vmatpush1.bf16.msra.mxu0 %v4481
      %4600 = vmatprep.subr.bf16.mxu0 %v4490
      %4601 = vmatpush1.bf16.msra.mxu0 %v4489
      %4602 = vmatprep.subr.bf16.mxu0 %v4498
      %4603 = vmatpush1.bf16.msra.mxu0 %v4497
      %4604 = vmatprep.subr.bf16.mxu0 %v4506
      %4605 = vmatpush1.bf16.msra.mxu0 %v4505
      %4606 = vmatprep.subr.bf16.mxu0 %v4514
      %4607 = vmatpush1.bf16.msra.mxu0 %v4513
      %4608 = vmatprep.subr.bf16.mxu0 0
      %4609 = vmatpush1.bf16.msra.mxu0 0
      %4610 = vmatprep.subr.bf16.mxu0 0
      %4611 = vmatpush1.bf16.msra.mxu0 0
      %4612 = vmatprep.subr.bf16.mxu0 0
      %4613 = vmatpush1.bf16.msra.mxu0 0
      %4614 = vmatprep.subr.bf16.mxu0 0
      %4615 = vmatpush1.bf16.msra.mxu0 0
      %4616 = vmatprep.subr.bf16.mxu0 0
      %4617 = vmatpush1.bf16.msra.mxu0 0
      %4618 = vmatprep.mubr.bf16.mxu0 %v4541
      %4619 = vmatmul.mubr.bf16.gmra.mrb[0].mxu0 %v4535
      %v4620 = vpop.f32.mrb[0].mxu0
      %v4621 = vadd.f32 %v4578, %v4620
      %v4622 = vpop.f32.mrb[0].mxu0
      %v4623 = vadd.f32 %v4580, %v4622
      %v4624 = vpop.f32.mrb[0].mxu0
      %v4625 = vadd.f32 %v4582, %v4624
      %v4626 = vpop.f32.mrb[0].mxu0
      %v4627 = vadd.f32 %v4584, %v4626
      %4628 = vdwg.mxu0
      %4629 = vmatprep.subr.bf16.mxu0 %v4308
      %4630 = vmatpush1.bf16.msra.mxu0 %v4307
      %4631 = vmatprep.subr.bf16.mxu0 %v4316
      %4632 = vmatpush1.bf16.msra.mxu0 %v4315
      %4633 = vmatprep.subr.bf16.mxu0 %v4324
      %4634 = vmatpush1.bf16.msra.mxu0 %v4323
      %4635 = vmatprep.subr.bf16.mxu0 %v4332
      %4636 = vmatpush1.bf16.msra.mxu0 %v4331
      %4637 = vmatprep.subr.bf16.mxu0 %v4340
      %4638 = vmatpush1.bf16.msra.mxu0 %v4339
      %4639 = vmatprep.subr.bf16.mxu0 %v4348
      %4640 = vmatpush1.bf16.msra.mxu0 %v4347
      %4641 = vmatprep.subr.bf16.mxu0 %v4356
      %4642 = vmatpush1.bf16.msra.mxu0 %v4355
      %4643 = vmatprep.subr.bf16.mxu0 %v4364
      %4644 = vmatpush1.bf16.msra.mxu0 %v4363
      %4645 = vmatprep.subr.bf16.mxu0 %v4372
      %4646 = vmatpush1.bf16.msra.mxu0 %v4371
      %4647 = vmatprep.subr.bf16.mxu0 %v4380
      %4648 = vmatpush1.bf16.msra.mxu0 %v4379
      %4649 = vmatprep.subr.bf16.mxu0 %v4388
      %4650 = vmatpush1.bf16.msra.mxu0 %v4387
      %4651 = vmatprep.subr.bf16.mxu0 %v4396
      %4652 = vmatpush1.bf16.msra.mxu0 %v4395
      %4653 = vmatprep.subr.bf16.mxu0 %v4404
      %4654 = vmatpush1.bf16.msra.mxu0 %v4403
      %4655 = vmatprep.subr.bf16.mxu0 %v4412
      %4656 = vmatpush1.bf16.msra.mxu0 %v4411
      %4657 = vmatprep.subr.bf16.mxu0 %v4420
      %4658 = vmatpush1.bf16.msra.mxu0 %v4419
      %4659 = vmatprep.subr.bf16.mxu0 %v4428
      %4660 = vmatpush1.bf16.msra.mxu0 %v4427
      %4661 = vmatprep.mubr.bf16.mxu0 %v4534
      %4662 = vmatmul.mubr.bf16.gmra.mrb[0].mxu0 %v4533
      %v4663 = vpop.f32.mrb[0].mxu0
      %v4664 = vadd.f32 0.0, %v4663
      %v4665 = vpop.f32.mrb[0].mxu0
      %v4666 = vadd.f32 0.0, %v4665
      %v4667 = vpop.f32.mrb[0].mxu0
      %v4668 = vadd.f32 0.0, %v4667
      %v4669 = vpop.f32.mrb[0].mxu0
      %v4670 = vadd.f32 0.0, %v4669
      %4671 = vdwg.mxu0
      %4672 = vmatprep.subr.bf16.mxu0 %v4436
      %4673 = vmatpush1.bf16.msra.mxu0 %v4435
      %4674 = vmatprep.subr.bf16.mxu0 %v4444
      %4675 = vmatpush1.bf16.msra.mxu0 %v4443
      %4676 = vmatprep.subr.bf16.mxu0 %v4452
      %4677 = vmatpush1.bf16.msra.mxu0 %v4451
      %4678 = vmatprep.subr.bf16.mxu0 %v4460
      %4679 = vmatpush1.bf16.msra.mxu0 %v4459
      %4680 = vmatprep.subr.bf16.mxu0 %v4468
      %4681 = vmatpush1.bf16.msra.mxu0 %v4467
      %4682 = vmatprep.subr.bf16.mxu0 %v4476
      %4683 = vmatpush1.bf16.msra.mxu0 %v4475
      %4684 = vmatprep.subr.bf16.mxu0 %v4484
      %4685 = vmatpush1.bf16.msra.mxu0 %v4483
      %4686 = vmatprep.subr.bf16.mxu0 %v4492
      %4687 = vmatpush1.bf16.msra.mxu0 %v4491
      %4688 = vmatprep.subr.bf16.mxu0 %v4500
      %4689 = vmatpush1.bf16.msra.mxu0 %v4499
      %4690 = vmatprep.subr.bf16.mxu0 %v4508
      %4691 = vmatpush1.bf16.msra.mxu0 %v4507
      %4692 = vmatprep.subr.bf16.mxu0 %v4516
      %4693 = vmatpush1.bf16.msra.mxu0 %v4515
      %4694 = vmatprep.subr.bf16.mxu0 0
      %4695 = vmatpush1.bf16.msra.mxu0 0
      %4696 = vmatprep.subr.bf16.mxu0 0
      %4697 = vmatpush1.bf16.msra.mxu0 0
      %4698 = vmatprep.subr.bf16.mxu0 0
      %4699 = vmatpush1.bf16.msra.mxu0 0
      %4700 = vmatprep.subr.bf16.mxu0 0
      %4701 = vmatpush1.bf16.msra.mxu0 0
      %4702 = vmatprep.subr.bf16.mxu0 0
      %4703 = vmatpush1.bf16.msra.mxu0 0
      %4704 = vmatprep.mubr.bf16.mxu0 %v4541
      %4705 = vmatmul.mubr.bf16.gmra.mrb[0].mxu0 %v4535
      %v4706 = vpop.f32.mrb[0].mxu0
      %v4707 = vadd.f32 %v4664, %v4706
      %v4708 = vpop.f32.mrb[0].mxu0
      %v4709 = vadd.f32 %v4666, %v4708
      %v4710 = vpop.f32.mrb[0].mxu0
      %v4711 = vadd.f32 %v4668, %v4710
      %v4712 = vpop.f32.mrb[0].mxu0
      %v4713 = vadd.f32 %v4670, %v4712
      %4714 = vdwg.mxu0
      %4715 = vmatprep.subr.bf16.mxu0 %v4310
      %4716 = vmatpush1.bf16.msra.mxu0 %v4309
      %4717 = vmatprep.subr.bf16.mxu0 %v4318
      %4718 = vmatpush1.bf16.msra.mxu0 %v4317
      %4719 = vmatprep.subr.bf16.mxu0 %v4326
      %4720 = vmatpush1.bf16.msra.mxu0 %v4325
      %4721 = vmatprep.subr.bf16.mxu0 %v4334
      %4722 = vmatpush1.bf16.msra.mxu0 %v4333
      %4723 = vmatprep.subr.bf16.mxu0 %v4342
      %4724 = vmatpush1.bf16.msra.mxu0 %v4341
      %4725 = vmatprep.subr.bf16.mxu0 %v4350
      %4726 = vmatpush1.bf16.msra.mxu0 %v4349
      %4727 = vmatprep.subr.bf16.mxu0 %v4358
      %4728 = vmatpush1.bf16.msra.mxu0 %v4357
      %4729 = vmatprep.subr.bf16.mxu0 %v4366
      %4730 = vmatpush1.bf16.msra.mxu0 %v4365
      %4731 = vmatprep.subr.bf16.mxu0 %v4374
      %4732 = vmatpush1.bf16.msra.mxu0 %v4373
      %4733 = vmatprep.subr.bf16.mxu0 %v4382
      %4734 = vmatpush1.bf16.msra.mxu0 %v4381
      %4735 = vmatprep.subr.bf16.mxu0 %v4390
      %4736 = vmatpush1.bf16.msra.mxu0 %v4389
      %4737 = vmatprep.subr.bf16.mxu0 %v4398
      %4738 = vmatpush1.bf16.msra.mxu0 %v4397
      %4739 = vmatprep.subr.bf16.mxu0 %v4406
      %4740 = vmatpush1.bf16.msra.mxu0 %v4405
      %4741 = vmatprep.subr.bf16.mxu0 %v4414
      %4742 = vmatpush1.bf16.msra.mxu0 %v4413
      %4743 = vmatprep.subr.bf16.mxu0 %v4422
      %4744 = vmatpush1.bf16.msra.mxu0 %v4421
      %4745 = vmatprep.subr.bf16.mxu0 %v4430
      %4746 = vmatpush1.bf16.msra.mxu0 %v4429
      %4747 = vmatprep.mubr.bf16.mxu0 %v4534
      %4748 = vmatmul.mubr.bf16.gmra.mrb[0].mxu0 %v4533
      %v4749 = vpop.f32.mrb[0].mxu0
      %v4750 = vadd.f32 0.0, %v4749
      %v4751 = vpop.f32.mrb[0].mxu0
      %v4752 = vadd.f32 0.0, %v4751
      %v4753 = vpop.f32.mrb[0].mxu0
      %v4754 = vadd.f32 0.0, %v4753
      %v4755 = vpop.f32.mrb[0].mxu0
      %v4756 = vadd.f32 0.0, %v4755
      %4757 = vdwg.mxu0
      %4758 = vmatprep.subr.bf16.mxu0 %v4438
      %4759 = vmatpush1.bf16.msra.mxu0 %v4437
      %4760 = vmatprep.subr.bf16.mxu0 %v4446
      %4761 = vmatpush1.bf16.msra.mxu0 %v4445
      %4762 = vmatprep.subr.bf16.mxu0 %v4454
      %4763 = vmatpush1.bf16.msra.mxu0 %v4453
      %4764 = vmatprep.subr.bf16.mxu0 %v4462
      %4765 = vmatpush1.bf16.msra.mxu0 %v4461
      %4766 = vmatprep.subr.bf16.mxu0 %v4470
      %4767 = vmatpush1.bf16.msra.mxu0 %v4469
      %4768 = vmatprep.subr.bf16.mxu0 %v4478
      %4769 = vmatpush1.bf16.msra.mxu0 %v4477
      %4770 = vmatprep.subr.bf16.mxu0 %v4486
      %4771 = vmatpush1.bf16.msra.mxu0 %v4485
      %4772 = vmatprep.subr.bf16.mxu0 %v4494
      %4773 = vmatpush1.bf16.msra.mxu0 %v4493
      %4774 = vmatprep.subr.bf16.mxu0 %v4502
      %4775 = vmatpush1.bf16.msra.mxu0 %v4501
      %4776 = vmatprep.subr.bf16.mxu0 %v4510
      %4777 = vmatpush1.bf16.msra.mxu0 %v4509
      %4778 = vmatprep.subr.bf16.mxu0 %v4518
      %4779 = vmatpush1.bf16.msra.mxu0 %v4517
      %4780 = vmatprep.subr.bf16.mxu0 0
      %4781 = vmatpush1.bf16.msra.mxu0 0
      %4782 = vmatprep.subr.bf16.mxu0 0
      %4783 = vmatpush1.bf16.msra.mxu0 0
      %4784 = vmatprep.subr.bf16.mxu0 0
      %4785 = vmatpush1.bf16.msra.mxu0 0
      %4786 = vmatprep.subr.bf16.mxu0 0
      %4787 = vmatpush1.bf16.msra.mxu0 0
      %4788 = vmatprep.subr.bf16.mxu0 0
      %4789 = vmatpush1.bf16.msra.mxu0 0
      %4790 = vmatprep.mubr.bf16.mxu0 %v4541
      %4791 = vmatmul.mubr.bf16.gmra.mrb[0].mxu0 %v4535
      %v4792 = vpop.f32.mrb[0].mxu0
      %v4793 = vadd.f32 %v4750, %v4792
      %v4794 = vpop.f32.mrb[0].mxu0
      %v4795 = vadd.f32 %v4752, %v4794
      %v4796 = vpop.f32.mrb[0].mxu0
      %v4797 = vadd.f32 %v4754, %v4796
      %v4798 = vpop.f32.mrb[0].mxu0
      %v4799 = vadd.f32 %v4756, %v4798
      %4800 = vdwg.mxu0
      %4801 = vmatprep.subr.bf16.mxu0 %v4312
      %4802 = vmatpush1.bf16.msra.mxu0 %v4311
      %4803 = vmatprep.subr.bf16.mxu0 %v4320
      %4804 = vmatpush1.bf16.msra.mxu0 %v4319
      %4805 = vmatprep.subr.bf16.mxu0 %v4328
      %4806 = vmatpush1.bf16.msra.mxu0 %v4327
      %4807 = vmatprep.subr.bf16.mxu0 %v4336
      %4808 = vmatpush1.bf16.msra.mxu0 %v4335
      %4809 = vmatprep.subr.bf16.mxu0 %v4344
      %4810 = vmatpush1.bf16.msra.mxu0 %v4343
      %4811 = vmatprep.subr.bf16.mxu0 %v4352
      %4812 = vmatpush1.bf16.msra.mxu0 %v4351
      %4813 = vmatprep.subr.bf16.mxu0 %v4360
      %4814 = vmatpush1.bf16.msra.mxu0 %v4359
      %4815 = vmatprep.subr.bf16.mxu0 %v4368
      %4816 = vmatpush1.bf16.msra.mxu0 %v4367
      %4817 = vmatprep.subr.bf16.mxu0 %v4376
      %4818 = vmatpush1.bf16.msra.mxu0 %v4375
      %4819 = vmatprep.subr.bf16.mxu0 %v4384
      %4820 = vmatpush1.bf16.msra.mxu0 %v4383
      %4821 = vmatprep.subr.bf16.mxu0 %v4392
      %4822 = vmatpush1.bf16.msra.mxu0 %v4391
      %4823 = vmatprep.subr.bf16.mxu0 %v4400
      %4824 = vmatpush1.bf16.msra.mxu0 %v4399
      %4825 = vmatprep.subr.bf16.mxu0 %v4408
      %4826 = vmatpush1.bf16.msra.mxu0 %v4407
      %4827 = vmatprep.subr.bf16.mxu0 %v4416
      %4828 = vmatpush1.bf16.msra.mxu0 %v4415
      %4829 = vmatprep.subr.bf16.mxu0 %v4424
      %4830 = vmatpush1.bf16.msra.mxu0 %v4423
      %4831 = vmatprep.subr.bf16.mxu0 %v4432
      %4832 = vmatpush1.bf16.msra.mxu0 %v4431
      %4833 = vmatprep.mubr.bf16.mxu0 %v4534
      %4834 = vmatmul.mubr.bf16.gmra.mrb[0].mxu0 %v4533
      %v4835 = vpop.f32.mrb[0].mxu0
      %v4836 = vadd.f32 0.0, %v4835
      %v4837 = vpop.f32.mrb[0].mxu0
      %v4838 = vadd.f32 0.0, %v4837
      %v4839 = vpop.f32.mrb[0].mxu0
      %v4840 = vadd.f32 0.0, %v4839
      %v4841 = vpop.f32.mrb[0].mxu0
      %v4842 = vadd.f32 0.0, %v4841
      %4843 = vdwg.mxu0
      %4844 = vmatprep.subr.bf16.mxu0 %v4440
      %4845 = vmatpush1.bf16.msra.mxu0 %v4439
      %4846 = vmatprep.subr.bf16.mxu0 %v4448
      %4847 = vmatpush1.bf16.msra.mxu0 %v4447
      %4848 = vmatprep.subr.bf16.mxu0 %v4456
      %4849 = vmatpush1.bf16.msra.mxu0 %v4455
      %4850 = vmatprep.subr.bf16.mxu0 %v4464
      %4851 = vmatpush1.bf16.msra.mxu0 %v4463
      %4852 = vmatprep.subr.bf16.mxu0 %v4472
      %4853 = vmatpush1.bf16.msra.mxu0 %v4471
      %4854 = vmatprep.subr.bf16.mxu0 %v4480
      %4855 = vmatpush1.bf16.msra.mxu0 %v4479
      %4856 = vmatprep.subr.bf16.mxu0 %v4488
      %4857 = vmatpush1.bf16.msra.mxu0 %v4487
      %4858 = vmatprep.subr.bf16.mxu0 %v4496
      %4859 = vmatpush1.bf16.msra.mxu0 %v4495
      %4860 = vmatprep.subr.bf16.mxu0 %v4504
      %4861 = vmatpush1.bf16.msra.mxu0 %v4503
      %4862 = vmatprep.subr.bf16.mxu0 %v4512
      %4863 = vmatpush1.bf16.msra.mxu0 %v4511
      %4864 = vmatprep.subr.bf16.mxu0 %v4520
      %4865 = vmatpush1.bf16.msra.mxu0 %v4519
      %4866 = vmatprep.subr.bf16.mxu0 0
      %4867 = vmatpush1.bf16.msra.mxu0 0
      %4868 = vmatprep.subr.bf16.mxu0 0
      %4869 = vmatpush1.bf16.msra.mxu0 0
      %4870 = vmatprep.subr.bf16.mxu0 0
      %4871 = vmatpush1.bf16.msra.mxu0 0
      %4872 = vmatprep.subr.bf16.mxu0 0
      %4873 = vmatpush1.bf16.msra.mxu0 0
      %4874 = vmatprep.subr.bf16.mxu0 0
      %4875 = vmatpush1.bf16.msra.mxu0 0
      %4876 = vmatprep.mubr.bf16.mxu0 %v4541
      %4877 = vmatmul.mubr.bf16.gmra.mrb[0].mxu0 %v4535
      %v4878 = vpop.f32.mrb[0].mxu0
      %v4879 = vadd.f32 %v4836, %v4878
      %v4880 = vpop.f32.mrb[0].mxu0
      %v4881 = vadd.f32 %v4838, %v4880
      %v4882 = vpop.f32.mrb[0].mxu0
      %v4883 = vadd.f32 %v4840, %v4882
      %v4884 = vpop.f32.mrb[0].mxu0
      %v4885 = vadd.f32 %v4842, %v4884
      %4886 = vdwg.mxu0
      %v4887 = vmul.f32 %v4621, %v2456
      %v4888 = vmul.f32 %v4623, %v2460
      %v4889 = vmul.f32 %v4707, %v2464
      %v4890 = vmul.f32 %v4709, %v2468
      %v4891 = vmul.f32 %v4793, %v2472
      %v4892 = vmul.f32 %v4795, %v2476
      %v4893 = vmul.f32 %v4879, %v2480
      %v4894 = vmul.f32 %v4881, %v2484
      %v4895 = vmul.f32 %v4625, %v2456
      %v4896 = vmul.f32 %v4627, %v2460
      %v4897 = vmul.f32 %v4711, %v2464
      %v4898 = vmul.f32 %v4713, %v2468
      %v4899 = vmul.f32 %v4797, %v2472
      %v4900 = vmul.f32 %v4799, %v2476
      %v4901 = vmul.f32 %v4883, %v2480
      %v4902 = vmul.f32 %v4885, %v2484
      %v4903 = vadd.f32 %v4887, %v4888
      %v4904 = vadd.f32 %v4903, %v4889
      %v4905 = vadd.f32 %v4904, %v4890
      %v4906 = vadd.f32 %v4905, %v4891
      %v4907 = vadd.f32 %v4906, %v4892
      %v4908 = vadd.f32 %v4907, %v4893
      %v4909 = vadd.f32 %v4908, %v4894
      %4910 = vadd.xlane.f32.xlu0 %v4909
      %v4911 = vpop.xlane.xlu0 %4910
      %v4912 = vadd.f32 %v4895, %v4896
      %v4913 = vadd.f32 %v4912, %v4897
      %v4914 = vadd.f32 %v4913, %v4898
      %v4915 = vadd.f32 %v4914, %v4899
      %v4916 = vadd.f32 %v4915, %v4900
      %v4917 = vadd.f32 %v4916, %v4901
      %v4918 = vadd.f32 %v4917, %v4902
      %4919 = vadd.xlane.f32.xlu0 %v4918
      %v4920 = vpop.xlane.xlu0 %4919
      %v4921 = vmul.f32 %v4911, 0.001953125
      %v4922 = vmul.f32 %v4920, 0.001953125
      %v4923 = vmul.f32 %v4887, %v4621
      %v4924 = vmul.f32 %v4888, %v4623
      %v4925 = vmul.f32 %v4889, %v4707
      %v4926 = vmul.f32 %v4890, %v4709
      %v4927 = vmul.f32 %v4891, %v4793
      %v4928 = vmul.f32 %v4892, %v4795
      %v4929 = vmul.f32 %v4893, %v4879
      %v4930 = vmul.f32 %v4894, %v4881
      %v4931 = vmul.f32 %v4895, %v4625
      %v4932 = vmul.f32 %v4896, %v4627
      %v4933 = vmul.f32 %v4897, %v4711
      %v4934 = vmul.f32 %v4898, %v4713
      %v4935 = vmul.f32 %v4899, %v4797
      %v4936 = vmul.f32 %v4900, %v4799
      %v4937 = vmul.f32 %v4901, %v4883
      %v4938 = vmul.f32 %v4902, %v4885
      %v4939 = vadd.f32 %v4923, %v4924
      %v4940 = vadd.f32 %v4939, %v4925
      %v4941 = vadd.f32 %v4940, %v4926
      %v4942 = vadd.f32 %v4941, %v4927
      %v4943 = vadd.f32 %v4942, %v4928
      %v4944 = vadd.f32 %v4943, %v4929
      %v4945 = vadd.f32 %v4944, %v4930
      %4946 = vadd.xlane.f32.xlu0 %v4945
      %v4947 = vpop.xlane.xlu0 %4946
      %v4948 = vadd.f32 %v4931, %v4932
      %v4949 = vadd.f32 %v4948, %v4933
      %v4950 = vadd.f32 %v4949, %v4934
      %v4951 = vadd.f32 %v4950, %v4935
      %v4952 = vadd.f32 %v4951, %v4936
      %v4953 = vadd.f32 %v4952, %v4937
      %v4954 = vadd.f32 %v4953, %v4938
      %4955 = vadd.xlane.f32.xlu0 %v4954
      %v4956 = vpop.xlane.xlu0 %4955
      %v4957 = vmul.f32 %v4947, 0.001953125
      %v4958 = vmul.f32 %v4956, 0.001953125
      %v4959 = vmul.f32 %v4921, %v4921
      %v4960 = vmul.f32 %v4922, %v4922
      %v4961 = vsub.f32 %v4957, %v4959
      %v4962 = vsub.f32 %v4958, %v4960
      %v4963 = vld [vmem:[%s4] sm:$0xff]
      %v4964 = vld [vmem:[%s4 + $0x8] sm:$0xff]
      %v4965 = vmax.f32 %v4961, 0.0
      %v4966 = vmax.f32 %v4962, 0.0
      %v4967 = vadd.f32 %v4965, 1e-05
      %v4968 = vadd.f32 %v4966, 1e-05
      %v4969 = vrsqrt.pop %v4967
      %v4970 = vrsqrt.pop %v4968
      %v4971 = vmul.f32 %v4963, %v4969
      %v4972 = vmul.f32 %v4964, %v4970
      %v4973 = vmul.f32 %v4921, %v4971
      %v4974 = vmul.f32 %v4922, %v4972
      %4977 = vrot.lane.b32.xlu0 %v4973, 1
      %v4978 = vpop.permute.xlu0 %4977
      %4979 = vrot.lane.b32.xlu0 %v4974, 1
      %v4980 = vpop.permute.xlu0 %4979
      %v4983 = vsub.f32 %v4963, %v4978
      %v4984 = vsub.f32 %v4964, %v4980
      %4986 = vset.pattern.permute.xlu0 2
      %4987 = vperm.xlu0 %4986, %v4971
      %v4988 = vpop.permute.xlu0 %4987
      %4991 = vset.pattern.permute.xlu0 2
      %4992 = vperm.xlu0 %4991, %v4972
      %v4993 = vpop.permute.xlu0 %4992
      %v4995 = vmul.f32 %v4621, %v4988
      %v4996 = vmul.f32 %v4623, %v4988
      %v4997 = vmul.f32 %v4707, %v4988
      %v4998 = vmul.f32 %v4709, %v4988
      %v4999 = vmul.f32 %v4793, %v4988
      %v5000 = vmul.f32 %v4795, %v4988
      %v5001 = vmul.f32 %v4879, %v4988
      %v5002 = vmul.f32 %v4881, %v4988
      %v5003 = vmul.f32 %v4625, %v4993
      %v5004 = vmul.f32 %v4627, %v4993
      %v5005 = vmul.f32 %v4711, %v4993
      %v5006 = vmul.f32 %v4713, %v4993
      %v5007 = vmul.f32 %v4797, %v4993
      %v5008 = vmul.f32 %v4799, %v4993
      %v5009 = vmul.f32 %v4883, %v4993
      %v5010 = vmul.f32 %v4885, %v4993
      %5012 = vset.pattern.permute.xlu0 3
      %5013 = vperm.xlu0 %5012, %v4983
      %v5014 = vpop.permute.xlu0 %5013
      %5017 = vset.pattern.permute.xlu0 3
      %5018 = vperm.xlu0 %5017, %v4984
      %v5019 = vpop.permute.xlu0 %5018
      %v5021 = vadd.f32 %v4995, %v5014
      %v5022 = vadd.f32 %v4996, %v5014
      %v5023 = vadd.f32 %v4997, %v5014
      %v5024 = vadd.f32 %v4998, %v5014
      %v5025 = vadd.f32 %v4999, %v5014
      %v5026 = vadd.f32 %v5000, %v5014
      %v5027 = vadd.f32 %v5001, %v5014
      %v5028 = vadd.f32 %v5002, %v5014
      %v5029 = vadd.f32 %v5003, %v5019
      %v5030 = vadd.f32 %v5004, %v5019
      %v5031 = vadd.f32 %v5005, %v5019
      %v5032 = vadd.f32 %v5006, %v5019
      %v5033 = vadd.f32 %v5007, %v5019
      %v5034 = vadd.f32 %v5008, %v5019
      %v5035 = vadd.f32 %v5009, %v5019
      %v5036 = vadd.f32 %v5010, %v5019
      %vm5037 = vcmp.gt.f32.partialorder %v5021, 0.0
      %vm5038 = vcmp.gt.f32.partialorder %v5022, 0.0
      %vm5039 = vcmp.gt.f32.partialorder %v5023, 0.0
      %vm5040 = vcmp.gt.f32.partialorder %v5024, 0.0
      %vm5041 = vcmp.gt.f32.partialorder %v5025, 0.0
      %vm5042 = vcmp.gt.f32.partialorder %v5026, 0.0
      %vm5043 = vcmp.gt.f32.partialorder %v5027, 0.0
      %vm5044 = vcmp.gt.f32.partialorder %v5028, 0.0
      %vm5045 = vcmp.gt.f32.partialorder %v5029, 0.0
      %vm5046 = vcmp.gt.f32.partialorder %v5030, 0.0
      %vm5047 = vcmp.gt.f32.partialorder %v5031, 0.0
      %vm5048 = vcmp.gt.f32.partialorder %v5032, 0.0
      %vm5049 = vcmp.gt.f32.partialorder %v5033, 0.0
      %vm5050 = vcmp.gt.f32.partialorder %v5034, 0.0
      %vm5051 = vcmp.gt.f32.partialorder %v5035, 0.0
      %vm5052 = vcmp.gt.f32.partialorder %v5036, 0.0
      %v5053 = vmul.f32 %v5021, 0.01
      %v5054 = vmul.f32 %v5022, 0.01
      %v5055 = vmul.f32 %v5023, 0.01
      %v5056 = vmul.f32 %v5024, 0.01
      %v5057 = vmul.f32 %v5025, 0.01
      %v5058 = vmul.f32 %v5026, 0.01
      %v5059 = vmul.f32 %v5027, 0.01
      %v5060 = vmul.f32 %v5028, 0.01
      %v5061 = vmul.f32 %v5029, 0.01
      %v5062 = vmul.f32 %v5030, 0.01
      %v5063 = vmul.f32 %v5031, 0.01
      %v5064 = vmul.f32 %v5032, 0.01
      %v5065 = vmul.f32 %v5033, 0.01
      %v5066 = vmul.f32 %v5034, 0.01
      %v5067 = vmul.f32 %v5035, 0.01
      %v5068 = vmul.f32 %v5036, 0.01
      %v5069 = vsel %vm5037, %v5021, %v5053
      %v5070 = vsel %vm5038, %v5022, %v5054
      %v5071 = vsel %vm5039, %v5023, %v5055
      %v5072 = vsel %vm5040, %v5024, %v5056
      %v5073 = vsel %vm5041, %v5025, %v5057
      %v5074 = vsel %vm5042, %v5026, %v5058
      %v5075 = vsel %vm5043, %v5027, %v5059
      %v5076 = vsel %vm5044, %v5028, %v5060
      %v5077 = vsel %vm5045, %v5029, %v5061
      %v5078 = vsel %vm5046, %v5030, %v5062
      %v5079 = vsel %vm5047, %v5031, %v5063
      %v5080 = vsel %vm5048, %v5032, %v5064
      %v5081 = vsel %vm5049, %v5033, %v5065
      %v5082 = vsel %vm5050, %v5034, %v5066
      %v5083 = vsel %vm5051, %v5035, %v5067
      %v5084 = vsel %vm5052, %v5036, %v5068
      %5085 = vst [vmem:[%s224] sm:$0xff] %v5069
      %5086 = vst [vmem:[%s224 + $0x8] sm:$0xff] %v5070
      %5087 = vst [vmem:[%s224 + $0x10] sm:$0xff] %v5071
      %5088 = vst [vmem:[%s224 + $0x18] sm:$0xff] %v5072
      %5089 = vst [vmem:[%s224 + $0x20] sm:$0xff] %v5073
      %5090 = vst [vmem:[%s224 + $0x28] sm:$0xff] %v5074
      %5091 = vst [vmem:[%s224 + $0x30] sm:$0xff] %v5075
      %5092 = vst [vmem:[%s224 + $0x38] sm:$0xff] %v5076
      %5093 = vst [vmem:[%s224 + $0x40] sm:$0xff] %v5077
      %5094 = vst [vmem:[%s224 + $0x48] sm:$0xff] %v5078
      %5095 = vst [vmem:[%s224 + $0x50] sm:$0xff] %v5079
      %5096 = vst [vmem:[%s224 + $0x58] sm:$0xff] %v5080
      %5097 = vst [vmem:[%s224 + $0x60] sm:$0xff] %v5081
      %5098 = vst [vmem:[%s224 + $0x68] sm:$0xff] %v5082
      %5099 = vst [vmem:[%s224 + $0x70] sm:$0xff] %v5083
      %5100 = vst [vmem:[%s224 + $0x78] sm:$0xff] %v5084
      %p5101 = scmp.lt.s32.totalorder %s16, 1
      %s5102 = scalar_select %p5101, %s16, 1
      %s5103 = smul.addr %s5102, 16
      %s5104 = smul.addr %s5103, 8
      %s5105 = scalar_lea.vmem %s5, %s5104
      // Predicated region
      $region41: #{conv_block_3d.1} parent=39 // pred_check
        %p5106 = pneg %p144
      $region42: #{conv_block_3d.1} parent=39 // pred_check_branch
        %5108 = sbr.rel (%p5106) target = $region44
      $region43: #{conv_block_3d.1} parent=39 // pred_region
        _
      $region44: #{conv_block_3d.1} parent=39 // pred_fallthru
        _
    $region40: #{conv_block_3d.1} parent=5 // pred_fallthru
      _
    %p5109 = scmp.le.s32.totalorder 2, %s11
    // Predicated region
    $region45: #{conv_block_3d.1} parent=5 // pred_check
      %p5110 = pneg %p5109
    $region46: #{conv_block_3d.1} parent=5 // pred_check_branch
      %5112 = sbr.rel (%p5110) target = $region48
    $region47: #{conv_block_3d.1} parent=5 // pred_region
      %s5113 = ssub.s32 %s11, 2
      // Predicated region
      $region49: #{conv_block_3d.1} parent=47 // pred_check
        %p5114 = pneg %p150
      $region50: #{conv_block_3d.1} parent=47 // pred_check_branch
        %5116 = sbr.rel (%p5114) target = $region52
      $region51: #{conv_block_3d.1} parent=47 // pred_region
        %p5117 = scmp.lt.s32.totalorder %s17, 1
        %s5118 = scalar_select %p5117, %s17, 1
        %s5119 = smul.addr %s5118, 16
        %s5120 = smul.addr %s5119, 8
        %s5121 = scalar_lea.vmem %s5, %s5120
      $region52: #{conv_block_3d.1} parent=47 // pred_fallthru
        _
    $region48: #{conv_block_3d.1} parent=5 // pred_fallthru
      _
  $region6: #{conv_block_3d.1} parent=0 // loop_footer
    %s15 = sadd.s32 1, %s11
  $region7: #{conv_block_3d.1} parent=0 // loop_footer_branch
    %10 = sbr.rel target = $region3
  $region8: #{conv_block_3d.1} parent=0 // loop_exit
    _

</llo_original>
